<compile_context>
chip_gen: v5e
topology: v5e:2x2
jax: 0.10.0
libtpu: 0.0.40
codegen_flags: <defaults>
</compile_context>

<pallas_src>
import jax
import jax.numpy as jnp
from jax.experimental import pallas as pl
from jax.experimental.pallas import tpu as pltpu


# ----------------------------------------------------------------------------
# Pallas kernel
# ----------------------------------------------------------------------------
def _make_kernel(T, B, H, Dp):
    """T timesteps, batch B, encoder hidden H, padded decoder hidden Dp."""
    f32 = jnp.float32
    bf16 = jnp.bfloat16

    def cell(pre, h, c, wh, n):
        """Fused-gate LSTM cell. pre: (B, 4n) = x@Wi+b (i|f|g|o along lanes).

        The i/f/o columns of Wi/Wh/b were pre-scaled by 0.5 at pack time, so
        sigmoid(x) == 0.5*tanh(pre_scaled) + 0.5 and one tanh covers the slab.
        """
        g = pre + jnp.dot(h.astype(bf16), wh, preferred_element_type=f32)   # (B, 4n)
        t = jnp.tanh(g)
        i_g = 0.5 * t[:, 0:n] + 0.5
        f_g = 0.5 * t[:, n:2 * n] + 0.5
        g_g = t[:, 2 * n:3 * n]
        o_g = 0.5 * t[:, 3 * n:4 * n] + 0.5
        c_new = f_g * c + i_g * g_g
        h_new = o_g * jnp.tanh(c_new)
        return h_new, c_new

    def kernel(x_ref,                                   # (T*B, Din) bf16, time-major
               ewi_ref, ewh_ref, eb_ref,                # encoder LSTM (fused gates)
               w1o_ref, b1o_ref, w2o_ref, b2o_ref,      # bottleneck: output path
               w1hc_ref, b1hc_ref, w2hc_ref, b2hc_ref,  # bottleneck: h/c (block-diag)
               dwi_ref, dwh_ref, db_ref,                # decoder LSTM (fused, padded)
               out_ref,                                 # (B, Dp) lane-dense output
               enc_out):                                # VMEM scratch (T*B, H)
        # ---- Encoder: hoisted input projection (one matmul for all T steps) ----
        enc_pre = (jnp.dot(x_ref[...], ewi_ref[...], preferred_element_type=f32)
                   + eb_ref[...])                                   # (T*B, 4H) f32
        ewh = ewh_ref[...]                                          # bf16 (H, 4H)

        h = jnp.zeros((B, H), f32)
        c = jnp.zeros((B, H), f32)
        for t in range(T):                                          # fully unrolled
            h, c = cell(enc_pre[t * B:(t + 1) * B, :], h, c, ewh, H)
            enc_out[pl.ds(t * B, B), :] = h

        # ---- BottleNeck: output path ----
        eo = enc_out[...]                                           # (T*B, H) f32
        z_out = jnp.maximum(
            jnp.dot(eo.astype(bf16), w1o_ref[...], preferred_element_type=f32)
            + b1o_ref[...], 0.0)                                    # (T*B, L)
        dec_in = (jnp.dot(z_out.astype(bf16), w2o_ref[...], preferred_element_type=f32)
                  + b2o_ref[...])                                   # (T*B, H)

        # ---- BottleNeck: h/c paths via block-diagonal weights (2 matmuls) ----
        hc = jnp.concatenate([h, c], axis=1)                        # (B, 2H)
        z_hc = jnp.maximum(
            jnp.dot(hc.astype(bf16), w1hc_ref[...], preferred_element_type=f32)
            + b1hc_ref[...], 0.0)                                   # (B, 2L) = [z_h | z_c]
        new_hc = (jnp.dot(z_hc.astype(bf16), w2hc_ref[...], preferred_element_type=f32)
                  + b2hc_ref[...])                                  # (B, 2*Dp) = [dh | dc]
        dh = new_hc[:, 0:Dp]                                        # 128-aligned slices
        dc = new_hc[:, Dp:2 * Dp]

        # ---- Decoder: hoisted input projection, then unrolled recurrence ----
        dec_pre = (jnp.dot(dec_in.astype(bf16), dwi_ref[...], preferred_element_type=f32)
                   + db_ref[...])                                   # (T*B, 4*Dp)
        dwh = dwh_ref[...]                                          # bf16 (Dp, 4*Dp)
        for t in range(T):                                          # fully unrolled
            dh, dc = cell(dec_pre[t * B:(t + 1) * B, :], dh, dc, dwh, Dp)

        out_ref[...] = dh.astype(out_ref.dtype)                     # full (B, Dp) store

    return kernel


# ----------------------------------------------------------------------------
# Wrapper: weight packing (gate fusion, sigmoid->tanh prescale, lane padding,
# block-diag h/c fusion, bf16 cast) + pallas_call
# ----------------------------------------------------------------------------
def aelstm_pallas(x_flat, p, T, B):
    """x_flat: (T*B, Din) time-major concatenated encoder input (flattened)."""
    f32 = jnp.float32
    bf16 = jnp.bfloat16
    H = p['enc_wh'].shape[2]          # encoder hidden (128)
    L = p['w1o'].shape[1]             # latent (64)
    Dh = p['dec_wh'].shape[2]         # decoder hidden (8)
    Dp = 128                          # decoder hidden padded to one full lane tile

    # sigmoid(x) = 0.5*tanh(0.5*x) + 0.5 -> pre-scale i/f/o gate columns by 0.5.
    GATE_SCALE = (0.5, 0.5, 1.0, 0.5)  # i, f, g, o

    # Encoder weights: pack gates i|f|g|o along the lane axis.
    ewi = jnp.concatenate([p['enc_wi'][k] * GATE_SCALE[k] for k in range(4)], axis=-1)
    ewh = jnp.concatenate([p['enc_wh'][k] * GATE_SCALE[k] for k in range(4)], axis=-1)
    eb = jnp.concatenate([p['enc_b'][k] * GATE_SCALE[k] for k in range(4)], axis=-1)

    # Decoder weights: pack gates, pre-scale i/f/o, and zero-pad Dh -> Dp lanes
    # (and Dh -> Dp rows for the recurrent weight).  Padded lanes stay exactly
    # zero through the recurrence (gate pre-acts 0 -> c,h padded lanes stay 0).
    dwi = jnp.concatenate(
        [jnp.pad(p['dec_wi'][k] * GATE_SCALE[k], ((0, 0), (0, Dp - Dh)))
         for k in range(4)], axis=-1)                                     # (H, 4*Dp)
    dwh = jnp.concatenate(
        [jnp.pad(p['dec_wh'][k] * GATE_SCALE[k], ((0, Dp - Dh), (0, Dp - Dh)))
         for k in range(4)], axis=-1)                                     # (Dp, 4*Dp)
    db = jnp.concatenate(
        [jnp.pad(p['dec_b'][k] * GATE_SCALE[k], ((0, 0), (0, Dp - Dh)))
         for k in range(4)], axis=-1)                                     # (1, 4*Dp)

    # Bottleneck h/c heads fused with block-diagonal weights:
    #   [h | c] @ blockdiag(w1h, w1c) -> [z_h | z_c]
    #   [z_h | z_c] @ blockdiag(w2h_pad, w2c_pad) -> [dh | dc]
    zHL = jnp.zeros((H, L), f32)
    w1hc = jnp.concatenate(
        [jnp.concatenate([p['w1h'], zHL], axis=1),
         jnp.concatenate([zHL, p['w1c']], axis=1)], axis=0)               # (2H, 2L)
    b1hc = jnp.concatenate([p['b1h'], p['b1c']], axis=1)                  # (1, 2L)

    w2h_p = jnp.pad(p['w2h'], ((0, 0), (0, Dp - Dh)))
    w2c_p = jnp.pad(p['w2c'], ((0, 0), (0, Dp - Dh)))
    zLD = jnp.zeros((L, Dp), f32)
    w2hc = jnp.concatenate(
        [jnp.concatenate([w2h_p, zLD], axis=1),
         jnp.concatenate([zLD, w2c_p], axis=1)], axis=0)                  # (2L, 2*Dp)
    b2hc = jnp.concatenate(
        [jnp.pad(p['b2h'], ((0, 0), (0, Dp - Dh))),
         jnp.pad(p['b2c'], ((0, 0), (0, Dp - Dh)))], axis=1)              # (1, 2*Dp)

    # bf16 MXU operands (weights cast once here; biases stay f32).
    args = [x_flat.astype(bf16),
            ewi.astype(bf16), ewh.astype(bf16), eb,
            p['w1o'].astype(bf16), p['b1o'], p['w2o'].astype(bf16), p['b2o'],
            w1hc.astype(bf16), b1hc, w2hc.astype(bf16), b2hc,
            dwi.astype(bf16), dwh.astype(bf16), db]

    vmem = pl.BlockSpec(memory_space=pltpu.MemorySpace.VMEM)
    out = pl.pallas_call(
        _make_kernel(T, B, H, Dp),
        out_shape=jax.ShapeDtypeStruct((B, Dp), jnp.float32),
        in_specs=[vmem] * len(args),
        out_specs=vmem,
        scratch_shapes=[pltpu.VMEM((T * B, H), jnp.float32)],  # encoder outputs
    )(*args)
    return out[:, :Dh]


def aelstm_forward(params, x_cont, x_cat):
    """Mirrors AELSTM.forward: returns (concatenated[:, -1, :], decoder_output)."""
    dow = jnp.take(params['dow_embed'], x_cat[:, :, 0], axis=0)      # (B, T, E)
    hol = jnp.take(params['holiday_embed'], x_cat[:, :, 1], axis=0)  # (B, T, E)
    concatenated = jnp.concatenate([x_cont, dow, hol], axis=2)       # (B, T, Din)
    B, T, Din = concatenated.shape
    x_flat = jnp.transpose(concatenated, (1, 0, 2)).reshape(T * B, Din)
    out = aelstm_pallas(x_flat, params, T, B)
    return concatenated[:, -1, :], out


# ----------------------------------------------------------------------------
# Deterministic parameter init (shapes as in AELSTM.__init__)
# ----------------------------------------------------------------------------
def init_params(key, num_cont_var=4, embedding_dim=2, hidden_size=128, latent_dim=64):
    Din = 2 * embedding_dim + num_cont_var      # 8
    H, L, Dh = hidden_size, latent_dim, Din
    ks = jax.random.split(key, 24)

    def u(k, shape, fan):
        bound = 1.0 / jnp.sqrt(jnp.float32(fan))
        return jax.random.uniform(k, shape, jnp.float32, -bound, bound)

    p = {}
    p['dow_embed'] = jax.random.normal(ks[0], (7, embedding_dim), jnp.float32)
    p['holiday_embed'] = jax.random.normal(ks[1], (2, embedding_dim), jnp.float32)

    # Encoder LSTM (gate axis: i, f, g, o; weights pre-transposed; b_ih+b_hh merged)
    p['enc_wi'] = u(ks[2], (4, Din, H), H)
    p['enc_wh'] = u(ks[3], (4, H, H), H)
    p['enc_b'] = u(ks[4], (4, 1, H), H) + u(ks[5], (4, 1, H), H)

    # Bottleneck (Linear weights stored transposed: (in, out))
    p['w1o'] = u(ks[6], (H, L), H);   p['b1o'] = u(ks[7], (1, L), H)
    p['w2o'] = u(ks[8], (L, H), L);   p['b2o'] = u(ks[9], (1, H), L)
    p['w1h'] = u(ks[10], (H, L), H);  p['b1h'] = u(ks[11], (1, L), H)
    p['w2h'] = u(ks[12], (L, Dh), L); p['b2h'] = u(ks[13], (1, Dh), L)
    p['w1c'] = u(ks[14], (H, L), H);  p['b1c'] = u(ks[15], (1, L), H)
    p['w2c'] = u(ks[16], (L, Dh), L); p['b2c'] = u(ks[17], (1, Dh), L)

    # Decoder LSTM
    p['dec_wi'] = u(ks[18], (4, H, Dh), Dh)
    p['dec_wh'] = u(ks[19], (4, Dh, Dh), Dh)
    p['dec_b'] = u(ks[20], (4, 1, Dh), Dh) + u(ks[21], (4, 1, Dh), Dh)
    return p


# ----------------------------------------------------------------------------
# Pure-JAX f32 reference (model semantics, for correctness check)
# ----------------------------------------------------------------------------
def aelstm_reference(p, x_cont, x_cat):
    dow = jnp.take(p['dow_embed'], x_cat[:, :, 0], axis=0)
    hol = jnp.take(p['holiday_embed'], x_cat[:, :, 1], axis=0)
    concatenated = jnp.concatenate([x_cont, dow, hol], axis=2)
    B, T, _ = concatenated.shape
    H = p['enc_wi'].shape[2]

    def cell(x, h, c, wi, wh, b):
        i = jax.nn.sigmoid(x @ wi[0] + h @ wh[0] + b[0])
        f = jax.nn.sigmoid(x @ wi[1] + h @ wh[1] + b[1])
        g = jnp.tanh(x @ wi[2] + h @ wh[2] + b[2])
        o = jax.nn.sigmoid(x @ wi[3] + h @ wh[3] + b[3])
        c_new = f * c + i * g
        return o * jnp.tanh(c_new), c_new

    h = jnp.zeros((B, H), jnp.float32)
    c = jnp.zeros((B, H), jnp.float32)
    outs = []
    for t in range(T):
        h, c = cell(concatenated[:, t, :], h, c, p['enc_wi'], p['enc_wh'], p['enc_b'])
        outs.append(h)
    enc_out = jnp.stack(outs, axis=1)                                   # (B, T, H)

    new_out = jnp.maximum(enc_out @ p['w1o'] + p['b1o'], 0.0) @ p['w2o'] + p['b2o']
    new_h = jnp.maximum(h @ p['w1h'] + p['b1h'], 0.0) @ p['w2h'] + p['b2h']
    new_c = jnp.maximum(c @ p['w1c'] + p['b1c'], 0.0) @ p['w2c'] + p['b2c']

    dh, dc = new_h, new_c
    for t in range(T):
        dh, dc = cell(new_out[:, t, :], dh, dc, p['dec_wi'], p['dec_wh'], p['dec_b'])
    return concatenated[:, -1, :], dh


# ----------------------------------------------------------------------------
if __name__ == "__main__":
    key = jax.random.PRNGKey(0)
    k_cont, k_dow, k_hol, k_param = jax.random.split(key, 4)

    B, T = 2, 8
    num_cont_var, embedding_dim, hidden_size, latent_dim = 4, 2, 128, 64

    x_cont = jax.random.normal(k_cont, (B, T, num_cont_var), jnp.float32)
    dow_idx = jax.random.randint(k_dow, (B, T, 1), 0, 7)
    hol_idx = jax.random.randint(k_hol, (B, T, 1), 0, 2)
    x_cat = jnp.concatenate([dow_idx, hol_idx], axis=2).astype(jnp.int32)

    params = init_params(k_param, num_cont_var, embedding_dim, hidden_size, latent_dim)

    concat_last, out = jax.jit(aelstm_forward)(params, x_cont, x_cat)
    jax.block_until_ready((concat_last, out))

    ref_concat, ref_out = aelstm_reference(params, x_cont, x_cat)
    assert concat_last.shape == (B, 2 * embedding_dim + num_cont_var)
    assert out.shape == (B, 2 * embedding_dim + num_cont_var)
    assert jnp.allclose(concat_last, ref_concat, atol=1e-5, rtol=1e-5)
    # Kernel uses bf16 MXU operands over a 16-step serial recurrence while the
    # reference is pure f32 -> relaxed tolerance (typical max-abs err ~1e-2).
    err = float(jnp.max(jnp.abs(out - ref_out)))
    assert jnp.allclose(out, ref_out, atol=1.5e-1, rtol=1e-1), err

    print("KERNEL_OK")
</pallas_src>

<mosaic_0001>
module attributes {stable_mosaic.version = 11 : i64} {
  func.func @kernel(%arg0: memref<16x8xbf16, #tpu.memory_space<vmem>>, %arg1: memref<8x512xbf16, #tpu.memory_space<vmem>>, %arg2: memref<128x512xbf16, #tpu.memory_space<vmem>>, %arg3: memref<1x512xf32, #tpu.memory_space<vmem>>, %arg4: memref<128x64xbf16, #tpu.memory_space<vmem>>, %arg5: memref<1x64xf32, #tpu.memory_space<vmem>>, %arg6: memref<64x128xbf16, #tpu.memory_space<vmem>>, %arg7: memref<1x128xf32, #tpu.memory_space<vmem>>, %arg8: memref<256x128xbf16, #tpu.memory_space<vmem>>, %arg9: memref<1x128xf32, #tpu.memory_space<vmem>>, %arg10: memref<128x256xbf16, #tpu.memory_space<vmem>>, %arg11: memref<1x256xf32, #tpu.memory_space<vmem>>, %arg12: memref<128x512xbf16, #tpu.memory_space<vmem>>, %arg13: memref<128x512xbf16, #tpu.memory_space<vmem>>, %arg14: memref<1x512xf32, #tpu.memory_space<vmem>>, %arg15: memref<2x128xf32, #tpu.memory_space<vmem>>, %arg16: memref<16x128xf32, #tpu.memory_space<vmem>>) attributes {dimension_semantics = [], scalar_prefetch = 0 : i64, scratch_operands = 1 : i64, tpu.core_type = #tpu.core_type<tc>} {
    %c0 = arith.constant 0 : index
    %c0_0 = arith.constant 0 : index
    %0 = vector.load %arg0[%c0, %c0_0] : memref<16x8xbf16, #tpu.memory_space<vmem>>, vector<16x8xbf16>
    %c0_1 = arith.constant 0 : index
    %c0_2 = arith.constant 0 : index
    %1 = vector.load %arg1[%c0_1, %c0_2] : memref<8x512xbf16, #tpu.memory_space<vmem>>, vector<8x512xbf16>
    %cst = arith.constant dense<0.000000e+00> : vector<16x512xf32>
    %2 = tpu.matmul %0, %1, %cst {dimension_numbers = #tpu.dot_dimension_numbers<[1], [0], [0], [1], [0, 0, 1, 1], [], []>} : vector<16x8xbf16>, vector<8x512xbf16>, vector<16x512xf32> -> vector<16x512xf32>
    %c0_3 = arith.constant 0 : index
    %c0_4 = arith.constant 0 : index
    %3 = vector.load %arg3[%c0_3, %c0_4] : memref<1x512xf32, #tpu.memory_space<vmem>>, vector<1x512xf32>
    %4 = vector.broadcast %3 : vector<1x512xf32> to vector<16x512xf32>
    %5 = arith.addf %2, %4 : vector<16x512xf32>
    %c0_5 = arith.constant 0 : index
    %c0_6 = arith.constant 0 : index
    %6 = vector.load %arg2[%c0_5, %c0_6] : memref<128x512xbf16, #tpu.memory_space<vmem>>, vector<128x512xbf16>
    %cst_7 = arith.constant 0.000000e+00 : f32
    %7 = vector.broadcast %cst_7 : f32 to vector<2x128xf32>
    %cst_8 = arith.constant 0.000000e+00 : f32
    %8 = vector.broadcast %cst_8 : f32 to vector<2x128xf32>
    %9 = vector.extract_strided_slice %5 {offsets = [0, 0], sizes = [2, 512], strides = [1, 1]} : vector<16x512xf32> to vector<2x512xf32>
    %10 = arith.truncf %7 : vector<2x128xf32> to vector<2x128xbf16>
    %cst_9 = arith.constant dense<0.000000e+00> : vector<2x512xf32>
    %11 = tpu.matmul %10, %6, %cst_9 {dimension_numbers = #tpu.dot_dimension_numbers<[1], [0], [0], [1], [0, 0, 1, 1], [], []>} : vector<2x128xbf16>, vector<128x512xbf16>, vector<2x512xf32> -> vector<2x512xf32>
    %12 = arith.addf %9, %11 : vector<2x512xf32>
    %13 = math.tanh %12 : vector<2x512xf32>
    %14 = vector.extract_strided_slice %13 {offsets = [0, 0], sizes = [2, 128], strides = [1, 1]} : vector<2x512xf32> to vector<2x128xf32>
    %cst_10 = arith.constant 5.000000e-01 : f32
    %15 = vector.broadcast %cst_10 : f32 to vector<2x128xf32>
    %16 = arith.mulf %15, %14 : vector<2x128xf32>
    %cst_11 = arith.constant 5.000000e-01 : f32
    %17 = vector.broadcast %cst_11 : f32 to vector<2x128xf32>
    %18 = arith.addf %16, %17 : vector<2x128xf32>
    %19 = vector.extract_strided_slice %13 {offsets = [0, 128], sizes = [2, 128], strides = [1, 1]} : vector<2x512xf32> to vector<2x128xf32>
    %cst_12 = arith.constant 5.000000e-01 : f32
    %20 = vector.broadcast %cst_12 : f32 to vector<2x128xf32>
    %21 = arith.mulf %20, %19 : vector<2x128xf32>
    %cst_13 = arith.constant 5.000000e-01 : f32
    %22 = vector.broadcast %cst_13 : f32 to vector<2x128xf32>
    %23 = arith.addf %21, %22 : vector<2x128xf32>
    %24 = vector.extract_strided_slice %13 {offsets = [0, 256], sizes = [2, 128], strides = [1, 1]} : vector<2x512xf32> to vector<2x128xf32>
    %25 = vector.extract_strided_slice %13 {offsets = [0, 384], sizes = [2, 128], strides = [1, 1]} : vector<2x512xf32> to vector<2x128xf32>
    %cst_14 = arith.constant 5.000000e-01 : f32
    %26 = vector.broadcast %cst_14 : f32 to vector<2x128xf32>
    %27 = arith.mulf %26, %25 : vector<2x128xf32>
    %cst_15 = arith.constant 5.000000e-01 : f32
    %28 = vector.broadcast %cst_15 : f32 to vector<2x128xf32>
    %29 = arith.addf %27, %28 : vector<2x128xf32>
    %30 = arith.mulf %23, %8 : vector<2x128xf32>
    %31 = arith.mulf %18, %24 : vector<2x128xf32>
    %32 = arith.addf %30, %31 : vector<2x128xf32>
    %33 = math.tanh %32 : vector<2x128xf32>
    %34 = arith.mulf %29, %33 : vector<2x128xf32>
    %c0_16 = arith.constant 0 : index
    %c0_17 = arith.constant 0 : index
    %35 = vector.load %arg16[%c0_16, %c0_17] : memref<16x128xf32, #tpu.memory_space<vmem>>, vector<2x128xf32>
    tpu.vector_store %arg16[%c0_16, %c0_17], %34 {strides = array<i32>} : memref<16x128xf32, #tpu.memory_space<vmem>>, vector<2x128xf32>,
    %36 = vector.extract_strided_slice %5 {offsets = [2, 0], sizes = [2, 512], strides = [1, 1]} : vector<16x512xf32> to vector<2x512xf32>
    %37 = arith.truncf %34 : vector<2x128xf32> to vector<2x128xbf16>
    %cst_18 = arith.constant dense<0.000000e+00> : vector<2x512xf32>
    %38 = tpu.matmul %37, %6, %cst_18 {dimension_numbers = #tpu.dot_dimension_numbers<[1], [0], [0], [1], [0, 0, 1, 1], [], []>} : vector<2x128xbf16>, vector<128x512xbf16>, vector<2x512xf32> -> vector<2x512xf32>
    %39 = arith.addf %36, %38 : vector<2x512xf32>
    %40 = math.tanh %39 : vector<2x512xf32>
    %41 = vector.extract_strided_slice %40 {offsets = [0, 0], sizes = [2, 128], strides = [1, 1]} : vector<2x512xf32> to vector<2x128xf32>
    %cst_19 = arith.constant 5.000000e-01 : f32
    %42 = vector.broadcast %cst_19 : f32 to vector<2x128xf32>
    %43 = arith.mulf %42, %41 : vector<2x128xf32>
    %cst_20 = arith.constant 5.000000e-01 : f32
    %44 = vector.broadcast %cst_20 : f32 to vector<2x128xf32>
    %45 = arith.addf %43, %44 : vector<2x128xf32>
    %46 = vector.extract_strided_slice %40 {offsets = [0, 128], sizes = [2, 128], strides = [1, 1]} : vector<2x512xf32> to vector<2x128xf32>
    %cst_21 = arith.constant 5.000000e-01 : f32
    %47 = vector.broadcast %cst_21 : f32 to vector<2x128xf32>
    %48 = arith.mulf %47, %46 : vector<2x128xf32>
    %cst_22 = arith.constant 5.000000e-01 : f32
    %49 = vector.broadcast %cst_22 : f32 to vector<2x128xf32>
    %50 = arith.addf %48, %49 : vector<2x128xf32>
    %51 = vector.extract_strided_slice %40 {offsets = [0, 256], sizes = [2, 128], strides = [1, 1]} : vector<2x512xf32> to vector<2x128xf32>
    %52 = vector.extract_strided_slice %40 {offsets = [0, 384], sizes = [2, 128], strides = [1, 1]} : vector<2x512xf32> to vector<2x128xf32>
    %cst_23 = arith.constant 5.000000e-01 : f32
    %53 = vector.broadcast %cst_23 : f32 to vector<2x128xf32>
    %54 = arith.mulf %53, %52 : vector<2x128xf32>
    %cst_24 = arith.constant 5.000000e-01 : f32
    %55 = vector.broadcast %cst_24 : f32 to vector<2x128xf32>
    %56 = arith.addf %54, %55 : vector<2x128xf32>
    %57 = arith.mulf %50, %32 : vector<2x128xf32>
    %58 = arith.mulf %45, %51 : vector<2x128xf32>
    %59 = arith.addf %57, %58 : vector<2x128xf32>
    %60 = math.tanh %59 : vector<2x128xf32>
    %61 = arith.mulf %56, %60 : vector<2x128xf32>
    %c2 = arith.constant 2 : index
    %c0_25 = arith.constant 0 : index
    %62 = vector.load %arg16[%c2, %c0_25] : memref<16x128xf32, #tpu.memory_space<vmem>>, vector<2x128xf32>
    tpu.vector_store %arg16[%c2, %c0_25], %61 {strides = array<i32>} : memref<16x128xf32, #tpu.memory_space<vmem>>, vector<2x128xf32>,
    %63 = vector.extract_strided_slice %5 {offsets = [4, 0], sizes = [2, 512], strides = [1, 1]} : vector<16x512xf32> to vector<2x512xf32>
    %64 = arith.truncf %61 : vector<2x128xf32> to vector<2x128xbf16>
    %cst_26 = arith.constant dense<0.000000e+00> : vector<2x512xf32>
    %65 = tpu.matmul %64, %6, %cst_26 {dimension_numbers = #tpu.dot_dimension_numbers<[1], [0], [0], [1], [0, 0, 1, 1], [], []>} : vector<2x128xbf16>, vector<128x512xbf16>, vector<2x512xf32> -> vector<2x512xf32>
    %66 = arith.addf %63, %65 : vector<2x512xf32>
    %67 = math.tanh %66 : vector<2x512xf32>
    %68 = vector.extract_strided_slice %67 {offsets = [0, 0], sizes = [2, 128], strides = [1, 1]} : vector<2x512xf32> to vector<2x128xf32>
    %cst_27 = arith.constant 5.000000e-01 : f32
    %69 = vector.broadcast %cst_27 : f32 to vector<2x128xf32>
    %70 = arith.mulf %69, %68 : vector<2x128xf32>
    %cst_28 = arith.constant 5.000000e-01 : f32
    %71 = vector.broadcast %cst_28 : f32 to vector<2x128xf32>
    %72 = arith.addf %70, %71 : vector<2x128xf32>
    %73 = vector.extract_strided_slice %67 {offsets = [0, 128], sizes = [2, 128], strides = [1, 1]} : vector<2x512xf32> to vector<2x128xf32>
    %cst_29 = arith.constant 5.000000e-01 : f32
    %74 = vector.broadcast %cst_29 : f32 to vector<2x128xf32>
    %75 = arith.mulf %74, %73 : vector<2x128xf32>
    %cst_30 = arith.constant 5.000000e-01 : f32
    %76 = vector.broadcast %cst_30 : f32 to vector<2x128xf32>
    %77 = arith.addf %75, %76 : vector<2x128xf32>
    %78 = vector.extract_strided_slice %67 {offsets = [0, 256], sizes = [2, 128], strides = [1, 1]} : vector<2x512xf32> to vector<2x128xf32>
    %79 = vector.extract_strided_slice %67 {offsets = [0, 384], sizes = [2, 128], strides = [1, 1]} : vector<2x512xf32> to vector<2x128xf32>
    %cst_31 = arith.constant 5.000000e-01 : f32
    %80 = vector.broadcast %cst_31 : f32 to vector<2x128xf32>
    %81 = arith.mulf %80, %79 : vector<2x128xf32>
    %cst_32 = arith.constant 5.000000e-01 : f32
    %82 = vector.broadcast %cst_32 : f32 to vector<2x128xf32>
    %83 = arith.addf %81, %82 : vector<2x128xf32>
    %84 = arith.mulf %77, %59 : vector<2x128xf32>
    %85 = arith.mulf %72, %78 : vector<2x128xf32>
    %86 = arith.addf %84, %85 : vector<2x128xf32>
    %87 = math.tanh %86 : vector<2x128xf32>
    %88 = arith.mulf %83, %87 : vector<2x128xf32>
    %c4 = arith.constant 4 : index
    %c0_33 = arith.constant 0 : index
    %89 = vector.load %arg16[%c4, %c0_33] : memref<16x128xf32, #tpu.memory_space<vmem>>, vector<2x128xf32>
    tpu.vector_store %arg16[%c4, %c0_33], %88 {strides = array<i32>} : memref<16x128xf32, #tpu.memory_space<vmem>>, vector<2x128xf32>,
    %90 = vector.extract_strided_slice %5 {offsets = [6, 0], sizes = [2, 512], strides = [1, 1]} : vector<16x512xf32> to vector<2x512xf32>
    %91 = arith.truncf %88 : vector<2x128xf32> to vector<2x128xbf16>
    %cst_34 = arith.constant dense<0.000000e+00> : vector<2x512xf32>
    %92 = tpu.matmul %91, %6, %cst_34 {dimension_numbers = #tpu.dot_dimension_numbers<[1], [0], [0], [1], [0, 0, 1, 1], [], []>} : vector<2x128xbf16>, vector<128x512xbf16>, vector<2x512xf32> -> vector<2x512xf32>
    %93 = arith.addf %90, %92 : vector<2x512xf32>
    %94 = math.tanh %93 : vector<2x512xf32>
    %95 = vector.extract_strided_slice %94 {offsets = [0, 0], sizes = [2, 128], strides = [1, 1]} : vector<2x512xf32> to vector<2x128xf32>
    %cst_35 = arith.constant 5.000000e-01 : f32
    %96 = vector.broadcast %cst_35 : f32 to vector<2x128xf32>
    %97 = arith.mulf %96, %95 : vector<2x128xf32>
    %cst_36 = arith.constant 5.000000e-01 : f32
    %98 = vector.broadcast %cst_36 : f32 to vector<2x128xf32>
    %99 = arith.addf %97, %98 : vector<2x128xf32>
    %100 = vector.extract_strided_slice %94 {offsets = [0, 128], sizes = [2, 128], strides = [1, 1]} : vector<2x512xf32> to vector<2x128xf32>
    %cst_37 = arith.constant 5.000000e-01 : f32
    %101 = vector.broadcast %cst_37 : f32 to vector<2x128xf32>
    %102 = arith.mulf %101, %100 : vector<2x128xf32>
    %cst_38 = arith.constant 5.000000e-01 : f32
    %103 = vector.broadcast %cst_38 : f32 to vector<2x128xf32>
    %104 = arith.addf %102, %103 : vector<2x128xf32>
    %105 = vector.extract_strided_slice %94 {offsets = [0, 256], sizes = [2, 128], strides = [1, 1]} : vector<2x512xf32> to vector<2x128xf32>
    %106 = vector.extract_strided_slice %94 {offsets = [0, 384], sizes = [2, 128], strides = [1, 1]} : vector<2x512xf32> to vector<2x128xf32>
    %cst_39 = arith.constant 5.000000e-01 : f32
    %107 = vector.broadcast %cst_39 : f32 to vector<2x128xf32>
    %108 = arith.mulf %107, %106 : vector<2x128xf32>
    %cst_40 = arith.constant 5.000000e-01 : f32
    %109 = vector.broadcast %cst_40 : f32 to vector<2x128xf32>
    %110 = arith.addf %108, %109 : vector<2x128xf32>
    %111 = arith.mulf %104, %86 : vector<2x128xf32>
    %112 = arith.mulf %99, %105 : vector<2x128xf32>
    %113 = arith.addf %111, %112 : vector<2x128xf32>
    %114 = math.tanh %113 : vector<2x128xf32>
    %115 = arith.mulf %110, %114 : vector<2x128xf32>
    %c6 = arith.constant 6 : index
    %c0_41 = arith.constant 0 : index
    %116 = vector.load %arg16[%c6, %c0_41] : memref<16x128xf32, #tpu.memory_space<vmem>>, vector<2x128xf32>
    tpu.vector_store %arg16[%c6, %c0_41], %115 {strides = array<i32>} : memref<16x128xf32, #tpu.memory_space<vmem>>, vector<2x128xf32>,
    %117 = vector.extract_strided_slice %5 {offsets = [8, 0], sizes = [2, 512], strides = [1, 1]} : vector<16x512xf32> to vector<2x512xf32>
    %118 = arith.truncf %115 : vector<2x128xf32> to vector<2x128xbf16>
    %cst_42 = arith.constant dense<0.000000e+00> : vector<2x512xf32>
    %119 = tpu.matmul %118, %6, %cst_42 {dimension_numbers = #tpu.dot_dimension_numbers<[1], [0], [0], [1], [0, 0, 1, 1], [], []>} : vector<2x128xbf16>, vector<128x512xbf16>, vector<2x512xf32> -> vector<2x512xf32>
    %120 = arith.addf %117, %119 : vector<2x512xf32>
    %121 = math.tanh %120 : vector<2x512xf32>
    %122 = vector.extract_strided_slice %121 {offsets = [0, 0], sizes = [2, 128], strides = [1, 1]} : vector<2x512xf32> to vector<2x128xf32>
    %cst_43 = arith.constant 5.000000e-01 : f32
    %123 = vector.broadcast %cst_43 : f32 to vector<2x128xf32>
    %124 = arith.mulf %123, %122 : vector<2x128xf32>
    %cst_44 = arith.constant 5.000000e-01 : f32
    %125 = vector.broadcast %cst_44 : f32 to vector<2x128xf32>
    %126 = arith.addf %124, %125 : vector<2x128xf32>
    %127 = vector.extract_strided_slice %121 {offsets = [0, 128], sizes = [2, 128], strides = [1, 1]} : vector<2x512xf32> to vector<2x128xf32>
    %cst_45 = arith.constant 5.000000e-01 : f32
    %128 = vector.broadcast %cst_45 : f32 to vector<2x128xf32>
    %129 = arith.mulf %128, %127 : vector<2x128xf32>
    %cst_46 = arith.constant 5.000000e-01 : f32
    %130 = vector.broadcast %cst_46 : f32 to vector<2x128xf32>
    %131 = arith.addf %129, %130 : vector<2x128xf32>
    %132 = vector.extract_strided_slice %121 {offsets = [0, 256], sizes = [2, 128], strides = [1, 1]} : vector<2x512xf32> to vector<2x128xf32>
    %133 = vector.extract_strided_slice %121 {offsets = [0, 384], sizes = [2, 128], strides = [1, 1]} : vector<2x512xf32> to vector<2x128xf32>
    %cst_47 = arith.constant 5.000000e-01 : f32
    %134 = vector.broadcast %cst_47 : f32 to vector<2x128xf32>
    %135 = arith.mulf %134, %133 : vector<2x128xf32>
    %cst_48 = arith.constant 5.000000e-01 : f32
    %136 = vector.broadcast %cst_48 : f32 to vector<2x128xf32>
    %137 = arith.addf %135, %136 : vector<2x128xf32>
    %138 = arith.mulf %131, %113 : vector<2x128xf32>
    %139 = arith.mulf %126, %132 : vector<2x128xf32>
    %140 = arith.addf %138, %139 : vector<2x128xf32>
    %141 = math.tanh %140 : vector<2x128xf32>
    %142 = arith.mulf %137, %141 : vector<2x128xf32>
    %c8 = arith.constant 8 : index
    %c0_49 = arith.constant 0 : index
    %143 = vector.load %arg16[%c8, %c0_49] : memref<16x128xf32, #tpu.memory_space<vmem>>, vector<2x128xf32>
    tpu.vector_store %arg16[%c8, %c0_49], %142 {strides = array<i32>} : memref<16x128xf32, #tpu.memory_space<vmem>>, vector<2x128xf32>,
    %144 = vector.extract_strided_slice %5 {offsets = [10, 0], sizes = [2, 512], strides = [1, 1]} : vector<16x512xf32> to vector<2x512xf32>
    %145 = arith.truncf %142 : vector<2x128xf32> to vector<2x128xbf16>
    %cst_50 = arith.constant dense<0.000000e+00> : vector<2x512xf32>
    %146 = tpu.matmul %145, %6, %cst_50 {dimension_numbers = #tpu.dot_dimension_numbers<[1], [0], [0], [1], [0, 0, 1, 1], [], []>} : vector<2x128xbf16>, vector<128x512xbf16>, vector<2x512xf32> -> vector<2x512xf32>
    %147 = arith.addf %144, %146 : vector<2x512xf32>
    %148 = math.tanh %147 : vector<2x512xf32>
    %149 = vector.extract_strided_slice %148 {offsets = [0, 0], sizes = [2, 128], strides = [1, 1]} : vector<2x512xf32> to vector<2x128xf32>
    %cst_51 = arith.constant 5.000000e-01 : f32
    %150 = vector.broadcast %cst_51 : f32 to vector<2x128xf32>
    %151 = arith.mulf %150, %149 : vector<2x128xf32>
    %cst_52 = arith.constant 5.000000e-01 : f32
    %152 = vector.broadcast %cst_52 : f32 to vector<2x128xf32>
    %153 = arith.addf %151, %152 : vector<2x128xf32>
    %154 = vector.extract_strided_slice %148 {offsets = [0, 128], sizes = [2, 128], strides = [1, 1]} : vector<2x512xf32> to vector<2x128xf32>
    %cst_53 = arith.constant 5.000000e-01 : f32
    %155 = vector.broadcast %cst_53 : f32 to vector<2x128xf32>
    %156 = arith.mulf %155, %154 : vector<2x128xf32>
    %cst_54 = arith.constant 5.000000e-01 : f32
    %157 = vector.broadcast %cst_54 : f32 to vector<2x128xf32>
    %158 = arith.addf %156, %157 : vector<2x128xf32>
    %159 = vector.extract_strided_slice %148 {offsets = [0, 256], sizes = [2, 128], strides = [1, 1]} : vector<2x512xf32> to vector<2x128xf32>
    %160 = vector.extract_strided_slice %148 {offsets = [0, 384], sizes = [2, 128], strides = [1, 1]} : vector<2x512xf32> to vector<2x128xf32>
    %cst_55 = arith.constant 5.000000e-01 : f32
    %161 = vector.broadcast %cst_55 : f32 to vector<2x128xf32>
    %162 = arith.mulf %161, %160 : vector<2x128xf32>
    %cst_56 = arith.constant 5.000000e-01 : f32
    %163 = vector.broadcast %cst_56 : f32 to vector<2x128xf32>
    %164 = arith.addf %162, %163 : vector<2x128xf32>
    %165 = arith.mulf %158, %140 : vector<2x128xf32>
    %166 = arith.mulf %153, %159 : vector<2x128xf32>
    %167 = arith.addf %165, %166 : vector<2x128xf32>
    %168 = math.tanh %167 : vector<2x128xf32>
    %169 = arith.mulf %164, %168 : vector<2x128xf32>
    %c10 = arith.constant 10 : index
    %c0_57 = arith.constant 0 : index
    %170 = vector.load %arg16[%c10, %c0_57] : memref<16x128xf32, #tpu.memory_space<vmem>>, vector<2x128xf32>
    tpu.vector_store %arg16[%c10, %c0_57], %169 {strides = array<i32>} : memref<16x128xf32, #tpu.memory_space<vmem>>, vector<2x128xf32>,
    %171 = vector.extract_strided_slice %5 {offsets = [12, 0], sizes = [2, 512], strides = [1, 1]} : vector<16x512xf32> to vector<2x512xf32>
    %172 = arith.truncf %169 : vector<2x128xf32> to vector<2x128xbf16>
    %cst_58 = arith.constant dense<0.000000e+00> : vector<2x512xf32>
    %173 = tpu.matmul %172, %6, %cst_58 {dimension_numbers = #tpu.dot_dimension_numbers<[1], [0], [0], [1], [0, 0, 1, 1], [], []>} : vector<2x128xbf16>, vector<128x512xbf16>, vector<2x512xf32> -> vector<2x512xf32>
    %174 = arith.addf %171, %173 : vector<2x512xf32>
    %175 = math.tanh %174 : vector<2x512xf32>
    %176 = vector.extract_strided_slice %175 {offsets = [0, 0], sizes = [2, 128], strides = [1, 1]} : vector<2x512xf32> to vector<2x128xf32>
    %cst_59 = arith.constant 5.000000e-01 : f32
    %177 = vector.broadcast %cst_59 : f32 to vector<2x128xf32>
    %178 = arith.mulf %177, %176 : vector<2x128xf32>
    %cst_60 = arith.constant 5.000000e-01 : f32
    %179 = vector.broadcast %cst_60 : f32 to vector<2x128xf32>
    %180 = arith.addf %178, %179 : vector<2x128xf32>
    %181 = vector.extract_strided_slice %175 {offsets = [0, 128], sizes = [2, 128], strides = [1, 1]} : vector<2x512xf32> to vector<2x128xf32>
    %cst_61 = arith.constant 5.000000e-01 : f32
    %182 = vector.broadcast %cst_61 : f32 to vector<2x128xf32>
    %183 = arith.mulf %182, %181 : vector<2x128xf32>
    %cst_62 = arith.constant 5.000000e-01 : f32
    %184 = vector.broadcast %cst_62 : f32 to vector<2x128xf32>
    %185 = arith.addf %183, %184 : vector<2x128xf32>
    %186 = vector.extract_strided_slice %175 {offsets = [0, 256], sizes = [2, 128], strides = [1, 1]} : vector<2x512xf32> to vector<2x128xf32>
    %187 = vector.extract_strided_slice %175 {offsets = [0, 384], sizes = [2, 128], strides = [1, 1]} : vector<2x512xf32> to vector<2x128xf32>
    %cst_63 = arith.constant 5.000000e-01 : f32
    %188 = vector.broadcast %cst_63 : f32 to vector<2x128xf32>
    %189 = arith.mulf %188, %187 : vector<2x128xf32>
    %cst_64 = arith.constant 5.000000e-01 : f32
    %190 = vector.broadcast %cst_64 : f32 to vector<2x128xf32>
    %191 = arith.addf %189, %190 : vector<2x128xf32>
    %192 = arith.mulf %185, %167 : vector<2x128xf32>
    %193 = arith.mulf %180, %186 : vector<2x128xf32>
    %194 = arith.addf %192, %193 : vector<2x128xf32>
    %195 = math.tanh %194 : vector<2x128xf32>
    %196 = arith.mulf %191, %195 : vector<2x128xf32>
    %c12 = arith.constant 12 : index
    %c0_65 = arith.constant 0 : index
    %197 = vector.load %arg16[%c12, %c0_65] : memref<16x128xf32, #tpu.memory_space<vmem>>, vector<2x128xf32>
    tpu.vector_store %arg16[%c12, %c0_65], %196 {strides = array<i32>} : memref<16x128xf32, #tpu.memory_space<vmem>>, vector<2x128xf32>,
    %198 = vector.extract_strided_slice %5 {offsets = [14, 0], sizes = [2, 512], strides = [1, 1]} : vector<16x512xf32> to vector<2x512xf32>
    %199 = arith.truncf %196 : vector<2x128xf32> to vector<2x128xbf16>
    %cst_66 = arith.constant dense<0.000000e+00> : vector<2x512xf32>
    %200 = tpu.matmul %199, %6, %cst_66 {dimension_numbers = #tpu.dot_dimension_numbers<[1], [0], [0], [1], [0, 0, 1, 1], [], []>} : vector<2x128xbf16>, vector<128x512xbf16>, vector<2x512xf32> -> vector<2x512xf32>
    %201 = arith.addf %198, %200 : vector<2x512xf32>
    %202 = math.tanh %201 : vector<2x512xf32>
    %203 = vector.extract_strided_slice %202 {offsets = [0, 0], sizes = [2, 128], strides = [1, 1]} : vector<2x512xf32> to vector<2x128xf32>
    %cst_67 = arith.constant 5.000000e-01 : f32
    %204 = vector.broadcast %cst_67 : f32 to vector<2x128xf32>
    %205 = arith.mulf %204, %203 : vector<2x128xf32>
    %cst_68 = arith.constant 5.000000e-01 : f32
    %206 = vector.broadcast %cst_68 : f32 to vector<2x128xf32>
    %207 = arith.addf %205, %206 : vector<2x128xf32>
    %208 = vector.extract_strided_slice %202 {offsets = [0, 128], sizes = [2, 128], strides = [1, 1]} : vector<2x512xf32> to vector<2x128xf32>
    %cst_69 = arith.constant 5.000000e-01 : f32
    %209 = vector.broadcast %cst_69 : f32 to vector<2x128xf32>
    %210 = arith.mulf %209, %208 : vector<2x128xf32>
    %cst_70 = arith.constant 5.000000e-01 : f32
    %211 = vector.broadcast %cst_70 : f32 to vector<2x128xf32>
    %212 = arith.addf %210, %211 : vector<2x128xf32>
    %213 = vector.extract_strided_slice %202 {offsets = [0, 256], sizes = [2, 128], strides = [1, 1]} : vector<2x512xf32> to vector<2x128xf32>
    %214 = vector.extract_strided_slice %202 {offsets = [0, 384], sizes = [2, 128], strides = [1, 1]} : vector<2x512xf32> to vector<2x128xf32>
    %cst_71 = arith.constant 5.000000e-01 : f32
    %215 = vector.broadcast %cst_71 : f32 to vector<2x128xf32>
    %216 = arith.mulf %215, %214 : vector<2x128xf32>
    %cst_72 = arith.constant 5.000000e-01 : f32
    %217 = vector.broadcast %cst_72 : f32 to vector<2x128xf32>
    %218 = arith.addf %216, %217 : vector<2x128xf32>
    %219 = arith.mulf %212, %194 : vector<2x128xf32>
    %220 = arith.mulf %207, %213 : vector<2x128xf32>
    %221 = arith.addf %219, %220 : vector<2x128xf32>
    %222 = math.tanh %221 : vector<2x128xf32>
    %223 = arith.mulf %218, %222 : vector<2x128xf32>
    %c14 = arith.constant 14 : index
    %c0_73 = arith.constant 0 : index
    %224 = vector.load %arg16[%c14, %c0_73] : memref<16x128xf32, #tpu.memory_space<vmem>>, vector<2x128xf32>
    tpu.vector_store %arg16[%c14, %c0_73], %223 {strides = array<i32>} : memref<16x128xf32, #tpu.memory_space<vmem>>, vector<2x128xf32>,
    %c0_74 = arith.constant 0 : index
    %c0_75 = arith.constant 0 : index
    %225 = vector.load %arg16[%c0_74, %c0_75] : memref<16x128xf32, #tpu.memory_space<vmem>>, vector<16x128xf32>
    %226 = arith.truncf %225 : vector<16x128xf32> to vector<16x128xbf16>
    %c0_76 = arith.constant 0 : index
    %c0_77 = arith.constant 0 : index
    %227 = vector.load %arg4[%c0_76, %c0_77] : memref<128x64xbf16, #tpu.memory_space<vmem>>, vector<128x64xbf16>
    %cst_78 = arith.constant dense<0.000000e+00> : vector<16x64xf32>
    %228 = tpu.matmul %226, %227, %cst_78 {dimension_numbers = #tpu.dot_dimension_numbers<[1], [0], [0], [1], [0, 0, 1, 1], [], []>} : vector<16x128xbf16>, vector<128x64xbf16>, vector<16x64xf32> -> vector<16x64xf32>
    %c0_79 = arith.constant 0 : index
    %c0_80 = arith.constant 0 : index
    %229 = vector.load %arg5[%c0_79, %c0_80] : memref<1x64xf32, #tpu.memory_space<vmem>>, vector<1x64xf32>
    %230 = vector.broadcast %229 : vector<1x64xf32> to vector<16x64xf32>
    %231 = arith.addf %228, %230 : vector<16x64xf32>
    %cst_81 = arith.constant 0.000000e+00 : f32
    %232 = vector.broadcast %cst_81 : f32 to vector<16x64xf32>
    %233 = arith.maximumf %231, %232 : vector<16x64xf32>
    %234 = arith.truncf %233 : vector<16x64xf32> to vector<16x64xbf16>
    %c0_82 = arith.constant 0 : index
    %c0_83 = arith.constant 0 : index
    %235 = vector.load %arg6[%c0_82, %c0_83] : memref<64x128xbf16, #tpu.memory_space<vmem>>, vector<64x128xbf16>
    %cst_84 = arith.constant dense<0.000000e+00> : vector<16x128xf32>
    %236 = tpu.matmul %234, %235, %cst_84 {dimension_numbers = #tpu.dot_dimension_numbers<[1], [0], [0], [1], [0, 0, 1, 1], [], []>} : vector<16x64xbf16>, vector<64x128xbf16>, vector<16x128xf32> -> vector<16x128xf32>
    %c0_85 = arith.constant 0 : index
    %c0_86 = arith.constant 0 : index
    %237 = vector.load %arg7[%c0_85, %c0_86] : memref<1x128xf32, #tpu.memory_space<vmem>>, vector<1x128xf32>
    %238 = vector.broadcast %237 : vector<1x128xf32> to vector<16x128xf32>
    %239 = arith.addf %236, %238 : vector<16x128xf32>
    %240 = tpu.concatenate %223, %221 in 1 : vector<2x128xf32>, vector<2x128xf32> -> vector<2x256xf32>
    %241 = arith.truncf %240 : vector<2x256xf32> to vector<2x256xbf16>
    %c0_87 = arith.constant 0 : index
    %c0_88 = arith.constant 0 : index
    %242 = vector.load %arg8[%c0_87, %c0_88] : memref<256x128xbf16, #tpu.memory_space<vmem>>, vector<256x128xbf16>
    %cst_89 = arith.constant dense<0.000000e+00> : vector<2x128xf32>
    %243 = tpu.matmul %241, %242, %cst_89 {dimension_numbers = #tpu.dot_dimension_numbers<[1], [0], [0], [1], [0, 0, 1, 1], [], []>} : vector<2x256xbf16>, vector<256x128xbf16>, vector<2x128xf32> -> vector<2x128xf32>
    %c0_90 = arith.constant 0 : index
    %c0_91 = arith.constant 0 : index
    %244 = vector.load %arg9[%c0_90, %c0_91] : memref<1x128xf32, #tpu.memory_space<vmem>>, vector<1x128xf32>
    %245 = vector.broadcast %244 : vector<1x128xf32> to vector<2x128xf32>
    %246 = arith.addf %243, %245 : vector<2x128xf32>
    %cst_92 = arith.constant 0.000000e+00 : f32
    %247 = vector.broadcast %cst_92 : f32 to vector<2x128xf32>
    %248 = arith.maximumf %246, %247 : vector<2x128xf32>
    %249 = arith.truncf %248 : vector<2x128xf32> to vector<2x128xbf16>
    %c0_93 = arith.constant 0 : index
    %c0_94 = arith.constant 0 : index
    %250 = vector.load %arg10[%c0_93, %c0_94] : memref<128x256xbf16, #tpu.memory_space<vmem>>, vector<128x256xbf16>
    %cst_95 = arith.constant dense<0.000000e+00> : vector<2x256xf32>
    %251 = tpu.matmul %249, %250, %cst_95 {dimension_numbers = #tpu.dot_dimension_numbers<[1], [0], [0], [1], [0, 0, 1, 1], [], []>} : vector<2x128xbf16>, vector<128x256xbf16>, vector<2x256xf32> -> vector<2x256xf32>
    %c0_96 = arith.constant 0 : index
    %c0_97 = arith.constant 0 : index
    %252 = vector.load %arg11[%c0_96, %c0_97] : memref<1x256xf32, #tpu.memory_space<vmem>>, vector<1x256xf32>
    %253 = vector.broadcast %252 : vector<1x256xf32> to vector<2x256xf32>
    %254 = arith.addf %251, %253 : vector<2x256xf32>
    %255 = vector.extract_strided_slice %254 {offsets = [0, 0], sizes = [2, 128], strides = [1, 1]} : vector<2x256xf32> to vector<2x128xf32>
    %256 = vector.extract_strided_slice %254 {offsets = [0, 128], sizes = [2, 128], strides = [1, 1]} : vector<2x256xf32> to vector<2x128xf32>
    %257 = arith.truncf %239 : vector<16x128xf32> to vector<16x128xbf16>
    %c0_98 = arith.constant 0 : index
    %c0_99 = arith.constant 0 : index
    %258 = vector.load %arg12[%c0_98, %c0_99] : memref<128x512xbf16, #tpu.memory_space<vmem>>, vector<128x512xbf16>
    %cst_100 = arith.constant dense<0.000000e+00> : vector<16x512xf32>
    %259 = tpu.matmul %257, %258, %cst_100 {dimension_numbers = #tpu.dot_dimension_numbers<[1], [0], [0], [1], [0, 0, 1, 1], [], []>} : vector<16x128xbf16>, vector<128x512xbf16>, vector<16x512xf32> -> vector<16x512xf32>
    %c0_101 = arith.constant 0 : index
    %c0_102 = arith.constant 0 : index
    %260 = vector.load %arg14[%c0_101, %c0_102] : memref<1x512xf32, #tpu.memory_space<vmem>>, vector<1x512xf32>
    %261 = vector.broadcast %260 : vector<1x512xf32> to vector<16x512xf32>
    %262 = arith.addf %259, %261 : vector<16x512xf32>
    %c0_103 = arith.constant 0 : index
    %c0_104 = arith.constant 0 : index
    %263 = vector.load %arg13[%c0_103, %c0_104] : memref<128x512xbf16, #tpu.memory_space<vmem>>, vector<128x512xbf16>
    %264 = vector.extract_strided_slice %262 {offsets = [0, 0], sizes = [2, 512], strides = [1, 1]} : vector<16x512xf32> to vector<2x512xf32>
    %265 = arith.truncf %255 : vector<2x128xf32> to vector<2x128xbf16>
    %cst_105 = arith.constant dense<0.000000e+00> : vector<2x512xf32>
    %266 = tpu.matmul %265, %263, %cst_105 {dimension_numbers = #tpu.dot_dimension_numbers<[1], [0], [0], [1], [0, 0, 1, 1], [], []>} : vector<2x128xbf16>, vector<128x512xbf16>, vector<2x512xf32> -> vector<2x512xf32>
    %267 = arith.addf %264, %266 : vector<2x512xf32>
    %268 = math.tanh %267 : vector<2x512xf32>
    %269 = vector.extract_strided_slice %268 {offsets = [0, 0], sizes = [2, 128], strides = [1, 1]} : vector<2x512xf32> to vector<2x128xf32>
    %cst_106 = arith.constant 5.000000e-01 : f32
    %270 = vector.broadcast %cst_106 : f32 to vector<2x128xf32>
    %271 = arith.mulf %270, %269 : vector<2x128xf32>
    %cst_107 = arith.constant 5.000000e-01 : f32
    %272 = vector.broadcast %cst_107 : f32 to vector<2x128xf32>
    %273 = arith.addf %271, %272 : vector<2x128xf32>
    %274 = vector.extract_strided_slice %268 {offsets = [0, 128], sizes = [2, 128], strides = [1, 1]} : vector<2x512xf32> to vector<2x128xf32>
    %cst_108 = arith.constant 5.000000e-01 : f32
    %275 = vector.broadcast %cst_108 : f32 to vector<2x128xf32>
    %276 = arith.mulf %275, %274 : vector<2x128xf32>
    %cst_109 = arith.constant 5.000000e-01 : f32
    %277 = vector.broadcast %cst_109 : f32 to vector<2x128xf32>
    %278 = arith.addf %276, %277 : vector<2x128xf32>
    %279 = vector.extract_strided_slice %268 {offsets = [0, 256], sizes = [2, 128], strides = [1, 1]} : vector<2x512xf32> to vector<2x128xf32>
    %280 = vector.extract_strided_slice %268 {offsets = [0, 384], sizes = [2, 128], strides = [1, 1]} : vector<2x512xf32> to vector<2x128xf32>
    %cst_110 = arith.constant 5.000000e-01 : f32
    %281 = vector.broadcast %cst_110 : f32 to vector<2x128xf32>
    %282 = arith.mulf %281, %280 : vector<2x128xf32>
    %cst_111 = arith.constant 5.000000e-01 : f32
    %283 = vector.broadcast %cst_111 : f32 to vector<2x128xf32>
    %284 = arith.addf %282, %283 : vector<2x128xf32>
    %285 = arith.mulf %278, %256 : vector<2x128xf32>
    %286 = arith.mulf %273, %279 : vector<2x128xf32>
    %287 = arith.addf %285, %286 : vector<2x128xf32>
    %288 = math.tanh %287 : vector<2x128xf32>
    %289 = arith.mulf %284, %288 : vector<2x128xf32>
    %290 = vector.extract_strided_slice %262 {offsets = [2, 0], sizes = [2, 512], strides = [1, 1]} : vector<16x512xf32> to vector<2x512xf32>
    %291 = arith.truncf %289 : vector<2x128xf32> to vector<2x128xbf16>
    %cst_112 = arith.constant dense<0.000000e+00> : vector<2x512xf32>
    %292 = tpu.matmul %291, %263, %cst_112 {dimension_numbers = #tpu.dot_dimension_numbers<[1], [0], [0], [1], [0, 0, 1, 1], [], []>} : vector<2x128xbf16>, vector<128x512xbf16>, vector<2x512xf32> -> vector<2x512xf32>
    %293 = arith.addf %290, %292 : vector<2x512xf32>
    %294 = math.tanh %293 : vector<2x512xf32>
    %295 = vector.extract_strided_slice %294 {offsets = [0, 0], sizes = [2, 128], strides = [1, 1]} : vector<2x512xf32> to vector<2x128xf32>
    %cst_113 = arith.constant 5.000000e-01 : f32
    %296 = vector.broadcast %cst_113 : f32 to vector<2x128xf32>
    %297 = arith.mulf %296, %295 : vector<2x128xf32>
    %cst_114 = arith.constant 5.000000e-01 : f32
    %298 = vector.broadcast %cst_114 : f32 to vector<2x128xf32>
    %299 = arith.addf %297, %298 : vector<2x128xf32>
    %300 = vector.extract_strided_slice %294 {offsets = [0, 128], sizes = [2, 128], strides = [1, 1]} : vector<2x512xf32> to vector<2x128xf32>
    %cst_115 = arith.constant 5.000000e-01 : f32
    %301 = vector.broadcast %cst_115 : f32 to vector<2x128xf32>
    %302 = arith.mulf %301, %300 : vector<2x128xf32>
    %cst_116 = arith.constant 5.000000e-01 : f32
    %303 = vector.broadcast %cst_116 : f32 to vector<2x128xf32>
    %304 = arith.addf %302, %303 : vector<2x128xf32>
    %305 = vector.extract_strided_slice %294 {offsets = [0, 256], sizes = [2, 128], strides = [1, 1]} : vector<2x512xf32> to vector<2x128xf32>
    %306 = vector.extract_strided_slice %294 {offsets = [0, 384], sizes = [2, 128], strides = [1, 1]} : vector<2x512xf32> to vector<2x128xf32>
    %cst_117 = arith.constant 5.000000e-01 : f32
    %307 = vector.broadcast %cst_117 : f32 to vector<2x128xf32>
    %308 = arith.mulf %307, %306 : vector<2x128xf32>
    %cst_118 = arith.constant 5.000000e-01 : f32
    %309 = vector.broadcast %cst_118 : f32 to vector<2x128xf32>
    %310 = arith.addf %308, %309 : vector<2x128xf32>
    %311 = arith.mulf %304, %287 : vector<2x128xf32>
    %312 = arith.mulf %299, %305 : vector<2x128xf32>
    %313 = arith.addf %311, %312 : vector<2x128xf32>
    %314 = math.tanh %313 : vector<2x128xf32>
    %315 = arith.mulf %310, %314 : vector<2x128xf32>
    %316 = vector.extract_strided_slice %262 {offsets = [4, 0], sizes = [2, 512], strides = [1, 1]} : vector<16x512xf32> to vector<2x512xf32>
    %317 = arith.truncf %315 : vector<2x128xf32> to vector<2x128xbf16>
    %cst_119 = arith.constant dense<0.000000e+00> : vector<2x512xf32>
    %318 = tpu.matmul %317, %263, %cst_119 {dimension_numbers = #tpu.dot_dimension_numbers<[1], [0], [0], [1], [0, 0, 1, 1], [], []>} : vector<2x128xbf16>, vector<128x512xbf16>, vector<2x512xf32> -> vector<2x512xf32>
    %319 = arith.addf %316, %318 : vector<2x512xf32>
    %320 = math.tanh %319 : vector<2x512xf32>
    %321 = vector.extract_strided_slice %320 {offsets = [0, 0], sizes = [2, 128], strides = [1, 1]} : vector<2x512xf32> to vector<2x128xf32>
    %cst_120 = arith.constant 5.000000e-01 : f32
    %322 = vector.broadcast %cst_120 : f32 to vector<2x128xf32>
    %323 = arith.mulf %322, %321 : vector<2x128xf32>
    %cst_121 = arith.constant 5.000000e-01 : f32
    %324 = vector.broadcast %cst_121 : f32 to vector<2x128xf32>
    %325 = arith.addf %323, %324 : vector<2x128xf32>
    %326 = vector.extract_strided_slice %320 {offsets = [0, 128], sizes = [2, 128], strides = [1, 1]} : vector<2x512xf32> to vector<2x128xf32>
    %cst_122 = arith.constant 5.000000e-01 : f32
    %327 = vector.broadcast %cst_122 : f32 to vector<2x128xf32>
    %328 = arith.mulf %327, %326 : vector<2x128xf32>
    %cst_123 = arith.constant 5.000000e-01 : f32
    %329 = vector.broadcast %cst_123 : f32 to vector<2x128xf32>
    %330 = arith.addf %328, %329 : vector<2x128xf32>
    %331 = vector.extract_strided_slice %320 {offsets = [0, 256], sizes = [2, 128], strides = [1, 1]} : vector<2x512xf32> to vector<2x128xf32>
    %332 = vector.extract_strided_slice %320 {offsets = [0, 384], sizes = [2, 128], strides = [1, 1]} : vector<2x512xf32> to vector<2x128xf32>
    %cst_124 = arith.constant 5.000000e-01 : f32
    %333 = vector.broadcast %cst_124 : f32 to vector<2x128xf32>
    %334 = arith.mulf %333, %332 : vector<2x128xf32>
    %cst_125 = arith.constant 5.000000e-01 : f32
    %335 = vector.broadcast %cst_125 : f32 to vector<2x128xf32>
    %336 = arith.addf %334, %335 : vector<2x128xf32>
    %337 = arith.mulf %330, %313 : vector<2x128xf32>
    %338 = arith.mulf %325, %331 : vector<2x128xf32>
    %339 = arith.addf %337, %338 : vector<2x128xf32>
    %340 = math.tanh %339 : vector<2x128xf32>
    %341 = arith.mulf %336, %340 : vector<2x128xf32>
    %342 = vector.extract_strided_slice %262 {offsets = [6, 0], sizes = [2, 512], strides = [1, 1]} : vector<16x512xf32> to vector<2x512xf32>
    %343 = arith.truncf %341 : vector<2x128xf32> to vector<2x128xbf16>
    %cst_126 = arith.constant dense<0.000000e+00> : vector<2x512xf32>
    %344 = tpu.matmul %343, %263, %cst_126 {dimension_numbers = #tpu.dot_dimension_numbers<[1], [0], [0], [1], [0, 0, 1, 1], [], []>} : vector<2x128xbf16>, vector<128x512xbf16>, vector<2x512xf32> -> vector<2x512xf32>
    %345 = arith.addf %342, %344 : vector<2x512xf32>
    %346 = math.tanh %345 : vector<2x512xf32>
    %347 = vector.extract_strided_slice %346 {offsets = [0, 0], sizes = [2, 128], strides = [1, 1]} : vector<2x512xf32> to vector<2x128xf32>
    %cst_127 = arith.constant 5.000000e-01 : f32
    %348 = vector.broadcast %cst_127 : f32 to vector<2x128xf32>
    %349 = arith.mulf %348, %347 : vector<2x128xf32>
    %cst_128 = arith.constant 5.000000e-01 : f32
    %350 = vector.broadcast %cst_128 : f32 to vector<2x128xf32>
    %351 = arith.addf %349, %350 : vector<2x128xf32>
    %352 = vector.extract_strided_slice %346 {offsets = [0, 128], sizes = [2, 128], strides = [1, 1]} : vector<2x512xf32> to vector<2x128xf32>
    %cst_129 = arith.constant 5.000000e-01 : f32
    %353 = vector.broadcast %cst_129 : f32 to vector<2x128xf32>
    %354 = arith.mulf %353, %352 : vector<2x128xf32>
    %cst_130 = arith.constant 5.000000e-01 : f32
    %355 = vector.broadcast %cst_130 : f32 to vector<2x128xf32>
    %356 = arith.addf %354, %355 : vector<2x128xf32>
    %357 = vector.extract_strided_slice %346 {offsets = [0, 256], sizes = [2, 128], strides = [1, 1]} : vector<2x512xf32> to vector<2x128xf32>
    %358 = vector.extract_strided_slice %346 {offsets = [0, 384], sizes = [2, 128], strides = [1, 1]} : vector<2x512xf32> to vector<2x128xf32>
    %cst_131 = arith.constant 5.000000e-01 : f32
    %359 = vector.broadcast %cst_131 : f32 to vector<2x128xf32>
    %360 = arith.mulf %359, %358 : vector<2x128xf32>
    %cst_132 = arith.constant 5.000000e-01 : f32
    %361 = vector.broadcast %cst_132 : f32 to vector<2x128xf32>
    %362 = arith.addf %360, %361 : vector<2x128xf32>
    %363 = arith.mulf %356, %339 : vector<2x128xf32>
    %364 = arith.mulf %351, %357 : vector<2x128xf32>
    %365 = arith.addf %363, %364 : vector<2x128xf32>
    %366 = math.tanh %365 : vector<2x128xf32>
    %367 = arith.mulf %362, %366 : vector<2x128xf32>
    %368 = vector.extract_strided_slice %262 {offsets = [8, 0], sizes = [2, 512], strides = [1, 1]} : vector<16x512xf32> to vector<2x512xf32>
    %369 = arith.truncf %367 : vector<2x128xf32> to vector<2x128xbf16>
    %cst_133 = arith.constant dense<0.000000e+00> : vector<2x512xf32>
    %370 = tpu.matmul %369, %263, %cst_133 {dimension_numbers = #tpu.dot_dimension_numbers<[1], [0], [0], [1], [0, 0, 1, 1], [], []>} : vector<2x128xbf16>, vector<128x512xbf16>, vector<2x512xf32> -> vector<2x512xf32>
    %371 = arith.addf %368, %370 : vector<2x512xf32>
    %372 = math.tanh %371 : vector<2x512xf32>
    %373 = vector.extract_strided_slice %372 {offsets = [0, 0], sizes = [2, 128], strides = [1, 1]} : vector<2x512xf32> to vector<2x128xf32>
    %cst_134 = arith.constant 5.000000e-01 : f32
    %374 = vector.broadcast %cst_134 : f32 to vector<2x128xf32>
    %375 = arith.mulf %374, %373 : vector<2x128xf32>
    %cst_135 = arith.constant 5.000000e-01 : f32
    %376 = vector.broadcast %cst_135 : f32 to vector<2x128xf32>
    %377 = arith.addf %375, %376 : vector<2x128xf32>
    %378 = vector.extract_strided_slice %372 {offsets = [0, 128], sizes = [2, 128], strides = [1, 1]} : vector<2x512xf32> to vector<2x128xf32>
    %cst_136 = arith.constant 5.000000e-01 : f32
    %379 = vector.broadcast %cst_136 : f32 to vector<2x128xf32>
    %380 = arith.mulf %379, %378 : vector<2x128xf32>
    %cst_137 = arith.constant 5.000000e-01 : f32
    %381 = vector.broadcast %cst_137 : f32 to vector<2x128xf32>
    %382 = arith.addf %380, %381 : vector<2x128xf32>
    %383 = vector.extract_strided_slice %372 {offsets = [0, 256], sizes = [2, 128], strides = [1, 1]} : vector<2x512xf32> to vector<2x128xf32>
    %384 = vector.extract_strided_slice %372 {offsets = [0, 384], sizes = [2, 128], strides = [1, 1]} : vector<2x512xf32> to vector<2x128xf32>
    %cst_138 = arith.constant 5.000000e-01 : f32
    %385 = vector.broadcast %cst_138 : f32 to vector<2x128xf32>
    %386 = arith.mulf %385, %384 : vector<2x128xf32>
    %cst_139 = arith.constant 5.000000e-01 : f32
    %387 = vector.broadcast %cst_139 : f32 to vector<2x128xf32>
    %388 = arith.addf %386, %387 : vector<2x128xf32>
    %389 = arith.mulf %382, %365 : vector<2x128xf32>
    %390 = arith.mulf %377, %383 : vector<2x128xf32>
    %391 = arith.addf %389, %390 : vector<2x128xf32>
    %392 = math.tanh %391 : vector<2x128xf32>
    %393 = arith.mulf %388, %392 : vector<2x128xf32>
    %394 = vector.extract_strided_slice %262 {offsets = [10, 0], sizes = [2, 512], strides = [1, 1]} : vector<16x512xf32> to vector<2x512xf32>
    %395 = arith.truncf %393 : vector<2x128xf32> to vector<2x128xbf16>
    %cst_140 = arith.constant dense<0.000000e+00> : vector<2x512xf32>
    %396 = tpu.matmul %395, %263, %cst_140 {dimension_numbers = #tpu.dot_dimension_numbers<[1], [0], [0], [1], [0, 0, 1, 1], [], []>} : vector<2x128xbf16>, vector<128x512xbf16>, vector<2x512xf32> -> vector<2x512xf32>
    %397 = arith.addf %394, %396 : vector<2x512xf32>
    %398 = math.tanh %397 : vector<2x512xf32>
    %399 = vector.extract_strided_slice %398 {offsets = [0, 0], sizes = [2, 128], strides = [1, 1]} : vector<2x512xf32> to vector<2x128xf32>
    %cst_141 = arith.constant 5.000000e-01 : f32
    %400 = vector.broadcast %cst_141 : f32 to vector<2x128xf32>
    %401 = arith.mulf %400, %399 : vector<2x128xf32>
    %cst_142 = arith.constant 5.000000e-01 : f32
    %402 = vector.broadcast %cst_142 : f32 to vector<2x128xf32>
    %403 = arith.addf %401, %402 : vector<2x128xf32>
    %404 = vector.extract_strided_slice %398 {offsets = [0, 128], sizes = [2, 128], strides = [1, 1]} : vector<2x512xf32> to vector<2x128xf32>
    %cst_143 = arith.constant 5.000000e-01 : f32
    %405 = vector.broadcast %cst_143 : f32 to vector<2x128xf32>
    %406 = arith.mulf %405, %404 : vector<2x128xf32>
    %cst_144 = arith.constant 5.000000e-01 : f32
    %407 = vector.broadcast %cst_144 : f32 to vector<2x128xf32>
    %408 = arith.addf %406, %407 : vector<2x128xf32>
    %409 = vector.extract_strided_slice %398 {offsets = [0, 256], sizes = [2, 128], strides = [1, 1]} : vector<2x512xf32> to vector<2x128xf32>
    %410 = vector.extract_strided_slice %398 {offsets = [0, 384], sizes = [2, 128], strides = [1, 1]} : vector<2x512xf32> to vector<2x128xf32>
    %cst_145 = arith.constant 5.000000e-01 : f32
    %411 = vector.broadcast %cst_145 : f32 to vector<2x128xf32>
    %412 = arith.mulf %411, %410 : vector<2x128xf32>
    %cst_146 = arith.constant 5.000000e-01 : f32
    %413 = vector.broadcast %cst_146 : f32 to vector<2x128xf32>
    %414 = arith.addf %412, %413 : vector<2x128xf32>
    %415 = arith.mulf %408, %391 : vector<2x128xf32>
    %416 = arith.mulf %403, %409 : vector<2x128xf32>
    %417 = arith.addf %415, %416 : vector<2x128xf32>
    %418 = math.tanh %417 : vector<2x128xf32>
    %419 = arith.mulf %414, %418 : vector<2x128xf32>
    %420 = vector.extract_strided_slice %262 {offsets = [12, 0], sizes = [2, 512], strides = [1, 1]} : vector<16x512xf32> to vector<2x512xf32>
    %421 = arith.truncf %419 : vector<2x128xf32> to vector<2x128xbf16>
    %cst_147 = arith.constant dense<0.000000e+00> : vector<2x512xf32>
    %422 = tpu.matmul %421, %263, %cst_147 {dimension_numbers = #tpu.dot_dimension_numbers<[1], [0], [0], [1], [0, 0, 1, 1], [], []>} : vector<2x128xbf16>, vector<128x512xbf16>, vector<2x512xf32> -> vector<2x512xf32>
    %423 = arith.addf %420, %422 : vector<2x512xf32>
    %424 = math.tanh %423 : vector<2x512xf32>
    %425 = vector.extract_strided_slice %424 {offsets = [0, 0], sizes = [2, 128], strides = [1, 1]} : vector<2x512xf32> to vector<2x128xf32>
    %cst_148 = arith.constant 5.000000e-01 : f32
    %426 = vector.broadcast %cst_148 : f32 to vector<2x128xf32>
    %427 = arith.mulf %426, %425 : vector<2x128xf32>
    %cst_149 = arith.constant 5.000000e-01 : f32
    %428 = vector.broadcast %cst_149 : f32 to vector<2x128xf32>
    %429 = arith.addf %427, %428 : vector<2x128xf32>
    %430 = vector.extract_strided_slice %424 {offsets = [0, 128], sizes = [2, 128], strides = [1, 1]} : vector<2x512xf32> to vector<2x128xf32>
    %cst_150 = arith.constant 5.000000e-01 : f32
    %431 = vector.broadcast %cst_150 : f32 to vector<2x128xf32>
    %432 = arith.mulf %431, %430 : vector<2x128xf32>
    %cst_151 = arith.constant 5.000000e-01 : f32
    %433 = vector.broadcast %cst_151 : f32 to vector<2x128xf32>
    %434 = arith.addf %432, %433 : vector<2x128xf32>
    %435 = vector.extract_strided_slice %424 {offsets = [0, 256], sizes = [2, 128], strides = [1, 1]} : vector<2x512xf32> to vector<2x128xf32>
    %436 = vector.extract_strided_slice %424 {offsets = [0, 384], sizes = [2, 128], strides = [1, 1]} : vector<2x512xf32> to vector<2x128xf32>
    %cst_152 = arith.constant 5.000000e-01 : f32
    %437 = vector.broadcast %cst_152 : f32 to vector<2x128xf32>
    %438 = arith.mulf %437, %436 : vector<2x128xf32>
    %cst_153 = arith.constant 5.000000e-01 : f32
    %439 = vector.broadcast %cst_153 : f32 to vector<2x128xf32>
    %440 = arith.addf %438, %439 : vector<2x128xf32>
    %441 = arith.mulf %434, %417 : vector<2x128xf32>
    %442 = arith.mulf %429, %435 : vector<2x128xf32>
    %443 = arith.addf %441, %442 : vector<2x128xf32>
    %444 = math.tanh %443 : vector<2x128xf32>
    %445 = arith.mulf %440, %444 : vector<2x128xf32>
    %446 = vector.extract_strided_slice %262 {offsets = [14, 0], sizes = [2, 512], strides = [1, 1]} : vector<16x512xf32> to vector<2x512xf32>
    %447 = arith.truncf %445 : vector<2x128xf32> to vector<2x128xbf16>
    %cst_154 = arith.constant dense<0.000000e+00> : vector<2x512xf32>
    %448 = tpu.matmul %447, %263, %cst_154 {dimension_numbers = #tpu.dot_dimension_numbers<[1], [0], [0], [1], [0, 0, 1, 1], [], []>} : vector<2x128xbf16>, vector<128x512xbf16>, vector<2x512xf32> -> vector<2x512xf32>
    %449 = arith.addf %446, %448 : vector<2x512xf32>
    %450 = math.tanh %449 : vector<2x512xf32>
    %451 = vector.extract_strided_slice %450 {offsets = [0, 0], sizes = [2, 128], strides = [1, 1]} : vector<2x512xf32> to vector<2x128xf32>
    %cst_155 = arith.constant 5.000000e-01 : f32
    %452 = vector.broadcast %cst_155 : f32 to vector<2x128xf32>
    %453 = arith.mulf %452, %451 : vector<2x128xf32>
    %cst_156 = arith.constant 5.000000e-01 : f32
    %454 = vector.broadcast %cst_156 : f32 to vector<2x128xf32>
    %455 = arith.addf %453, %454 : vector<2x128xf32>
    %456 = vector.extract_strided_slice %450 {offsets = [0, 128], sizes = [2, 128], strides = [1, 1]} : vector<2x512xf32> to vector<2x128xf32>
    %cst_157 = arith.constant 5.000000e-01 : f32
    %457 = vector.broadcast %cst_157 : f32 to vector<2x128xf32>
    %458 = arith.mulf %457, %456 : vector<2x128xf32>
    %cst_158 = arith.constant 5.000000e-01 : f32
    %459 = vector.broadcast %cst_158 : f32 to vector<2x128xf32>
    %460 = arith.addf %458, %459 : vector<2x128xf32>
    %461 = vector.extract_strided_slice %450 {offsets = [0, 256], sizes = [2, 128], strides = [1, 1]} : vector<2x512xf32> to vector<2x128xf32>
    %462 = vector.extract_strided_slice %450 {offsets = [0, 384], sizes = [2, 128], strides = [1, 1]} : vector<2x512xf32> to vector<2x128xf32>
    %cst_159 = arith.constant 5.000000e-01 : f32
    %463 = vector.broadcast %cst_159 : f32 to vector<2x128xf32>
    %464 = arith.mulf %463, %462 : vector<2x128xf32>
    %cst_160 = arith.constant 5.000000e-01 : f32
    %465 = vector.broadcast %cst_160 : f32 to vector<2x128xf32>
    %466 = arith.addf %464, %465 : vector<2x128xf32>
    %467 = arith.mulf %460, %443 : vector<2x128xf32>
    %468 = arith.mulf %455, %461 : vector<2x128xf32>
    %469 = arith.addf %467, %468 : vector<2x128xf32>
    %470 = math.tanh %469 : vector<2x128xf32>
    %471 = arith.mulf %466, %470 : vector<2x128xf32>
    %c0_161 = arith.constant 0 : index
    %c0_162 = arith.constant 0 : index
    %472 = vector.load %arg15[%c0_161, %c0_162] : memref<2x128xf32, #tpu.memory_space<vmem>>, vector<2x128xf32>
    tpu.vector_store %arg15[%c0_161, %c0_162], %471 {strides = array<i32>} : memref<2x128xf32, #tpu.memory_space<vmem>>, vector<2x128xf32>,
    return
  }
}

</mosaic_0001>

<llo_original>
// kernel: aelstm_forward.1
$region0: #{aelstm_forward.1}
  #allocation0 [shape = 'u32[]', space=smem, size = 0x4, offset = 0x4, fixed_abs, tag = 'smem constant byte address 0x4 - core index']
  #allocation1 [shape = 'u32[72,128]{1,0:T(1,128)}', space=vmem, size = 0x9000, scoped, tag = 'internal scratch']
  #allocation2 [shape = 'f32[16,128]{1,0:T(8,128)}', space=vmem, size = 0x2000, scoped, tag = 'scratch operand']
  %s0 = inlined_call_operand.vmem [shape: bf16[16,8], index: 0, kind: input, shape index: {}]
  %s1 = inlined_call_operand.vmem [shape: bf16[8,512], index: 1, kind: input, shape index: {}]
  %s2 = inlined_call_operand.vmem [shape: bf16[128,512], index: 2, kind: input, shape index: {}]
  %s3 = inlined_call_operand.vmem [shape: f32[1,512], index: 3, kind: input, shape index: {}]
  %s4 = inlined_call_operand.vmem [shape: bf16[128,64], index: 4, kind: input, shape index: {}]
  %s5 = inlined_call_operand.vmem [shape: f32[1,64], index: 5, kind: input, shape index: {}]
  %s6 = inlined_call_operand.vmem [shape: bf16[64,128], index: 6, kind: input, shape index: {}]
  %s7 = inlined_call_operand.vmem [shape: f32[1,128], index: 7, kind: input, shape index: {}]
  %s8 = inlined_call_operand.vmem [shape: bf16[256,128], index: 8, kind: input, shape index: {}]
  %s9 = inlined_call_operand.vmem [shape: f32[1,128], index: 9, kind: input, shape index: {}]
  %s10 = inlined_call_operand.vmem [shape: bf16[128,256], index: 10, kind: input, shape index: {}]
  %s11 = inlined_call_operand.vmem [shape: f32[1,256], index: 11, kind: input, shape index: {}]
  %s12 = inlined_call_operand.vmem [shape: bf16[128,512], index: 12, kind: input, shape index: {}]
  %s13 = inlined_call_operand.vmem [shape: bf16[128,512], index: 13, kind: input, shape index: {}]
  %s14 = inlined_call_operand.vmem [shape: f32[1,512], index: 14, kind: input, shape index: {}]
  %s15 = inlined_call_operand.hbm [shape: f32[2,128], index: 15, kind: output, shape index: {}]
  %s16 = sld [smem:[#allocation0]]
  $region70: #{aelstm_forward.1} parent=0
    _
  %s18 = ssub.s32 1, %s16
  %s19 = scalar_select 0, %s18, %s16
  $region1: #{aelstm_forward.1} parent=0
    #allocation3 [shape = 'u8[1024]{0}', space=vmem, size = 0x400, scoped, tag = 'output window, operand 0, single buffered']
    #allocation4 [shape = 's32[1]{0}', space=sflag, size = 0x4, scoped, tag = 'scoped memory for aelstm_forward.1']
    %20 = vsyncpa [#allocation4], 0
    // Predicated region
    $region2: #{aelstm_forward.1} parent=1 // pred_check
      _
    $region3: #{aelstm_forward.1} parent=1 // pred_check_branch
      %22 = sbr.rel (0) target = $region5
    $region4: #{aelstm_forward.1} parent=1 // pred_region
      _
    $region5: #{aelstm_forward.1} parent=1 // pred_fallthru
      _
    // Predicated region
    $region6: #{aelstm_forward.1} parent=1 // pred_check
      _
    $region7: #{aelstm_forward.1} parent=1 // pred_check_branch
      %24 = sbr.rel (0) target = $region9
    $region8: #{aelstm_forward.1} parent=1 // pred_region
      _
    $region9: #{aelstm_forward.1} parent=1 // pred_fallthru
      _
    // Predicated region
    $region10: #{aelstm_forward.1} parent=1 // pred_check
      _
    $region11: #{aelstm_forward.1} parent=1 // pred_check_branch
      %26 = sbr.rel (0) target = $region13
    $region12: #{aelstm_forward.1} parent=1 // pred_region
      _
    $region13: #{aelstm_forward.1} parent=1 // pred_fallthru
      _
    // Predicated region
    $region14: #{aelstm_forward.1} parent=1 // pred_check
      _
    $region15: #{aelstm_forward.1} parent=1 // pred_check_branch
      %28 = sbr.rel (0) target = $region17
    $region16: #{aelstm_forward.1} parent=1 // pred_region
      _
    $region17: #{aelstm_forward.1} parent=1 // pred_fallthru
      _
    // Predicated region
    $region18: #{aelstm_forward.1} parent=1 // pred_check
      _
    $region19: #{aelstm_forward.1} parent=1 // pred_check_branch
      %30 = sbr.rel (0) target = $region21
    $region20: #{aelstm_forward.1} parent=1 // pred_region
      _
    $region21: #{aelstm_forward.1} parent=1 // pred_fallthru
      _
    // Predicated region
    $region22: #{aelstm_forward.1} parent=1 // pred_check
      _
    $region23: #{aelstm_forward.1} parent=1 // pred_check_branch
      %32 = sbr.rel (0) target = $region25
    $region24: #{aelstm_forward.1} parent=1 // pred_region
      _
    $region25: #{aelstm_forward.1} parent=1 // pred_fallthru
      _
    // Predicated region
    $region26: #{aelstm_forward.1} parent=1 // pred_check
      _
    $region27: #{aelstm_forward.1} parent=1 // pred_check_branch
      %34 = sbr.rel (0) target = $region29
    $region28: #{aelstm_forward.1} parent=1 // pred_region
      _
    $region29: #{aelstm_forward.1} parent=1 // pred_fallthru
      _
    // Predicated region
    $region30: #{aelstm_forward.1} parent=1 // pred_check
      _
    $region31: #{aelstm_forward.1} parent=1 // pred_check_branch
      %36 = sbr.rel (0) target = $region33
    $region32: #{aelstm_forward.1} parent=1 // pred_region
      _
    $region33: #{aelstm_forward.1} parent=1 // pred_fallthru
      _
    // Predicated region
    $region34: #{aelstm_forward.1} parent=1 // pred_check
      _
    $region35: #{aelstm_forward.1} parent=1 // pred_check_branch
      %38 = sbr.rel (0) target = $region37
    $region36: #{aelstm_forward.1} parent=1 // pred_region
      _
    $region37: #{aelstm_forward.1} parent=1 // pred_fallthru
      _
    // Predicated region
    $region38: #{aelstm_forward.1} parent=1 // pred_check
      _
    $region39: #{aelstm_forward.1} parent=1 // pred_check_branch
      %40 = sbr.rel (0) target = $region41
    $region40: #{aelstm_forward.1} parent=1 // pred_region
      _
    $region41: #{aelstm_forward.1} parent=1 // pred_fallthru
      _
    // Predicated region
    $region42: #{aelstm_forward.1} parent=1 // pred_check
      _
    $region43: #{aelstm_forward.1} parent=1 // pred_check_branch
      %42 = sbr.rel (0) target = $region45
    $region44: #{aelstm_forward.1} parent=1 // pred_region
      _
    $region45: #{aelstm_forward.1} parent=1 // pred_fallthru
      _
    // Predicated region
    $region46: #{aelstm_forward.1} parent=1 // pred_check
      _
    $region47: #{aelstm_forward.1} parent=1 // pred_check_branch
      %44 = sbr.rel (0) target = $region49
    $region48: #{aelstm_forward.1} parent=1 // pred_region
      _
    $region49: #{aelstm_forward.1} parent=1 // pred_fallthru
      _
    // Predicated region
    $region50: #{aelstm_forward.1} parent=1 // pred_check
      _
    $region51: #{aelstm_forward.1} parent=1 // pred_check_branch
      %46 = sbr.rel (0) target = $region53
    $region52: #{aelstm_forward.1} parent=1 // pred_region
      _
    $region53: #{aelstm_forward.1} parent=1 // pred_fallthru
      _
    // Predicated region
    $region54: #{aelstm_forward.1} parent=1 // pred_check
      _
    $region55: #{aelstm_forward.1} parent=1 // pred_check_branch
      %48 = sbr.rel (0) target = $region57
    $region56: #{aelstm_forward.1} parent=1 // pred_region
      _
    $region57: #{aelstm_forward.1} parent=1 // pred_fallthru
      _
    // Predicated region
    $region58: #{aelstm_forward.1} parent=1 // pred_check
      _
    $region59: #{aelstm_forward.1} parent=1 // pred_check_branch
      %50 = sbr.rel (0) target = $region61
    $region60: #{aelstm_forward.1} parent=1 // pred_region
      _
    $region61: #{aelstm_forward.1} parent=1 // pred_fallthru
      _
    %v52 = vld [vmem:[%s0] sm:$0xf]
    %v53 = vld [vmem:[%s0 + $0x4] sm:$0xf]
    %v54 = vld [vmem:[%s1] sm:$0xff]
    %v55 = vld [vmem:[%s1 + $0x8] sm:$0xff]
    %v56 = vld [vmem:[%s3] sm:$0xf]
    %v58 = vperm.slane %v56, 0
    %v59 = vperm.slane %v56, 1
    %v60 = vperm.slane %v56, 2
    %v61 = vperm.slane %v56, 3
    %v68 = vunpack.c.l.b16 %v52
    %v69 = vunpack.c.l.b16 %v53
    %v70 = vpack.c.b16 %v69, %v68
    %v73 = vunpack.c.l.b16 %v54
    %v74 = vunpack.c.h.b16 %v54
    %v75 = vunpack.c.l.b16 %v55
    %v76 = vunpack.c.h.b16 %v55
    %v77 = vpack.c.b16 %v73, %v73
    %v78 = vpack.c.b16 %v74, %v74
    %v79 = vpack.c.b16 %v75, %v75
    %v80 = vpack.c.b16 %v76, %v76
    %vm81 = vcmask 64512
    %v83 = vsel %vm81, %v70, 0
    %vm85 = vcmask 1043456
    %v87 = vsel %vm85, %v77, 0
    %v90 = vsel %vm85, %v78, 0
    %v93 = vsel %vm85, %v79, 0
    %v96 = vsel %vm85, %v80, 0
    %98 = vmatpush.bf16.msra.mxu0 0
    %99 = vmatpush.bf16.msra.mxu0 0
    %100 = vmatpush.bf16.msra.mxu0 0
    %101 = vmatpush.bf16.msra.mxu0 0
    %102 = vmatpush.bf16.msra.mxu0 0
    %103 = vmatpush.bf16.msra.mxu0 0
    %104 = vmatpush.bf16.msra.mxu0 0
    %105 = vmatpush.bf16.msra.mxu0 %v87
    %106 = vmatmul.bf16.gmra.mxu0 %v83
    %v107 = vpop.f32.mrf.mxu0
    %v108 = vadd.f32 %v58, %v107
    %v109 = vpop.f32.mrf.mxu0
    %v110 = vadd.f32 %v58, %v109
    %111 = vdwg.mxu0
    %112 = vmatpush.bf16.msra.mxu0 0
    %113 = vmatpush.bf16.msra.mxu0 0
    %114 = vmatpush.bf16.msra.mxu0 0
    %115 = vmatpush.bf16.msra.mxu0 0
    %116 = vmatpush.bf16.msra.mxu0 0
    %117 = vmatpush.bf16.msra.mxu0 0
    %118 = vmatpush.bf16.msra.mxu0 0
    %119 = vmatpush.bf16.msra.mxu0 %v90
    %120 = vmatmul.bf16.gmra.mxu0 %v83
    %v121 = vpop.f32.mrf.mxu0
    %v122 = vadd.f32 %v59, %v121
    %v123 = vpop.f32.mrf.mxu0
    %v124 = vadd.f32 %v59, %v123
    %125 = vdwg.mxu0
    %126 = vmatpush.bf16.msra.mxu0 0
    %127 = vmatpush.bf16.msra.mxu0 0
    %128 = vmatpush.bf16.msra.mxu0 0
    %129 = vmatpush.bf16.msra.mxu0 0
    %130 = vmatpush.bf16.msra.mxu0 0
    %131 = vmatpush.bf16.msra.mxu0 0
    %132 = vmatpush.bf16.msra.mxu0 0
    %133 = vmatpush.bf16.msra.mxu0 %v93
    %134 = vmatmul.bf16.gmra.mxu0 %v83
    %v135 = vpop.f32.mrf.mxu0
    %v136 = vadd.f32 %v60, %v135
    %v137 = vpop.f32.mrf.mxu0
    %v138 = vadd.f32 %v60, %v137
    %139 = vdwg.mxu0
    %140 = vmatpush.bf16.msra.mxu0 0
    %141 = vmatpush.bf16.msra.mxu0 0
    %142 = vmatpush.bf16.msra.mxu0 0
    %143 = vmatpush.bf16.msra.mxu0 0
    %144 = vmatpush.bf16.msra.mxu0 0
    %145 = vmatpush.bf16.msra.mxu0 0
    %146 = vmatpush.bf16.msra.mxu0 0
    %147 = vmatpush.bf16.msra.mxu0 %v96
    %148 = vmatmul.bf16.gmra.mxu0 %v83
    %v149 = vpop.f32.mrf.mxu0
    %v150 = vadd.f32 %v61, %v149
    %v151 = vpop.f32.mrf.mxu0
    %v152 = vadd.f32 %v61, %v151
    %153 = vdwg.mxu0
    %v154 = vld [vmem:[%s2] sm:$0xff]
    %v155 = vld [vmem:[%s2 + $0x8] sm:$0xff]
    %v156 = vld [vmem:[%s2 + $0x10] sm:$0xff]
    %v157 = vld [vmem:[%s2 + $0x18] sm:$0xff]
    %v158 = vld [vmem:[%s2 + $0x20] sm:$0xff]
    %v159 = vld [vmem:[%s2 + $0x28] sm:$0xff]
    %v160 = vld [vmem:[%s2 + $0x30] sm:$0xff]
    %v161 = vld [vmem:[%s2 + $0x38] sm:$0xff]
    %v162 = vld [vmem:[%s2 + $0x40] sm:$0xff]
    %v163 = vld [vmem:[%s2 + $0x48] sm:$0xff]
    %v164 = vld [vmem:[%s2 + $0x50] sm:$0xff]
    %v165 = vld [vmem:[%s2 + $0x58] sm:$0xff]
    %v166 = vld [vmem:[%s2 + $0x60] sm:$0xff]
    %v167 = vld [vmem:[%s2 + $0x68] sm:$0xff]
    %v168 = vld [vmem:[%s2 + $0x70] sm:$0xff]
    %v169 = vld [vmem:[%s2 + $0x78] sm:$0xff]
    %v170 = vld [vmem:[%s2 + $0x80] sm:$0xff]
    %v171 = vld [vmem:[%s2 + $0x88] sm:$0xff]
    %v172 = vld [vmem:[%s2 + $0x90] sm:$0xff]
    %v173 = vld [vmem:[%s2 + $0x98] sm:$0xff]
    %v174 = vld [vmem:[%s2 + $0xa0] sm:$0xff]
    %v175 = vld [vmem:[%s2 + $0xa8] sm:$0xff]
    %v176 = vld [vmem:[%s2 + $0xb0] sm:$0xff]
    %v177 = vld [vmem:[%s2 + $0xb8] sm:$0xff]
    %v178 = vld [vmem:[%s2 + $0xc0] sm:$0xff]
    %v179 = vld [vmem:[%s2 + $0xc8] sm:$0xff]
    %v180 = vld [vmem:[%s2 + $0xd0] sm:$0xff]
    %v181 = vld [vmem:[%s2 + $0xd8] sm:$0xff]
    %v182 = vld [vmem:[%s2 + $0xe0] sm:$0xff]
    %v183 = vld [vmem:[%s2 + $0xe8] sm:$0xff]
    %v184 = vld [vmem:[%s2 + $0xf0] sm:$0xff]
    %v185 = vld [vmem:[%s2 + $0xf8] sm:$0xff]
    %v218 = vunpack.c.l.b16 %v154
    %v219 = vunpack.c.h.b16 %v154
    %v220 = vunpack.c.l.b16 %v155
    %v221 = vunpack.c.h.b16 %v155
    %v222 = vunpack.c.l.b16 %v156
    %v223 = vunpack.c.h.b16 %v156
    %v224 = vunpack.c.l.b16 %v157
    %v225 = vunpack.c.h.b16 %v157
    %v226 = vunpack.c.l.b16 %v158
    %v227 = vunpack.c.h.b16 %v158
    %v228 = vunpack.c.l.b16 %v159
    %v229 = vunpack.c.h.b16 %v159
    %v230 = vunpack.c.l.b16 %v160
    %v231 = vunpack.c.h.b16 %v160
    %v232 = vunpack.c.l.b16 %v161
    %v233 = vunpack.c.h.b16 %v161
    %v234 = vunpack.c.l.b16 %v162
    %v235 = vunpack.c.h.b16 %v162
    %v236 = vunpack.c.l.b16 %v163
    %v237 = vunpack.c.h.b16 %v163
    %v238 = vunpack.c.l.b16 %v164
    %v239 = vunpack.c.h.b16 %v164
    %v240 = vunpack.c.l.b16 %v165
    %v241 = vunpack.c.h.b16 %v165
    %v242 = vunpack.c.l.b16 %v166
    %v243 = vunpack.c.h.b16 %v166
    %v244 = vunpack.c.l.b16 %v167
    %v245 = vunpack.c.h.b16 %v167
    %v246 = vunpack.c.l.b16 %v168
    %v247 = vunpack.c.h.b16 %v168
    %v248 = vunpack.c.l.b16 %v169
    %v249 = vunpack.c.h.b16 %v169
    %v250 = vunpack.c.l.b16 %v170
    %v251 = vunpack.c.h.b16 %v170
    %v252 = vunpack.c.l.b16 %v171
    %v253 = vunpack.c.h.b16 %v171
    %v254 = vunpack.c.l.b16 %v172
    %v255 = vunpack.c.h.b16 %v172
    %v256 = vunpack.c.l.b16 %v173
    %v257 = vunpack.c.h.b16 %v173
    %v258 = vunpack.c.l.b16 %v174
    %v259 = vunpack.c.h.b16 %v174
    %v260 = vunpack.c.l.b16 %v175
    %v261 = vunpack.c.h.b16 %v175
    %v262 = vunpack.c.l.b16 %v176
    %v263 = vunpack.c.h.b16 %v176
    %v264 = vunpack.c.l.b16 %v177
    %v265 = vunpack.c.h.b16 %v177
    %v266 = vunpack.c.l.b16 %v178
    %v267 = vunpack.c.h.b16 %v178
    %v268 = vunpack.c.l.b16 %v179
    %v269 = vunpack.c.h.b16 %v179
    %v270 = vunpack.c.l.b16 %v180
    %v271 = vunpack.c.h.b16 %v180
    %v272 = vunpack.c.l.b16 %v181
    %v273 = vunpack.c.h.b16 %v181
    %v274 = vunpack.c.l.b16 %v182
    %v275 = vunpack.c.h.b16 %v182
    %v276 = vunpack.c.l.b16 %v183
    %v277 = vunpack.c.h.b16 %v183
    %v278 = vunpack.c.l.b16 %v184
    %v279 = vunpack.c.h.b16 %v184
    %v280 = vunpack.c.l.b16 %v185
    %v281 = vunpack.c.h.b16 %v185
    %v282 = vpack.c.b16 %v222, %v218
    %v283 = vpack.c.b16 %v223, %v219
    %v284 = vpack.c.b16 %v224, %v220
    %v285 = vpack.c.b16 %v225, %v221
    %v286 = vpack.c.b16 %v230, %v226
    %v287 = vpack.c.b16 %v231, %v227
    %v288 = vpack.c.b16 %v232, %v228
    %v289 = vpack.c.b16 %v233, %v229
    %v290 = vpack.c.b16 %v238, %v234
    %v291 = vpack.c.b16 %v239, %v235
    %v292 = vpack.c.b16 %v240, %v236
    %v293 = vpack.c.b16 %v241, %v237
    %v294 = vpack.c.b16 %v246, %v242
    %v295 = vpack.c.b16 %v247, %v243
    %v296 = vpack.c.b16 %v248, %v244
    %v297 = vpack.c.b16 %v249, %v245
    %v298 = vpack.c.b16 %v254, %v250
    %v299 = vpack.c.b16 %v255, %v251
    %v300 = vpack.c.b16 %v256, %v252
    %v301 = vpack.c.b16 %v257, %v253
    %v302 = vpack.c.b16 %v262, %v258
    %v303 = vpack.c.b16 %v263, %v259
    %v304 = vpack.c.b16 %v264, %v260
    %v305 = vpack.c.b16 %v265, %v261
    %v306 = vpack.c.b16 %v270, %v266
    %v307 = vpack.c.b16 %v271, %v267
    %v308 = vpack.c.b16 %v272, %v268
    %v309 = vpack.c.b16 %v273, %v269
    %v310 = vpack.c.b16 %v278, %v274
    %v311 = vpack.c.b16 %v279, %v275
    %v312 = vpack.c.b16 %v280, %v276
    %v313 = vpack.c.b16 %v281, %v277
    %346 = vmatpush.bf16.msra.mxu0 %v310
    %347 = vmatpush.bf16.msra.mxu0 %v306
    %348 = vmatpush.bf16.msra.mxu0 %v302
    %349 = vmatpush.bf16.msra.mxu0 %v298
    %350 = vmatpush.bf16.msra.mxu0 %v294
    %351 = vmatpush.bf16.msra.mxu0 %v290
    %352 = vmatpush.bf16.msra.mxu0 %v286
    %353 = vmatpush.bf16.msra.mxu0 %v282
    %354 = vmatmul.bf16.gmra.mxu0 0
    %v355 = vpop.f32.mrf.mxu0
    %v356 = vadd.f32 0.0, %v355
    %v357 = vpop.f32.mrf.mxu0
    %358 = vdwg.mxu0
    %359 = vmatpush.bf16.msra.mxu0 %v311
    %360 = vmatpush.bf16.msra.mxu0 %v307
    %361 = vmatpush.bf16.msra.mxu0 %v303
    %362 = vmatpush.bf16.msra.mxu0 %v299
    %363 = vmatpush.bf16.msra.mxu0 %v295
    %364 = vmatpush.bf16.msra.mxu0 %v291
    %365 = vmatpush.bf16.msra.mxu0 %v287
    %366 = vmatpush.bf16.msra.mxu0 %v283
    %367 = vmatmul.bf16.gmra.mxu0 0
    %v368 = vpop.f32.mrf.mxu0
    %v369 = vadd.f32 0.0, %v368
    %v370 = vpop.f32.mrf.mxu0
    %371 = vdwg.mxu0
    %372 = vmatpush.bf16.msra.mxu0 %v312
    %373 = vmatpush.bf16.msra.mxu0 %v308
    %374 = vmatpush.bf16.msra.mxu0 %v304
    %375 = vmatpush.bf16.msra.mxu0 %v300
    %376 = vmatpush.bf16.msra.mxu0 %v296
    %377 = vmatpush.bf16.msra.mxu0 %v292
    %378 = vmatpush.bf16.msra.mxu0 %v288
    %379 = vmatpush.bf16.msra.mxu0 %v284
    %380 = vmatmul.bf16.gmra.mxu0 0
    %v381 = vpop.f32.mrf.mxu0
    %v382 = vadd.f32 0.0, %v381
    %v383 = vpop.f32.mrf.mxu0
    %384 = vdwg.mxu0
    %385 = vmatpush.bf16.msra.mxu0 %v313
    %386 = vmatpush.bf16.msra.mxu0 %v309
    %387 = vmatpush.bf16.msra.mxu0 %v305
    %388 = vmatpush.bf16.msra.mxu0 %v301
    %389 = vmatpush.bf16.msra.mxu0 %v297
    %390 = vmatpush.bf16.msra.mxu0 %v293
    %391 = vmatpush.bf16.msra.mxu0 %v289
    %392 = vmatpush.bf16.msra.mxu0 %v285
    %393 = vmatmul.bf16.gmra.mxu0 0
    %v394 = vpop.f32.mrf.mxu0
    %v395 = vadd.f32 0.0, %v394
    %v396 = vpop.f32.mrf.mxu0
    %397 = vdwg.mxu0
    %v398 = vadd.f32 %v108, %v356
    %v399 = vadd.f32 %v122, %v369
    %v400 = vadd.f32 %v136, %v382
    %v401 = vadd.f32 %v150, %v395
    %v402 = vtanh.pop %v398
    %v403 = vtanh.pop %v399
    %v404 = vtanh.pop %v400
    %v405 = vtanh.pop %v401
    %v406 = vmul.f32 %v402, 0.5
    %v407 = vadd.f32 %v406, 0.5
    %v408 = vmul.f32 %v403, 0.5
    %v409 = vadd.f32 %v408, 0.5
    %v410 = vmul.f32 %v405, 0.5
    %v411 = vadd.f32 %v410, 0.5
    %v412 = vmul.f32 %v409, 0.0
    %v413 = vmul.f32 %v407, %v404
    %v414 = vadd.f32 %v412, %v413
    %v415 = vtanh.pop %v414
    %v416 = vmul.f32 %v411, %v415
    %417 = vst [vmem:[#allocation2] sm:$0x3] %v416
    %v418 = vpack.c.bf16 %v416, %v416
    %419 = vmatpush.bf16.msra.mxu0 %v310
    %420 = vmatpush.bf16.msra.mxu0 %v306
    %421 = vmatpush.bf16.msra.mxu0 %v302
    %422 = vmatpush.bf16.msra.mxu0 %v298
    %423 = vmatpush.bf16.msra.mxu0 %v294
    %424 = vmatpush.bf16.msra.mxu0 %v290
    %425 = vmatpush.bf16.msra.mxu0 %v286
    %426 = vmatpush.bf16.msra.mxu0 %v282
    %427 = vmatmul.bf16.gmra.mxu0 %v418
    %v428 = vpop.f32.mrf.mxu0
    %v429 = vadd.f32 0.0, %v428
    %v430 = vpop.f32.mrf.mxu0
    %431 = vdwg.mxu0
    %432 = vmatpush.bf16.msra.mxu0 %v311
    %433 = vmatpush.bf16.msra.mxu0 %v307
    %434 = vmatpush.bf16.msra.mxu0 %v303
    %435 = vmatpush.bf16.msra.mxu0 %v299
    %436 = vmatpush.bf16.msra.mxu0 %v295
    %437 = vmatpush.bf16.msra.mxu0 %v291
    %438 = vmatpush.bf16.msra.mxu0 %v287
    %439 = vmatpush.bf16.msra.mxu0 %v283
    %440 = vmatmul.bf16.gmra.mxu0 %v418
    %v441 = vpop.f32.mrf.mxu0
    %v442 = vadd.f32 0.0, %v441
    %v443 = vpop.f32.mrf.mxu0
    %444 = vdwg.mxu0
    %445 = vmatpush.bf16.msra.mxu0 %v312
    %446 = vmatpush.bf16.msra.mxu0 %v308
    %447 = vmatpush.bf16.msra.mxu0 %v304
    %448 = vmatpush.bf16.msra.mxu0 %v300
    %449 = vmatpush.bf16.msra.mxu0 %v296
    %450 = vmatpush.bf16.msra.mxu0 %v292
    %451 = vmatpush.bf16.msra.mxu0 %v288
    %452 = vmatpush.bf16.msra.mxu0 %v284
    %453 = vmatmul.bf16.gmra.mxu0 %v418
    %v454 = vpop.f32.mrf.mxu0
    %v455 = vadd.f32 0.0, %v454
    %v456 = vpop.f32.mrf.mxu0
    %457 = vdwg.mxu0
    %458 = vmatpush.bf16.msra.mxu0 %v313
    %459 = vmatpush.bf16.msra.mxu0 %v309
    %460 = vmatpush.bf16.msra.mxu0 %v305
    %461 = vmatpush.bf16.msra.mxu0 %v301
    %462 = vmatpush.bf16.msra.mxu0 %v297
    %463 = vmatpush.bf16.msra.mxu0 %v293
    %464 = vmatpush.bf16.msra.mxu0 %v289
    %465 = vmatpush.bf16.msra.mxu0 %v285
    %466 = vmatmul.bf16.gmra.mxu0 %v418
    %v467 = vpop.f32.mrf.mxu0
    %v468 = vadd.f32 0.0, %v467
    %v469 = vpop.f32.mrf.mxu0
    %470 = vdwg.mxu0
    %v475 = vrot.slane %v429, 6
    %v476 = vrot.slane %v442, 6
    %v477 = vrot.slane %v455, 6
    %v478 = vrot.slane %v468, 6
    %v483 = vadd.f32 %v108, %v475
    %v484 = vadd.f32 %v122, %v476
    %v485 = vadd.f32 %v136, %v477
    %v486 = vadd.f32 %v150, %v478
    %v487 = vtanh.pop %v483
    %v488 = vtanh.pop %v484
    %v489 = vtanh.pop %v485
    %v490 = vtanh.pop %v486
    %v491 = vmul.f32 %v487, 0.5
    %v492 = vadd.f32 %v491, 0.5
    %v493 = vmul.f32 %v488, 0.5
    %v494 = vadd.f32 %v493, 0.5
    %v495 = vmul.f32 %v490, 0.5
    %v496 = vadd.f32 %v495, 0.5
    %v498 = vrot.slane %v414, 6
    %v500 = vmul.f32 %v494, %v498
    %v501 = vmul.f32 %v492, %v489
    %v502 = vadd.f32 %v500, %v501
    %v503 = vtanh.pop %v502
    %v504 = vmul.f32 %v496, %v503
    %505 = vst [vmem:[#allocation2] sm:$0xc] %v504
    %v506 = vpack.c.bf16 %v504, %v504
    %v508 = vrot.slane %v506, 1
    %510 = vmatpush.bf16.msra.mxu0 %v310
    %511 = vmatpush.bf16.msra.mxu0 %v306
    %512 = vmatpush.bf16.msra.mxu0 %v302
    %513 = vmatpush.bf16.msra.mxu0 %v298
    %514 = vmatpush.bf16.msra.mxu0 %v294
    %515 = vmatpush.bf16.msra.mxu0 %v290
    %516 = vmatpush.bf16.msra.mxu0 %v286
    %517 = vmatpush.bf16.msra.mxu0 %v282
    %518 = vmatmul.bf16.gmra.mxu0 %v508
    %v519 = vpop.f32.mrf.mxu0
    %v520 = vadd.f32 0.0, %v519
    %v521 = vpop.f32.mrf.mxu0
    %522 = vdwg.mxu0
    %523 = vmatpush.bf16.msra.mxu0 %v311
    %524 = vmatpush.bf16.msra.mxu0 %v307
    %525 = vmatpush.bf16.msra.mxu0 %v303
    %526 = vmatpush.bf16.msra.mxu0 %v299
    %527 = vmatpush.bf16.msra.mxu0 %v295
    %528 = vmatpush.bf16.msra.mxu0 %v291
    %529 = vmatpush.bf16.msra.mxu0 %v287
    %530 = vmatpush.bf16.msra.mxu0 %v283
    %531 = vmatmul.bf16.gmra.mxu0 %v508
    %v532 = vpop.f32.mrf.mxu0
    %v533 = vadd.f32 0.0, %v532
    %v534 = vpop.f32.mrf.mxu0
    %535 = vdwg.mxu0
    %536 = vmatpush.bf16.msra.mxu0 %v312
    %537 = vmatpush.bf16.msra.mxu0 %v308
    %538 = vmatpush.bf16.msra.mxu0 %v304
    %539 = vmatpush.bf16.msra.mxu0 %v300
    %540 = vmatpush.bf16.msra.mxu0 %v296
    %541 = vmatpush.bf16.msra.mxu0 %v292
    %542 = vmatpush.bf16.msra.mxu0 %v288
    %543 = vmatpush.bf16.msra.mxu0 %v284
    %544 = vmatmul.bf16.gmra.mxu0 %v508
    %v545 = vpop.f32.mrf.mxu0
    %v546 = vadd.f32 0.0, %v545
    %v547 = vpop.f32.mrf.mxu0
    %548 = vdwg.mxu0
    %549 = vmatpush.bf16.msra.mxu0 %v313
    %550 = vmatpush.bf16.msra.mxu0 %v309
    %551 = vmatpush.bf16.msra.mxu0 %v305
    %552 = vmatpush.bf16.msra.mxu0 %v301
    %553 = vmatpush.bf16.msra.mxu0 %v297
    %554 = vmatpush.bf16.msra.mxu0 %v293
    %555 = vmatpush.bf16.msra.mxu0 %v289
    %556 = vmatpush.bf16.msra.mxu0 %v285
    %557 = vmatmul.bf16.gmra.mxu0 %v508
    %v558 = vpop.f32.mrf.mxu0
    %v559 = vadd.f32 0.0, %v558
    %v560 = vpop.f32.mrf.mxu0
    %561 = vdwg.mxu0
    %v566 = vrot.slane %v520, 4
    %v567 = vrot.slane %v533, 4
    %v568 = vrot.slane %v546, 4
    %v569 = vrot.slane %v559, 4
    %v574 = vadd.f32 %v108, %v566
    %v575 = vadd.f32 %v122, %v567
    %v576 = vadd.f32 %v136, %v568
    %v577 = vadd.f32 %v150, %v569
    %v578 = vtanh.pop %v574
    %v579 = vtanh.pop %v575
    %v580 = vtanh.pop %v576
    %v581 = vtanh.pop %v577
    %v582 = vmul.f32 %v578, 0.5
    %v583 = vadd.f32 %v582, 0.5
    %v584 = vmul.f32 %v579, 0.5
    %v585 = vadd.f32 %v584, 0.5
    %v586 = vmul.f32 %v581, 0.5
    %v587 = vadd.f32 %v586, 0.5
    %v589 = vrot.slane %v502, 6
    %v591 = vmul.f32 %v585, %v589
    %v592 = vmul.f32 %v583, %v580
    %v593 = vadd.f32 %v591, %v592
    %v594 = vtanh.pop %v593
    %v595 = vmul.f32 %v587, %v594
    %596 = vst [vmem:[#allocation2] sm:$0x30] %v595
    %v597 = vpack.c.bf16 %v595, %v595
    %v599 = vrot.slane %v597, 2
    %601 = vmatpush.bf16.msra.mxu0 %v310
    %602 = vmatpush.bf16.msra.mxu0 %v306
    %603 = vmatpush.bf16.msra.mxu0 %v302
    %604 = vmatpush.bf16.msra.mxu0 %v298
    %605 = vmatpush.bf16.msra.mxu0 %v294
    %606 = vmatpush.bf16.msra.mxu0 %v290
    %607 = vmatpush.bf16.msra.mxu0 %v286
    %608 = vmatpush.bf16.msra.mxu0 %v282
    %609 = vmatmul.bf16.gmra.mxu0 %v599
    %v610 = vpop.f32.mrf.mxu0
    %v611 = vadd.f32 0.0, %v610
    %v612 = vpop.f32.mrf.mxu0
    %613 = vdwg.mxu0
    %614 = vmatpush.bf16.msra.mxu0 %v311
    %615 = vmatpush.bf16.msra.mxu0 %v307
    %616 = vmatpush.bf16.msra.mxu0 %v303
    %617 = vmatpush.bf16.msra.mxu0 %v299
    %618 = vmatpush.bf16.msra.mxu0 %v295
    %619 = vmatpush.bf16.msra.mxu0 %v291
    %620 = vmatpush.bf16.msra.mxu0 %v287
    %621 = vmatpush.bf16.msra.mxu0 %v283
    %622 = vmatmul.bf16.gmra.mxu0 %v599
    %v623 = vpop.f32.mrf.mxu0
    %v624 = vadd.f32 0.0, %v623
    %v625 = vpop.f32.mrf.mxu0
    %626 = vdwg.mxu0
    %627 = vmatpush.bf16.msra.mxu0 %v312
    %628 = vmatpush.bf16.msra.mxu0 %v308
    %629 = vmatpush.bf16.msra.mxu0 %v304
    %630 = vmatpush.bf16.msra.mxu0 %v300
    %631 = vmatpush.bf16.msra.mxu0 %v296
    %632 = vmatpush.bf16.msra.mxu0 %v292
    %633 = vmatpush.bf16.msra.mxu0 %v288
    %634 = vmatpush.bf16.msra.mxu0 %v284
    %635 = vmatmul.bf16.gmra.mxu0 %v599
    %v636 = vpop.f32.mrf.mxu0
    %v637 = vadd.f32 0.0, %v636
    %v638 = vpop.f32.mrf.mxu0
    %639 = vdwg.mxu0
    %640 = vmatpush.bf16.msra.mxu0 %v313
    %641 = vmatpush.bf16.msra.mxu0 %v309
    %642 = vmatpush.bf16.msra.mxu0 %v305
    %643 = vmatpush.bf16.msra.mxu0 %v301
    %644 = vmatpush.bf16.msra.mxu0 %v297
    %645 = vmatpush.bf16.msra.mxu0 %v293
    %646 = vmatpush.bf16.msra.mxu0 %v289
    %647 = vmatpush.bf16.msra.mxu0 %v285
    %648 = vmatmul.bf16.gmra.mxu0 %v599
    %v649 = vpop.f32.mrf.mxu0
    %v650 = vadd.f32 0.0, %v649
    %v651 = vpop.f32.mrf.mxu0
    %652 = vdwg.mxu0
    %v657 = vrot.slane %v611, 2
    %v658 = vrot.slane %v624, 2
    %v659 = vrot.slane %v637, 2
    %v660 = vrot.slane %v650, 2
    %v665 = vadd.f32 %v108, %v657
    %v666 = vadd.f32 %v122, %v658
    %v667 = vadd.f32 %v136, %v659
    %v668 = vadd.f32 %v150, %v660
    %v669 = vtanh.pop %v665
    %v670 = vtanh.pop %v666
    %v671 = vtanh.pop %v667
    %v672 = vtanh.pop %v668
    %v673 = vmul.f32 %v669, 0.5
    %v674 = vadd.f32 %v673, 0.5
    %v675 = vmul.f32 %v670, 0.5
    %v676 = vadd.f32 %v675, 0.5
    %v677 = vmul.f32 %v672, 0.5
    %v678 = vadd.f32 %v677, 0.5
    %v680 = vrot.slane %v593, 6
    %v682 = vmul.f32 %v676, %v680
    %v683 = vmul.f32 %v674, %v671
    %v684 = vadd.f32 %v682, %v683
    %v685 = vtanh.pop %v684
    %v686 = vmul.f32 %v678, %v685
    %687 = vst [vmem:[#allocation2] sm:$0xc0] %v686
    %v688 = vpack.c.bf16 %v686, %v686
    %v690 = vrot.slane %v688, 3
    %692 = vmatpush.bf16.msra.mxu0 %v310
    %693 = vmatpush.bf16.msra.mxu0 %v306
    %694 = vmatpush.bf16.msra.mxu0 %v302
    %695 = vmatpush.bf16.msra.mxu0 %v298
    %696 = vmatpush.bf16.msra.mxu0 %v294
    %697 = vmatpush.bf16.msra.mxu0 %v290
    %698 = vmatpush.bf16.msra.mxu0 %v286
    %699 = vmatpush.bf16.msra.mxu0 %v282
    %700 = vmatmul.bf16.gmra.mxu0 %v690
    %v701 = vpop.f32.mrf.mxu0
    %v702 = vadd.f32 0.0, %v701
    %v703 = vpop.f32.mrf.mxu0
    %704 = vdwg.mxu0
    %705 = vmatpush.bf16.msra.mxu0 %v311
    %706 = vmatpush.bf16.msra.mxu0 %v307
    %707 = vmatpush.bf16.msra.mxu0 %v303
    %708 = vmatpush.bf16.msra.mxu0 %v299
    %709 = vmatpush.bf16.msra.mxu0 %v295
    %710 = vmatpush.bf16.msra.mxu0 %v291
    %711 = vmatpush.bf16.msra.mxu0 %v287
    %712 = vmatpush.bf16.msra.mxu0 %v283
    %713 = vmatmul.bf16.gmra.mxu0 %v690
    %v714 = vpop.f32.mrf.mxu0
    %v715 = vadd.f32 0.0, %v714
    %v716 = vpop.f32.mrf.mxu0
    %717 = vdwg.mxu0
    %718 = vmatpush.bf16.msra.mxu0 %v312
    %719 = vmatpush.bf16.msra.mxu0 %v308
    %720 = vmatpush.bf16.msra.mxu0 %v304
    %721 = vmatpush.bf16.msra.mxu0 %v300
    %722 = vmatpush.bf16.msra.mxu0 %v296
    %723 = vmatpush.bf16.msra.mxu0 %v292
    %724 = vmatpush.bf16.msra.mxu0 %v288
    %725 = vmatpush.bf16.msra.mxu0 %v284
    %726 = vmatmul.bf16.gmra.mxu0 %v690
    %v727 = vpop.f32.mrf.mxu0
    %v728 = vadd.f32 0.0, %v727
    %v729 = vpop.f32.mrf.mxu0
    %730 = vdwg.mxu0
    %731 = vmatpush.bf16.msra.mxu0 %v313
    %732 = vmatpush.bf16.msra.mxu0 %v309
    %733 = vmatpush.bf16.msra.mxu0 %v305
    %734 = vmatpush.bf16.msra.mxu0 %v301
    %735 = vmatpush.bf16.msra.mxu0 %v297
    %736 = vmatpush.bf16.msra.mxu0 %v293
    %737 = vmatpush.bf16.msra.mxu0 %v289
    %738 = vmatpush.bf16.msra.mxu0 %v285
    %739 = vmatmul.bf16.gmra.mxu0 %v690
    %v740 = vpop.f32.mrf.mxu0
    %v741 = vadd.f32 0.0, %v740
    %v742 = vpop.f32.mrf.mxu0
    %743 = vdwg.mxu0
    %v744 = vadd.f32 %v110, %v702
    %v745 = vadd.f32 %v124, %v715
    %v746 = vadd.f32 %v138, %v728
    %v747 = vadd.f32 %v152, %v741
    %v748 = vtanh.pop %v744
    %v749 = vtanh.pop %v745
    %v750 = vtanh.pop %v746
    %v751 = vtanh.pop %v747
    %v752 = vmul.f32 %v748, 0.5
    %v753 = vadd.f32 %v752, 0.5
    %v754 = vmul.f32 %v749, 0.5
    %v755 = vadd.f32 %v754, 0.5
    %v756 = vmul.f32 %v751, 0.5
    %v757 = vadd.f32 %v756, 0.5
    %v759 = vrot.slane %v684, 6
    %v761 = vmul.f32 %v755, %v759
    %v762 = vmul.f32 %v753, %v750
    %v763 = vadd.f32 %v761, %v762
    %v764 = vtanh.pop %v763
    %v765 = vmul.f32 %v757, %v764
    %766 = vst [vmem:[#allocation2 + $0x8] sm:$0x3] %v765
    %v767 = vpack.c.bf16 %v765, %v765
    %768 = vmatpush.bf16.msra.mxu0 %v310
    %769 = vmatpush.bf16.msra.mxu0 %v306
    %770 = vmatpush.bf16.msra.mxu0 %v302
    %771 = vmatpush.bf16.msra.mxu0 %v298
    %772 = vmatpush.bf16.msra.mxu0 %v294
    %773 = vmatpush.bf16.msra.mxu0 %v290
    %774 = vmatpush.bf16.msra.mxu0 %v286
    %775 = vmatpush.bf16.msra.mxu0 %v282
    %776 = vmatmul.bf16.gmra.mxu0 %v767
    %v777 = vpop.f32.mrf.mxu0
    %v778 = vadd.f32 0.0, %v777
    %v779 = vpop.f32.mrf.mxu0
    %780 = vdwg.mxu0
    %781 = vmatpush.bf16.msra.mxu0 %v311
    %782 = vmatpush.bf16.msra.mxu0 %v307
    %783 = vmatpush.bf16.msra.mxu0 %v303
    %784 = vmatpush.bf16.msra.mxu0 %v299
    %785 = vmatpush.bf16.msra.mxu0 %v295
    %786 = vmatpush.bf16.msra.mxu0 %v291
    %787 = vmatpush.bf16.msra.mxu0 %v287
    %788 = vmatpush.bf16.msra.mxu0 %v283
    %789 = vmatmul.bf16.gmra.mxu0 %v767
    %v790 = vpop.f32.mrf.mxu0
    %v791 = vadd.f32 0.0, %v790
    %v792 = vpop.f32.mrf.mxu0
    %793 = vdwg.mxu0
    %794 = vmatpush.bf16.msra.mxu0 %v312
    %795 = vmatpush.bf16.msra.mxu0 %v308
    %796 = vmatpush.bf16.msra.mxu0 %v304
    %797 = vmatpush.bf16.msra.mxu0 %v300
    %798 = vmatpush.bf16.msra.mxu0 %v296
    %799 = vmatpush.bf16.msra.mxu0 %v292
    %800 = vmatpush.bf16.msra.mxu0 %v288
    %801 = vmatpush.bf16.msra.mxu0 %v284
    %802 = vmatmul.bf16.gmra.mxu0 %v767
    %v803 = vpop.f32.mrf.mxu0
    %v804 = vadd.f32 0.0, %v803
    %v805 = vpop.f32.mrf.mxu0
    %806 = vdwg.mxu0
    %807 = vmatpush.bf16.msra.mxu0 %v313
    %808 = vmatpush.bf16.msra.mxu0 %v309
    %809 = vmatpush.bf16.msra.mxu0 %v305
    %810 = vmatpush.bf16.msra.mxu0 %v301
    %811 = vmatpush.bf16.msra.mxu0 %v297
    %812 = vmatpush.bf16.msra.mxu0 %v293
    %813 = vmatpush.bf16.msra.mxu0 %v289
    %814 = vmatpush.bf16.msra.mxu0 %v285
    %815 = vmatmul.bf16.gmra.mxu0 %v767
    %v816 = vpop.f32.mrf.mxu0
    %v817 = vadd.f32 0.0, %v816
    %v818 = vpop.f32.mrf.mxu0
    %819 = vdwg.mxu0
    %v824 = vrot.slane %v778, 6
    %v825 = vrot.slane %v791, 6
    %v826 = vrot.slane %v804, 6
    %v827 = vrot.slane %v817, 6
    %v832 = vadd.f32 %v110, %v824
    %v833 = vadd.f32 %v124, %v825
    %v834 = vadd.f32 %v138, %v826
    %v835 = vadd.f32 %v152, %v827
    %v836 = vtanh.pop %v832
    %v837 = vtanh.pop %v833
    %v838 = vtanh.pop %v834
    %v839 = vtanh.pop %v835
    %v840 = vmul.f32 %v836, 0.5
    %v841 = vadd.f32 %v840, 0.5
    %v842 = vmul.f32 %v837, 0.5
    %v843 = vadd.f32 %v842, 0.5
    %v844 = vmul.f32 %v839, 0.5
    %v845 = vadd.f32 %v844, 0.5
    %v847 = vrot.slane %v763, 6
    %v849 = vmul.f32 %v843, %v847
    %v850 = vmul.f32 %v841, %v838
    %v851 = vadd.f32 %v849, %v850
    %v852 = vtanh.pop %v851
    %v853 = vmul.f32 %v845, %v852
    %854 = vst [vmem:[#allocation2 + $0x8] sm:$0xc] %v853
    %v855 = vpack.c.bf16 %v853, %v853
    %v857 = vrot.slane %v855, 1
    %859 = vmatpush.bf16.msra.mxu0 %v310
    %860 = vmatpush.bf16.msra.mxu0 %v306
    %861 = vmatpush.bf16.msra.mxu0 %v302
    %862 = vmatpush.bf16.msra.mxu0 %v298
    %863 = vmatpush.bf16.msra.mxu0 %v294
    %864 = vmatpush.bf16.msra.mxu0 %v290
    %865 = vmatpush.bf16.msra.mxu0 %v286
    %866 = vmatpush.bf16.msra.mxu0 %v282
    %867 = vmatmul.bf16.gmra.mxu0 %v857
    %v868 = vpop.f32.mrf.mxu0
    %v869 = vadd.f32 0.0, %v868
    %v870 = vpop.f32.mrf.mxu0
    %871 = vdwg.mxu0
    %872 = vmatpush.bf16.msra.mxu0 %v311
    %873 = vmatpush.bf16.msra.mxu0 %v307
    %874 = vmatpush.bf16.msra.mxu0 %v303
    %875 = vmatpush.bf16.msra.mxu0 %v299
    %876 = vmatpush.bf16.msra.mxu0 %v295
    %877 = vmatpush.bf16.msra.mxu0 %v291
    %878 = vmatpush.bf16.msra.mxu0 %v287
    %879 = vmatpush.bf16.msra.mxu0 %v283
    %880 = vmatmul.bf16.gmra.mxu0 %v857
    %v881 = vpop.f32.mrf.mxu0
    %v882 = vadd.f32 0.0, %v881
    %v883 = vpop.f32.mrf.mxu0
    %884 = vdwg.mxu0
    %885 = vmatpush.bf16.msra.mxu0 %v312
    %886 = vmatpush.bf16.msra.mxu0 %v308
    %887 = vmatpush.bf16.msra.mxu0 %v304
    %888 = vmatpush.bf16.msra.mxu0 %v300
    %889 = vmatpush.bf16.msra.mxu0 %v296
    %890 = vmatpush.bf16.msra.mxu0 %v292
    %891 = vmatpush.bf16.msra.mxu0 %v288
    %892 = vmatpush.bf16.msra.mxu0 %v284
    %893 = vmatmul.bf16.gmra.mxu0 %v857
    %v894 = vpop.f32.mrf.mxu0
    %v895 = vadd.f32 0.0, %v894
    %v896 = vpop.f32.mrf.mxu0
    %897 = vdwg.mxu0
    %898 = vmatpush.bf16.msra.mxu0 %v313
    %899 = vmatpush.bf16.msra.mxu0 %v309
    %900 = vmatpush.bf16.msra.mxu0 %v305
    %901 = vmatpush.bf16.msra.mxu0 %v301
    %902 = vmatpush.bf16.msra.mxu0 %v297
    %903 = vmatpush.bf16.msra.mxu0 %v293
    %904 = vmatpush.bf16.msra.mxu0 %v289
    %905 = vmatpush.bf16.msra.mxu0 %v285
    %906 = vmatmul.bf16.gmra.mxu0 %v857
    %v907 = vpop.f32.mrf.mxu0
    %v908 = vadd.f32 0.0, %v907
    %v909 = vpop.f32.mrf.mxu0
    %910 = vdwg.mxu0
    %v915 = vrot.slane %v869, 4
    %v916 = vrot.slane %v882, 4
    %v917 = vrot.slane %v895, 4
    %v918 = vrot.slane %v908, 4
    %v923 = vadd.f32 %v110, %v915
    %v924 = vadd.f32 %v124, %v916
    %v925 = vadd.f32 %v138, %v917
    %v926 = vadd.f32 %v152, %v918
    %v927 = vtanh.pop %v923
    %v928 = vtanh.pop %v924
    %v929 = vtanh.pop %v925
    %v930 = vtanh.pop %v926
    %v931 = vmul.f32 %v927, 0.5
    %v932 = vadd.f32 %v931, 0.5
    %v933 = vmul.f32 %v928, 0.5
    %v934 = vadd.f32 %v933, 0.5
    %v935 = vmul.f32 %v930, 0.5
    %v936 = vadd.f32 %v935, 0.5
    %v938 = vrot.slane %v851, 6
    %v940 = vmul.f32 %v934, %v938
    %v941 = vmul.f32 %v932, %v929
    %v942 = vadd.f32 %v940, %v941
    %v943 = vtanh.pop %v942
    %v944 = vmul.f32 %v936, %v943
    %945 = vst [vmem:[#allocation2 + $0x8] sm:$0x30] %v944
    %v946 = vpack.c.bf16 %v944, %v944
    %v948 = vrot.slane %v946, 2
    %950 = vmatpush.bf16.msra.mxu0 %v310
    %951 = vmatpush.bf16.msra.mxu0 %v306
    %952 = vmatpush.bf16.msra.mxu0 %v302
    %953 = vmatpush.bf16.msra.mxu0 %v298
    %954 = vmatpush.bf16.msra.mxu0 %v294
    %955 = vmatpush.bf16.msra.mxu0 %v290
    %956 = vmatpush.bf16.msra.mxu0 %v286
    %957 = vmatpush.bf16.msra.mxu0 %v282
    %958 = vmatmul.bf16.gmra.mxu0 %v948
    %v959 = vpop.f32.mrf.mxu0
    %v960 = vadd.f32 0.0, %v959
    %v961 = vpop.f32.mrf.mxu0
    %962 = vdwg.mxu0
    %963 = vmatpush.bf16.msra.mxu0 %v311
    %964 = vmatpush.bf16.msra.mxu0 %v307
    %965 = vmatpush.bf16.msra.mxu0 %v303
    %966 = vmatpush.bf16.msra.mxu0 %v299
    %967 = vmatpush.bf16.msra.mxu0 %v295
    %968 = vmatpush.bf16.msra.mxu0 %v291
    %969 = vmatpush.bf16.msra.mxu0 %v287
    %970 = vmatpush.bf16.msra.mxu0 %v283
    %971 = vmatmul.bf16.gmra.mxu0 %v948
    %v972 = vpop.f32.mrf.mxu0
    %v973 = vadd.f32 0.0, %v972
    %v974 = vpop.f32.mrf.mxu0
    %975 = vdwg.mxu0
    %976 = vmatpush.bf16.msra.mxu0 %v312
    %977 = vmatpush.bf16.msra.mxu0 %v308
    %978 = vmatpush.bf16.msra.mxu0 %v304
    %979 = vmatpush.bf16.msra.mxu0 %v300
    %980 = vmatpush.bf16.msra.mxu0 %v296
    %981 = vmatpush.bf16.msra.mxu0 %v292
    %982 = vmatpush.bf16.msra.mxu0 %v288
    %983 = vmatpush.bf16.msra.mxu0 %v284
    %984 = vmatmul.bf16.gmra.mxu0 %v948
    %v985 = vpop.f32.mrf.mxu0
    %v986 = vadd.f32 0.0, %v985
    %v987 = vpop.f32.mrf.mxu0
    %988 = vdwg.mxu0
    %989 = vmatpush.bf16.msra.mxu0 %v313
    %990 = vmatpush.bf16.msra.mxu0 %v309
    %991 = vmatpush.bf16.msra.mxu0 %v305
    %992 = vmatpush.bf16.msra.mxu0 %v301
    %993 = vmatpush.bf16.msra.mxu0 %v297
    %994 = vmatpush.bf16.msra.mxu0 %v293
    %995 = vmatpush.bf16.msra.mxu0 %v289
    %996 = vmatpush.bf16.msra.mxu0 %v285
    %997 = vmatmul.bf16.gmra.mxu0 %v948
    %v998 = vpop.f32.mrf.mxu0
    %v999 = vadd.f32 0.0, %v998
    %v1000 = vpop.f32.mrf.mxu0
    %1001 = vdwg.mxu0
    %v1006 = vrot.slane %v960, 2
    %v1007 = vrot.slane %v973, 2
    %v1008 = vrot.slane %v986, 2
    %v1009 = vrot.slane %v999, 2
    %v1014 = vadd.f32 %v110, %v1006
    %v1015 = vadd.f32 %v124, %v1007
    %v1016 = vadd.f32 %v138, %v1008
    %v1017 = vadd.f32 %v152, %v1009
    %v1018 = vtanh.pop %v1014
    %v1019 = vtanh.pop %v1015
    %v1020 = vtanh.pop %v1016
    %v1021 = vtanh.pop %v1017
    %v1022 = vmul.f32 %v1018, 0.5
    %v1023 = vadd.f32 %v1022, 0.5
    %v1024 = vmul.f32 %v1019, 0.5
    %v1025 = vadd.f32 %v1024, 0.5
    %v1026 = vmul.f32 %v1021, 0.5
    %v1027 = vadd.f32 %v1026, 0.5
    %v1029 = vrot.slane %v942, 6
    %v1031 = vmul.f32 %v1025, %v1029
    %v1032 = vmul.f32 %v1023, %v1020
    %v1033 = vadd.f32 %v1031, %v1032
    %v1034 = vtanh.pop %v1033
    %v1035 = vmul.f32 %v1027, %v1034
    %1036 = vst [vmem:[#allocation2 + $0x8] sm:$0xc0] %v1035
    %v1037 = vld [vmem:[#allocation2] sm:$0xff]
    %v1038 = vld [vmem:[#allocation2 + $0x8] sm:$0xff]
    %v1039 = vpack.c.bf16 %v1038, %v1037
    %v1040 = vld [vmem:[%s4] sm:$0xf]
    %v1041 = vld [vmem:[%s4 + $0x4] sm:$0xf]
    %v1042 = vld [vmem:[%s4 + $0x8] sm:$0xf]
    %v1043 = vld [vmem:[%s4 + $0xc] sm:$0xf]
    %v1044 = vld [vmem:[%s4 + $0x10] sm:$0xf]
    %v1045 = vld [vmem:[%s4 + $0x14] sm:$0xf]
    %v1046 = vld [vmem:[%s4 + $0x18] sm:$0xf]
    %v1047 = vld [vmem:[%s4 + $0x1c] sm:$0xf]
    %v1048 = vld [vmem:[%s4 + $0x20] sm:$0xf]
    %v1049 = vld [vmem:[%s4 + $0x24] sm:$0xf]
    %v1050 = vld [vmem:[%s4 + $0x28] sm:$0xf]
    %v1051 = vld [vmem:[%s4 + $0x2c] sm:$0xf]
    %v1052 = vld [vmem:[%s4 + $0x30] sm:$0xf]
    %v1053 = vld [vmem:[%s4 + $0x34] sm:$0xf]
    %v1054 = vld [vmem:[%s4 + $0x38] sm:$0xf]
    %v1055 = vld [vmem:[%s4 + $0x3c] sm:$0xf]
    %v1056 = vld [vmem:[%s5] sm:$0x1]
    %v1058 = vperm.slane %v1056, 0
    %v1076 = vunpack.c.l.b16 %v1040
    %v1077 = vunpack.c.l.b16 %v1041
    %v1078 = vunpack.c.l.b16 %v1042
    %v1079 = vunpack.c.l.b16 %v1043
    %v1080 = vunpack.c.l.b16 %v1044
    %v1081 = vunpack.c.l.b16 %v1045
    %v1082 = vunpack.c.l.b16 %v1046
    %v1083 = vunpack.c.l.b16 %v1047
    %v1084 = vunpack.c.l.b16 %v1048
    %v1085 = vunpack.c.l.b16 %v1049
    %v1086 = vunpack.c.l.b16 %v1050
    %v1087 = vunpack.c.l.b16 %v1051
    %v1088 = vunpack.c.l.b16 %v1052
    %v1089 = vunpack.c.l.b16 %v1053
    %v1090 = vunpack.c.l.b16 %v1054
    %v1091 = vunpack.c.l.b16 %v1055
    %v1092 = vpack.c.b16 %v1077, %v1076
    %v1093 = vpack.c.b16 %v1079, %v1078
    %v1094 = vpack.c.b16 %v1081, %v1080
    %v1095 = vpack.c.b16 %v1083, %v1082
    %v1096 = vpack.c.b16 %v1085, %v1084
    %v1097 = vpack.c.b16 %v1087, %v1086
    %v1098 = vpack.c.b16 %v1089, %v1088
    %v1099 = vpack.c.b16 %v1091, %v1090
    %1108 = vmatpush.bf16.msra.mxu0 %v1099
    %1109 = vmatpush.bf16.msra.mxu0 %v1098
    %1110 = vmatpush.bf16.msra.mxu0 %v1097
    %1111 = vmatpush.bf16.msra.mxu0 %v1096
    %1112 = vmatpush.bf16.msra.mxu0 %v1095
    %1113 = vmatpush.bf16.msra.mxu0 %v1094
    %1114 = vmatpush.bf16.msra.mxu0 %v1093
    %1115 = vmatpush.bf16.msra.mxu0 %v1092
    %1116 = vmatmul.bf16.gmra.mxu0 %v1039
    %v1117 = vpop.f32.mrf.mxu0
    %v1118 = vadd.f32 %v1058, %v1117
    %v1119 = vpop.f32.mrf.mxu0
    %v1120 = vadd.f32 %v1058, %v1119
    %1121 = vdwg.mxu0
    %v1122 = vmax.f32 %v1118, 0.0
    %v1123 = vmax.f32 %v1120, 0.0
    %v1124 = vpack.c.bf16 %v1123, %v1122
    %v1125 = vld [vmem:[%s6] sm:$0xf]
    %v1126 = vld [vmem:[%s6 + $0x4] sm:$0xf]
    %v1127 = vld [vmem:[%s6 + $0x8] sm:$0xf]
    %v1128 = vld [vmem:[%s6 + $0xc] sm:$0xf]
    %v1129 = vld [vmem:[%s6 + $0x10] sm:$0xf]
    %v1130 = vld [vmem:[%s6 + $0x14] sm:$0xf]
    %v1131 = vld [vmem:[%s6 + $0x18] sm:$0xf]
    %v1132 = vld [vmem:[%s6 + $0x1c] sm:$0xf]
    %v1133 = vld [vmem:[%s7] sm:$0x1]
    %v1135 = vperm.slane %v1133, 0
    %v1145 = vunpack.c.l.b16 %v1125
    %v1146 = vunpack.c.l.b16 %v1126
    %v1147 = vunpack.c.l.b16 %v1127
    %v1148 = vunpack.c.l.b16 %v1128
    %v1149 = vunpack.c.l.b16 %v1129
    %v1150 = vunpack.c.l.b16 %v1130
    %v1151 = vunpack.c.l.b16 %v1131
    %v1152 = vunpack.c.l.b16 %v1132
    %v1153 = vpack.c.b16 %v1146, %v1145
    %v1154 = vpack.c.b16 %v1148, %v1147
    %v1155 = vpack.c.b16 %v1150, %v1149
    %v1156 = vpack.c.b16 %v1152, %v1151
    %vm1161 = vcmask 523264
    %v1163 = vsel %vm1161, %v1124, 0
    %1165 = vmatpush.bf16.msra.mxu0 0
    %1166 = vmatpush.bf16.msra.mxu0 0
    %1167 = vmatpush.bf16.msra.mxu0 0
    %1168 = vmatpush.bf16.msra.mxu0 0
    %1169 = vmatpush.bf16.msra.mxu0 %v1156
    %1170 = vmatpush.bf16.msra.mxu0 %v1155
    %1171 = vmatpush.bf16.msra.mxu0 %v1154
    %1172 = vmatpush.bf16.msra.mxu0 %v1153
    %1173 = vmatmul.bf16.gmra.mxu0 %v1163
    %v1174 = vpop.f32.mrf.mxu0
    %v1175 = vadd.f32 %v1135, %v1174
    %v1176 = vpop.f32.mrf.mxu0
    %v1177 = vadd.f32 %v1135, %v1176
    %1178 = vdwg.mxu0
    %v1179 = vpack.c.bf16 %v1035, %v1035
    %v1180 = vpack.c.bf16 %v1033, %v1033
    %v1181 = vld [vmem:[%s8] sm:$0xf]
    %v1182 = vld [vmem:[%s8 + $0x4] sm:$0xf]
    %v1183 = vld [vmem:[%s8 + $0x8] sm:$0xf]
    %v1184 = vld [vmem:[%s8 + $0xc] sm:$0xf]
    %v1185 = vld [vmem:[%s8 + $0x10] sm:$0xf]
    %v1186 = vld [vmem:[%s8 + $0x14] sm:$0xf]
    %v1187 = vld [vmem:[%s8 + $0x18] sm:$0xf]
    %v1188 = vld [vmem:[%s8 + $0x1c] sm:$0xf]
    %v1189 = vld [vmem:[%s8 + $0x20] sm:$0xf]
    %v1190 = vld [vmem:[%s8 + $0x24] sm:$0xf]
    %v1191 = vld [vmem:[%s8 + $0x28] sm:$0xf]
    %v1192 = vld [vmem:[%s8 + $0x2c] sm:$0xf]
    %v1193 = vld [vmem:[%s8 + $0x30] sm:$0xf]
    %v1194 = vld [vmem:[%s8 + $0x34] sm:$0xf]
    %v1195 = vld [vmem:[%s8 + $0x38] sm:$0xf]
    %v1196 = vld [vmem:[%s8 + $0x3c] sm:$0xf]
    %v1197 = vld [vmem:[%s8 + $0x40] sm:$0xf]
    %v1198 = vld [vmem:[%s8 + $0x44] sm:$0xf]
    %v1199 = vld [vmem:[%s8 + $0x48] sm:$0xf]
    %v1200 = vld [vmem:[%s8 + $0x4c] sm:$0xf]
    %v1201 = vld [vmem:[%s8 + $0x50] sm:$0xf]
    %v1202 = vld [vmem:[%s8 + $0x54] sm:$0xf]
    %v1203 = vld [vmem:[%s8 + $0x58] sm:$0xf]
    %v1204 = vld [vmem:[%s8 + $0x5c] sm:$0xf]
    %v1205 = vld [vmem:[%s8 + $0x60] sm:$0xf]
    %v1206 = vld [vmem:[%s8 + $0x64] sm:$0xf]
    %v1207 = vld [vmem:[%s8 + $0x68] sm:$0xf]
    %v1208 = vld [vmem:[%s8 + $0x6c] sm:$0xf]
    %v1209 = vld [vmem:[%s8 + $0x70] sm:$0xf]
    %v1210 = vld [vmem:[%s8 + $0x74] sm:$0xf]
    %v1211 = vld [vmem:[%s8 + $0x78] sm:$0xf]
    %v1212 = vld [vmem:[%s8 + $0x7c] sm:$0xf]
    %v1213 = vld [vmem:[%s9] sm:$0x1]
    %v1215 = vperm.slane %v1213, 0
    %v1219 = vrot.slane %v1179, 3
    %v1220 = vrot.slane %v1180, 3
    %v1255 = vunpack.c.l.b16 %v1181
    %v1256 = vunpack.c.l.b16 %v1182
    %v1257 = vunpack.c.l.b16 %v1183
    %v1258 = vunpack.c.l.b16 %v1184
    %v1259 = vunpack.c.l.b16 %v1185
    %v1260 = vunpack.c.l.b16 %v1186
    %v1261 = vunpack.c.l.b16 %v1187
    %v1262 = vunpack.c.l.b16 %v1188
    %v1263 = vunpack.c.l.b16 %v1189
    %v1264 = vunpack.c.l.b16 %v1190
    %v1265 = vunpack.c.l.b16 %v1191
    %v1266 = vunpack.c.l.b16 %v1192
    %v1267 = vunpack.c.l.b16 %v1193
    %v1268 = vunpack.c.l.b16 %v1194
    %v1269 = vunpack.c.l.b16 %v1195
    %v1270 = vunpack.c.l.b16 %v1196
    %v1271 = vunpack.c.l.b16 %v1197
    %v1272 = vunpack.c.l.b16 %v1198
    %v1273 = vunpack.c.l.b16 %v1199
    %v1274 = vunpack.c.l.b16 %v1200
    %v1275 = vunpack.c.l.b16 %v1201
    %v1276 = vunpack.c.l.b16 %v1202
    %v1277 = vunpack.c.l.b16 %v1203
    %v1278 = vunpack.c.l.b16 %v1204
    %v1279 = vunpack.c.l.b16 %v1205
    %v1280 = vunpack.c.l.b16 %v1206
    %v1281 = vunpack.c.l.b16 %v1207
    %v1282 = vunpack.c.l.b16 %v1208
    %v1283 = vunpack.c.l.b16 %v1209
    %v1284 = vunpack.c.l.b16 %v1210
    %v1285 = vunpack.c.l.b16 %v1211
    %v1286 = vunpack.c.l.b16 %v1212
    %v1287 = vpack.c.b16 %v1256, %v1255
    %v1288 = vpack.c.b16 %v1258, %v1257
    %v1289 = vpack.c.b16 %v1260, %v1259
    %v1290 = vpack.c.b16 %v1262, %v1261
    %v1291 = vpack.c.b16 %v1264, %v1263
    %v1292 = vpack.c.b16 %v1266, %v1265
    %v1293 = vpack.c.b16 %v1268, %v1267
    %v1294 = vpack.c.b16 %v1270, %v1269
    %v1295 = vpack.c.b16 %v1272, %v1271
    %v1296 = vpack.c.b16 %v1274, %v1273
    %v1297 = vpack.c.b16 %v1276, %v1275
    %v1298 = vpack.c.b16 %v1278, %v1277
    %v1299 = vpack.c.b16 %v1280, %v1279
    %v1300 = vpack.c.b16 %v1282, %v1281
    %v1301 = vpack.c.b16 %v1284, %v1283
    %v1302 = vpack.c.b16 %v1286, %v1285
    %1319 = vmatpush.bf16.msra.mxu0 %v1294
    %1320 = vmatpush.bf16.msra.mxu0 %v1293
    %1321 = vmatpush.bf16.msra.mxu0 %v1292
    %1322 = vmatpush.bf16.msra.mxu0 %v1291
    %1323 = vmatpush.bf16.msra.mxu0 %v1290
    %1324 = vmatpush.bf16.msra.mxu0 %v1289
    %1325 = vmatpush.bf16.msra.mxu0 %v1288
    %1326 = vmatpush.bf16.msra.mxu0 %v1287
    %1327 = vmatmul.bf16.gmra.mxu0 %v1219
    %v1328 = vpop.f32.mrf.mxu0
    %v1329 = vadd.f32 %v1215, %v1328
    %v1330 = vpop.f32.mrf.mxu0
    %1331 = vdwg.mxu0
    %1332 = vmatpush.bf16.msra.mxu0 %v1302
    %1333 = vmatpush.bf16.msra.mxu0 %v1301
    %1334 = vmatpush.bf16.msra.mxu0 %v1300
    %1335 = vmatpush.bf16.msra.mxu0 %v1299
    %1336 = vmatpush.bf16.msra.mxu0 %v1298
    %1337 = vmatpush.bf16.msra.mxu0 %v1297
    %1338 = vmatpush.bf16.msra.mxu0 %v1296
    %1339 = vmatpush.bf16.msra.mxu0 %v1295
    %1340 = vmatmul.bf16.gmra.mxu0 %v1220
    %v1341 = vpop.f32.mrf.mxu0
    %v1342 = vadd.f32 %v1329, %v1341
    %v1343 = vpop.f32.mrf.mxu0
    %1344 = vdwg.mxu0
    %v1345 = vmax.f32 %v1342, 0.0
    %v1346 = vpack.c.bf16 %v1345, %v1345
    %v1347 = vld [vmem:[%s10] sm:$0xff]
    %v1348 = vld [vmem:[%s10 + $0x8] sm:$0xff]
    %v1349 = vld [vmem:[%s10 + $0x10] sm:$0xff]
    %v1350 = vld [vmem:[%s10 + $0x18] sm:$0xff]
    %v1351 = vld [vmem:[%s10 + $0x20] sm:$0xff]
    %v1352 = vld [vmem:[%s10 + $0x28] sm:$0xff]
    %v1353 = vld [vmem:[%s10 + $0x30] sm:$0xff]
    %v1354 = vld [vmem:[%s10 + $0x38] sm:$0xff]
    %v1355 = vld [vmem:[%s10 + $0x40] sm:$0xff]
    %v1356 = vld [vmem:[%s10 + $0x48] sm:$0xff]
    %v1357 = vld [vmem:[%s10 + $0x50] sm:$0xff]
    %v1358 = vld [vmem:[%s10 + $0x58] sm:$0xff]
    %v1359 = vld [vmem:[%s10 + $0x60] sm:$0xff]
    %v1360 = vld [vmem:[%s10 + $0x68] sm:$0xff]
    %v1361 = vld [vmem:[%s10 + $0x70] sm:$0xff]
    %v1362 = vld [vmem:[%s10 + $0x78] sm:$0xff]
    %v1363 = vld [vmem:[%s11] sm:$0x3]
    %v1365 = vperm.slane %v1363, 0
    %v1366 = vperm.slane %v1363, 1
    %v1385 = vunpack.c.l.b16 %v1347
    %v1386 = vunpack.c.h.b16 %v1347
    %v1387 = vunpack.c.l.b16 %v1348
    %v1388 = vunpack.c.h.b16 %v1348
    %v1389 = vunpack.c.l.b16 %v1349
    %v1390 = vunpack.c.h.b16 %v1349
    %v1391 = vunpack.c.l.b16 %v1350
    %v1392 = vunpack.c.h.b16 %v1350
    %v1393 = vunpack.c.l.b16 %v1351
    %v1394 = vunpack.c.h.b16 %v1351
    %v1395 = vunpack.c.l.b16 %v1352
    %v1396 = vunpack.c.h.b16 %v1352
    %v1397 = vunpack.c.l.b16 %v1353
    %v1398 = vunpack.c.h.b16 %v1353
    %v1399 = vunpack.c.l.b16 %v1354
    %v1400 = vunpack.c.h.b16 %v1354
    %v1401 = vunpack.c.l.b16 %v1355
    %v1402 = vunpack.c.h.b16 %v1355
    %v1403 = vunpack.c.l.b16 %v1356
    %v1404 = vunpack.c.h.b16 %v1356
    %v1405 = vunpack.c.l.b16 %v1357
    %v1406 = vunpack.c.h.b16 %v1357
    %v1407 = vunpack.c.l.b16 %v1358
    %v1408 = vunpack.c.h.b16 %v1358
    %v1409 = vunpack.c.l.b16 %v1359
    %v1410 = vunpack.c.h.b16 %v1359
    %v1411 = vunpack.c.l.b16 %v1360
    %v1412 = vunpack.c.h.b16 %v1360
    %v1413 = vunpack.c.l.b16 %v1361
    %v1414 = vunpack.c.h.b16 %v1361
    %v1415 = vunpack.c.l.b16 %v1362
    %v1416 = vunpack.c.h.b16 %v1362
    %v1417 = vpack.c.b16 %v1387, %v1385
    %v1418 = vpack.c.b16 %v1388, %v1386
    %v1419 = vpack.c.b16 %v1391, %v1389
    %v1420 = vpack.c.b16 %v1392, %v1390
    %v1421 = vpack.c.b16 %v1395, %v1393
    %v1422 = vpack.c.b16 %v1396, %v1394
    %v1423 = vpack.c.b16 %v1399, %v1397
    %v1424 = vpack.c.b16 %v1400, %v1398
    %v1425 = vpack.c.b16 %v1403, %v1401
    %v1426 = vpack.c.b16 %v1404, %v1402
    %v1427 = vpack.c.b16 %v1407, %v1405
    %v1428 = vpack.c.b16 %v1408, %v1406
    %v1429 = vpack.c.b16 %v1411, %v1409
    %v1430 = vpack.c.b16 %v1412, %v1410
    %v1431 = vpack.c.b16 %v1415, %v1413
    %v1432 = vpack.c.b16 %v1416, %v1414
    %1449 = vmatpush.bf16.msra.mxu0 %v1431
    %1450 = vmatpush.bf16.msra.mxu0 %v1429
    %1451 = vmatpush.bf16.msra.mxu0 %v1427
    %1452 = vmatpush.bf16.msra.mxu0 %v1425
    %1453 = vmatpush.bf16.msra.mxu0 %v1423
    %1454 = vmatpush.bf16.msra.mxu0 %v1421
    %1455 = vmatpush.bf16.msra.mxu0 %v1419
    %1456 = vmatpush.bf16.msra.mxu0 %v1417
    %1457 = vmatmul.bf16.gmra.mxu0 %v1346
    %v1458 = vpop.f32.mrf.mxu0
    %v1459 = vadd.f32 %v1365, %v1458
    %v1460 = vpop.f32.mrf.mxu0
    %1461 = vdwg.mxu0
    %1462 = vmatpush.bf16.msra.mxu0 %v1432
    %1463 = vmatpush.bf16.msra.mxu0 %v1430
    %1464 = vmatpush.bf16.msra.mxu0 %v1428
    %1465 = vmatpush.bf16.msra.mxu0 %v1426
    %1466 = vmatpush.bf16.msra.mxu0 %v1424
    %1467 = vmatpush.bf16.msra.mxu0 %v1422
    %1468 = vmatpush.bf16.msra.mxu0 %v1420
    %1469 = vmatpush.bf16.msra.mxu0 %v1418
    %1470 = vmatmul.bf16.gmra.mxu0 %v1346
    %v1471 = vpop.f32.mrf.mxu0
    %v1472 = vadd.f32 %v1366, %v1471
    %v1473 = vpop.f32.mrf.mxu0
    %1474 = vdwg.mxu0
    %v1475 = vpack.c.bf16 %v1177, %v1175
    %v1476 = vld [vmem:[%s12] sm:$0xff]
    %v1477 = vld [vmem:[%s12 + $0x8] sm:$0xff]
    %v1478 = vld [vmem:[%s12 + $0x10] sm:$0xff]
    %v1479 = vld [vmem:[%s12 + $0x18] sm:$0xff]
    %v1480 = vld [vmem:[%s12 + $0x20] sm:$0xff]
    %v1481 = vld [vmem:[%s12 + $0x28] sm:$0xff]
    %v1482 = vld [vmem:[%s12 + $0x30] sm:$0xff]
    %v1483 = vld [vmem:[%s12 + $0x38] sm:$0xff]
    %v1484 = vld [vmem:[%s12 + $0x40] sm:$0xff]
    %v1485 = vld [vmem:[%s12 + $0x48] sm:$0xff]
    %v1486 = vld [vmem:[%s12 + $0x50] sm:$0xff]
    %v1487 = vld [vmem:[%s12 + $0x58] sm:$0xff]
    %v1488 = vld [vmem:[%s12 + $0x60] sm:$0xff]
    %v1489 = vld [vmem:[%s12 + $0x68] sm:$0xff]
    %v1490 = vld [vmem:[%s12 + $0x70] sm:$0xff]
    %v1491 = vld [vmem:[%s12 + $0x78] sm:$0xff]
    %v1492 = vld [vmem:[%s12 + $0x80] sm:$0xff]
    %v1493 = vld [vmem:[%s12 + $0x88] sm:$0xff]
    %v1494 = vld [vmem:[%s12 + $0x90] sm:$0xff]
    %v1495 = vld [vmem:[%s12 + $0x98] sm:$0xff]
    %v1496 = vld [vmem:[%s12 + $0xa0] sm:$0xff]
    %v1497 = vld [vmem:[%s12 + $0xa8] sm:$0xff]
    %v1498 = vld [vmem:[%s12 + $0xb0] sm:$0xff]
    %v1499 = vld [vmem:[%s12 + $0xb8] sm:$0xff]
    %v1500 = vld [vmem:[%s12 + $0xc0] sm:$0xff]
    %v1501 = vld [vmem:[%s12 + $0xc8] sm:$0xff]
    %v1502 = vld [vmem:[%s12 + $0xd0] sm:$0xff]
    %v1503 = vld [vmem:[%s12 + $0xd8] sm:$0xff]
    %v1504 = vld [vmem:[%s12 + $0xe0] sm:$0xff]
    %v1505 = vld [vmem:[%s12 + $0xe8] sm:$0xff]
    %v1506 = vld [vmem:[%s12 + $0xf0] sm:$0xff]
    %v1507 = vld [vmem:[%s12 + $0xf8] sm:$0xff]
    %v1508 = vld [vmem:[%s14] sm:$0xf]
    %v1510 = vperm.slane %v1508, 0
    %v1511 = vperm.slane %v1508, 1
    %v1512 = vperm.slane %v1508, 2
    %v1513 = vperm.slane %v1508, 3
    %v1550 = vunpack.c.l.b16 %v1476
    %v1551 = vunpack.c.h.b16 %v1476
    %v1552 = vunpack.c.l.b16 %v1477
    %v1553 = vunpack.c.h.b16 %v1477
    %v1554 = vunpack.c.l.b16 %v1478
    %v1555 = vunpack.c.h.b16 %v1478
    %v1556 = vunpack.c.l.b16 %v1479
    %v1557 = vunpack.c.h.b16 %v1479
    %v1558 = vunpack.c.l.b16 %v1480
    %v1559 = vunpack.c.h.b16 %v1480
    %v1560 = vunpack.c.l.b16 %v1481
    %v1561 = vunpack.c.h.b16 %v1481
    %v1562 = vunpack.c.l.b16 %v1482
    %v1563 = vunpack.c.h.b16 %v1482
    %v1564 = vunpack.c.l.b16 %v1483
    %v1565 = vunpack.c.h.b16 %v1483
    %v1566 = vunpack.c.l.b16 %v1484
    %v1567 = vunpack.c.h.b16 %v1484
    %v1568 = vunpack.c.l.b16 %v1485
    %v1569 = vunpack.c.h.b16 %v1485
    %v1570 = vunpack.c.l.b16 %v1486
    %v1571 = vunpack.c.h.b16 %v1486
    %v1572 = vunpack.c.l.b16 %v1487
    %v1573 = vunpack.c.h.b16 %v1487
    %v1574 = vunpack.c.l.b16 %v1488
    %v1575 = vunpack.c.h.b16 %v1488
    %v1576 = vunpack.c.l.b16 %v1489
    %v1577 = vunpack.c.h.b16 %v1489
    %v1578 = vunpack.c.l.b16 %v1490
    %v1579 = vunpack.c.h.b16 %v1490
    %v1580 = vunpack.c.l.b16 %v1491
    %v1581 = vunpack.c.h.b16 %v1491
    %v1582 = vunpack.c.l.b16 %v1492
    %v1583 = vunpack.c.h.b16 %v1492
    %v1584 = vunpack.c.l.b16 %v1493
    %v1585 = vunpack.c.h.b16 %v1493
    %v1586 = vunpack.c.l.b16 %v1494
    %v1587 = vunpack.c.h.b16 %v1494
    %v1588 = vunpack.c.l.b16 %v1495
    %v1589 = vunpack.c.h.b16 %v1495
    %v1590 = vunpack.c.l.b16 %v1496
    %v1591 = vunpack.c.h.b16 %v1496
    %v1592 = vunpack.c.l.b16 %v1497
    %v1593 = vunpack.c.h.b16 %v1497
    %v1594 = vunpack.c.l.b16 %v1498
    %v1595 = vunpack.c.h.b16 %v1498
    %v1596 = vunpack.c.l.b16 %v1499
    %v1597 = vunpack.c.h.b16 %v1499
    %v1598 = vunpack.c.l.b16 %v1500
    %v1599 = vunpack.c.h.b16 %v1500
    %v1600 = vunpack.c.l.b16 %v1501
    %v1601 = vunpack.c.h.b16 %v1501
    %v1602 = vunpack.c.l.b16 %v1502
    %v1603 = vunpack.c.h.b16 %v1502
    %v1604 = vunpack.c.l.b16 %v1503
    %v1605 = vunpack.c.h.b16 %v1503
    %v1606 = vunpack.c.l.b16 %v1504
    %v1607 = vunpack.c.h.b16 %v1504
    %v1608 = vunpack.c.l.b16 %v1505
    %v1609 = vunpack.c.h.b16 %v1505
    %v1610 = vunpack.c.l.b16 %v1506
    %v1611 = vunpack.c.h.b16 %v1506
    %v1612 = vunpack.c.l.b16 %v1507
    %v1613 = vunpack.c.h.b16 %v1507
    %v1614 = vpack.c.b16 %v1554, %v1550
    %v1615 = vpack.c.b16 %v1555, %v1551
    %v1616 = vpack.c.b16 %v1556, %v1552
    %v1617 = vpack.c.b16 %v1557, %v1553
    %v1618 = vpack.c.b16 %v1562, %v1558
    %v1619 = vpack.c.b16 %v1563, %v1559
    %v1620 = vpack.c.b16 %v1564, %v1560
    %v1621 = vpack.c.b16 %v1565, %v1561
    %v1622 = vpack.c.b16 %v1570, %v1566
    %v1623 = vpack.c.b16 %v1571, %v1567
    %v1624 = vpack.c.b16 %v1572, %v1568
    %v1625 = vpack.c.b16 %v1573, %v1569
    %v1626 = vpack.c.b16 %v1578, %v1574
    %v1627 = vpack.c.b16 %v1579, %v1575
    %v1628 = vpack.c.b16 %v1580, %v1576
    %v1629 = vpack.c.b16 %v1581, %v1577
    %v1630 = vpack.c.b16 %v1586, %v1582
    %v1631 = vpack.c.b16 %v1587, %v1583
    %v1632 = vpack.c.b16 %v1588, %v1584
    %v1633 = vpack.c.b16 %v1589, %v1585
    %v1634 = vpack.c.b16 %v1594, %v1590
    %v1635 = vpack.c.b16 %v1595, %v1591
    %v1636 = vpack.c.b16 %v1596, %v1592
    %v1637 = vpack.c.b16 %v1597, %v1593
    %v1638 = vpack.c.b16 %v1602, %v1598
    %v1639 = vpack.c.b16 %v1603, %v1599
    %v1640 = vpack.c.b16 %v1604, %v1600
    %v1641 = vpack.c.b16 %v1605, %v1601
    %v1642 = vpack.c.b16 %v1610, %v1606
    %v1643 = vpack.c.b16 %v1611, %v1607
    %v1644 = vpack.c.b16 %v1612, %v1608
    %v1645 = vpack.c.b16 %v1613, %v1609
    %1678 = vmatpush.bf16.msra.mxu0 %v1642
    %1679 = vmatpush.bf16.msra.mxu0 %v1638
    %1680 = vmatpush.bf16.msra.mxu0 %v1634
    %1681 = vmatpush.bf16.msra.mxu0 %v1630
    %1682 = vmatpush.bf16.msra.mxu0 %v1626
    %1683 = vmatpush.bf16.msra.mxu0 %v1622
    %1684 = vmatpush.bf16.msra.mxu0 %v1618
    %1685 = vmatpush.bf16.msra.mxu0 %v1614
    %1686 = vmatmul.bf16.gmra.mxu0 %v1475
    %v1687 = vpop.f32.mrf.mxu0
    %v1688 = vadd.f32 %v1510, %v1687
    %v1689 = vpop.f32.mrf.mxu0
    %v1690 = vadd.f32 %v1510, %v1689
    %1691 = vdwg.mxu0
    %1692 = vmatpush.bf16.msra.mxu0 %v1643
    %1693 = vmatpush.bf16.msra.mxu0 %v1639
    %1694 = vmatpush.bf16.msra.mxu0 %v1635
    %1695 = vmatpush.bf16.msra.mxu0 %v1631
    %1696 = vmatpush.bf16.msra.mxu0 %v1627
    %1697 = vmatpush.bf16.msra.mxu0 %v1623
    %1698 = vmatpush.bf16.msra.mxu0 %v1619
    %1699 = vmatpush.bf16.msra.mxu0 %v1615
    %1700 = vmatmul.bf16.gmra.mxu0 %v1475
    %v1701 = vpop.f32.mrf.mxu0
    %v1702 = vadd.f32 %v1511, %v1701
    %v1703 = vpop.f32.mrf.mxu0
    %v1704 = vadd.f32 %v1511, %v1703
    %1705 = vdwg.mxu0
    %1706 = vmatpush.bf16.msra.mxu0 %v1644
    %1707 = vmatpush.bf16.msra.mxu0 %v1640
    %1708 = vmatpush.bf16.msra.mxu0 %v1636
    %1709 = vmatpush.bf16.msra.mxu0 %v1632
    %1710 = vmatpush.bf16.msra.mxu0 %v1628
    %1711 = vmatpush.bf16.msra.mxu0 %v1624
    %1712 = vmatpush.bf16.msra.mxu0 %v1620
    %1713 = vmatpush.bf16.msra.mxu0 %v1616
    %1714 = vmatmul.bf16.gmra.mxu0 %v1475
    %v1715 = vpop.f32.mrf.mxu0
    %v1716 = vadd.f32 %v1512, %v1715
    %v1717 = vpop.f32.mrf.mxu0
    %v1718 = vadd.f32 %v1512, %v1717
    %1719 = vdwg.mxu0
    %1720 = vmatpush.bf16.msra.mxu0 %v1645
    %1721 = vmatpush.bf16.msra.mxu0 %v1641
    %1722 = vmatpush.bf16.msra.mxu0 %v1637
    %1723 = vmatpush.bf16.msra.mxu0 %v1633
    %1724 = vmatpush.bf16.msra.mxu0 %v1629
    %1725 = vmatpush.bf16.msra.mxu0 %v1625
    %1726 = vmatpush.bf16.msra.mxu0 %v1621
    %1727 = vmatpush.bf16.msra.mxu0 %v1617
    %1728 = vmatmul.bf16.gmra.mxu0 %v1475
    %v1729 = vpop.f32.mrf.mxu0
    %v1730 = vadd.f32 %v1513, %v1729
    %v1731 = vpop.f32.mrf.mxu0
    %v1732 = vadd.f32 %v1513, %v1731
    %1733 = vdwg.mxu0
    %v1734 = vld [vmem:[%s13] sm:$0xff]
    %v1735 = vld [vmem:[%s13 + $0x8] sm:$0xff]
    %v1736 = vld [vmem:[%s13 + $0x10] sm:$0xff]
    %v1737 = vld [vmem:[%s13 + $0x18] sm:$0xff]
    %v1738 = vld [vmem:[%s13 + $0x20] sm:$0xff]
    %v1739 = vld [vmem:[%s13 + $0x28] sm:$0xff]
    %v1740 = vld [vmem:[%s13 + $0x30] sm:$0xff]
    %v1741 = vld [vmem:[%s13 + $0x38] sm:$0xff]
    %v1742 = vld [vmem:[%s13 + $0x40] sm:$0xff]
    %v1743 = vld [vmem:[%s13 + $0x48] sm:$0xff]
    %v1744 = vld [vmem:[%s13 + $0x50] sm:$0xff]
    %v1745 = vld [vmem:[%s13 + $0x58] sm:$0xff]
    %v1746 = vld [vmem:[%s13 + $0x60] sm:$0xff]
    %v1747 = vld [vmem:[%s13 + $0x68] sm:$0xff]
    %v1748 = vld [vmem:[%s13 + $0x70] sm:$0xff]
    %v1749 = vld [vmem:[%s13 + $0x78] sm:$0xff]
    %v1750 = vld [vmem:[%s13 + $0x80] sm:$0xff]
    %v1751 = vld [vmem:[%s13 + $0x88] sm:$0xff]
    %v1752 = vld [vmem:[%s13 + $0x90] sm:$0xff]
    %v1753 = vld [vmem:[%s13 + $0x98] sm:$0xff]
    %v1754 = vld [vmem:[%s13 + $0xa0] sm:$0xff]
    %v1755 = vld [vmem:[%s13 + $0xa8] sm:$0xff]
    %v1756 = vld [vmem:[%s13 + $0xb0] sm:$0xff]
    %v1757 = vld [vmem:[%s13 + $0xb8] sm:$0xff]
    %v1758 = vld [vmem:[%s13 + $0xc0] sm:$0xff]
    %v1759 = vld [vmem:[%s13 + $0xc8] sm:$0xff]
    %v1760 = vld [vmem:[%s13 + $0xd0] sm:$0xff]
    %v1761 = vld [vmem:[%s13 + $0xd8] sm:$0xff]
    %v1762 = vld [vmem:[%s13 + $0xe0] sm:$0xff]
    %v1763 = vld [vmem:[%s13 + $0xe8] sm:$0xff]
    %v1764 = vld [vmem:[%s13 + $0xf0] sm:$0xff]
    %v1765 = vld [vmem:[%s13 + $0xf8] sm:$0xff]
    %v1766 = vpack.c.bf16 %v1459, %v1459
    %v1799 = vunpack.c.l.b16 %v1734
    %v1800 = vunpack.c.h.b16 %v1734
    %v1801 = vunpack.c.l.b16 %v1735
    %v1802 = vunpack.c.h.b16 %v1735
    %v1803 = vunpack.c.l.b16 %v1736
    %v1804 = vunpack.c.h.b16 %v1736
    %v1805 = vunpack.c.l.b16 %v1737
    %v1806 = vunpack.c.h.b16 %v1737
    %v1807 = vunpack.c.l.b16 %v1738
    %v1808 = vunpack.c.h.b16 %v1738
    %v1809 = vunpack.c.l.b16 %v1739
    %v1810 = vunpack.c.h.b16 %v1739
    %v1811 = vunpack.c.l.b16 %v1740
    %v1812 = vunpack.c.h.b16 %v1740
    %v1813 = vunpack.c.l.b16 %v1741
    %v1814 = vunpack.c.h.b16 %v1741
    %v1815 = vunpack.c.l.b16 %v1742
    %v1816 = vunpack.c.h.b16 %v1742
    %v1817 = vunpack.c.l.b16 %v1743
    %v1818 = vunpack.c.h.b16 %v1743
    %v1819 = vunpack.c.l.b16 %v1744
    %v1820 = vunpack.c.h.b16 %v1744
    %v1821 = vunpack.c.l.b16 %v1745
    %v1822 = vunpack.c.h.b16 %v1745
    %v1823 = vunpack.c.l.b16 %v1746
    %v1824 = vunpack.c.h.b16 %v1746
    %v1825 = vunpack.c.l.b16 %v1747
    %v1826 = vunpack.c.h.b16 %v1747
    %v1827 = vunpack.c.l.b16 %v1748
    %v1828 = vunpack.c.h.b16 %v1748
    %v1829 = vunpack.c.l.b16 %v1749
    %v1830 = vunpack.c.h.b16 %v1749
    %v1831 = vunpack.c.l.b16 %v1750
    %v1832 = vunpack.c.h.b16 %v1750
    %v1833 = vunpack.c.l.b16 %v1751
    %v1834 = vunpack.c.h.b16 %v1751
    %v1835 = vunpack.c.l.b16 %v1752
    %v1836 = vunpack.c.h.b16 %v1752
    %v1837 = vunpack.c.l.b16 %v1753
    %v1838 = vunpack.c.h.b16 %v1753
    %v1839 = vunpack.c.l.b16 %v1754
    %v1840 = vunpack.c.h.b16 %v1754
    %v1841 = vunpack.c.l.b16 %v1755
    %v1842 = vunpack.c.h.b16 %v1755
    %v1843 = vunpack.c.l.b16 %v1756
    %v1844 = vunpack.c.h.b16 %v1756
    %v1845 = vunpack.c.l.b16 %v1757
    %v1846 = vunpack.c.h.b16 %v1757
    %v1847 = vunpack.c.l.b16 %v1758
    %v1848 = vunpack.c.h.b16 %v1758
    %v1849 = vunpack.c.l.b16 %v1759
    %v1850 = vunpack.c.h.b16 %v1759
    %v1851 = vunpack.c.l.b16 %v1760
    %v1852 = vunpack.c.h.b16 %v1760
    %v1853 = vunpack.c.l.b16 %v1761
    %v1854 = vunpack.c.h.b16 %v1761
    %v1855 = vunpack.c.l.b16 %v1762
    %v1856 = vunpack.c.h.b16 %v1762
    %v1857 = vunpack.c.l.b16 %v1763
    %v1858 = vunpack.c.h.b16 %v1763
    %v1859 = vunpack.c.l.b16 %v1764
    %v1860 = vunpack.c.h.b16 %v1764
    %v1861 = vunpack.c.l.b16 %v1765
    %v1862 = vunpack.c.h.b16 %v1765
    %v1863 = vpack.c.b16 %v1803, %v1799
    %v1864 = vpack.c.b16 %v1804, %v1800
    %v1865 = vpack.c.b16 %v1805, %v1801
    %v1866 = vpack.c.b16 %v1806, %v1802
    %v1867 = vpack.c.b16 %v1811, %v1807
    %v1868 = vpack.c.b16 %v1812, %v1808
    %v1869 = vpack.c.b16 %v1813, %v1809
    %v1870 = vpack.c.b16 %v1814, %v1810
    %v1871 = vpack.c.b16 %v1819, %v1815
    %v1872 = vpack.c.b16 %v1820, %v1816
    %v1873 = vpack.c.b16 %v1821, %v1817
    %v1874 = vpack.c.b16 %v1822, %v1818
    %v1875 = vpack.c.b16 %v1827, %v1823
    %v1876 = vpack.c.b16 %v1828, %v1824
    %v1877 = vpack.c.b16 %v1829, %v1825
    %v1878 = vpack.c.b16 %v1830, %v1826
    %v1879 = vpack.c.b16 %v1835, %v1831
    %v1880 = vpack.c.b16 %v1836, %v1832
    %v1881 = vpack.c.b16 %v1837, %v1833
    %v1882 = vpack.c.b16 %v1838, %v1834
    %v1883 = vpack.c.b16 %v1843, %v1839
    %v1884 = vpack.c.b16 %v1844, %v1840
    %v1885 = vpack.c.b16 %v1845, %v1841
    %v1886 = vpack.c.b16 %v1846, %v1842
    %v1887 = vpack.c.b16 %v1851, %v1847
    %v1888 = vpack.c.b16 %v1852, %v1848
    %v1889 = vpack.c.b16 %v1853, %v1849
    %v1890 = vpack.c.b16 %v1854, %v1850
    %v1891 = vpack.c.b16 %v1859, %v1855
    %v1892 = vpack.c.b16 %v1860, %v1856
    %v1893 = vpack.c.b16 %v1861, %v1857
    %v1894 = vpack.c.b16 %v1862, %v1858
    %1927 = vmatpush.bf16.msra.mxu0 %v1891
    %1928 = vmatpush.bf16.msra.mxu0 %v1887
    %1929 = vmatpush.bf16.msra.mxu0 %v1883
    %1930 = vmatpush.bf16.msra.mxu0 %v1879
    %1931 = vmatpush.bf16.msra.mxu0 %v1875
    %1932 = vmatpush.bf16.msra.mxu0 %v1871
    %1933 = vmatpush.bf16.msra.mxu0 %v1867
    %1934 = vmatpush.bf16.msra.mxu0 %v1863
    %1935 = vmatmul.bf16.gmra.mxu0 %v1766
    %v1936 = vpop.f32.mrf.mxu0
    %v1937 = vadd.f32 0.0, %v1936
    %v1938 = vpop.f32.mrf.mxu0
    %1939 = vdwg.mxu0
    %1940 = vmatpush.bf16.msra.mxu0 %v1892
    %1941 = vmatpush.bf16.msra.mxu0 %v1888
    %1942 = vmatpush.bf16.msra.mxu0 %v1884
    %1943 = vmatpush.bf16.msra.mxu0 %v1880
    %1944 = vmatpush.bf16.msra.mxu0 %v1876
    %1945 = vmatpush.bf16.msra.mxu0 %v1872
    %1946 = vmatpush.bf16.msra.mxu0 %v1868
    %1947 = vmatpush.bf16.msra.mxu0 %v1864
    %1948 = vmatmul.bf16.gmra.mxu0 %v1766
    %v1949 = vpop.f32.mrf.mxu0
    %v1950 = vadd.f32 0.0, %v1949
    %v1951 = vpop.f32.mrf.mxu0
    %1952 = vdwg.mxu0
    %1953 = vmatpush.bf16.msra.mxu0 %v1893
    %1954 = vmatpush.bf16.msra.mxu0 %v1889
    %1955 = vmatpush.bf16.msra.mxu0 %v1885
    %1956 = vmatpush.bf16.msra.mxu0 %v1881
    %1957 = vmatpush.bf16.msra.mxu0 %v1877
    %1958 = vmatpush.bf16.msra.mxu0 %v1873
    %1959 = vmatpush.bf16.msra.mxu0 %v1869
    %1960 = vmatpush.bf16.msra.mxu0 %v1865
    %1961 = vmatmul.bf16.gmra.mxu0 %v1766
    %v1962 = vpop.f32.mrf.mxu0
    %v1963 = vadd.f32 0.0, %v1962
    %v1964 = vpop.f32.mrf.mxu0
    %1965 = vdwg.mxu0
    %1966 = vmatpush.bf16.msra.mxu0 %v1894
    %1967 = vmatpush.bf16.msra.mxu0 %v1890
    %1968 = vmatpush.bf16.msra.mxu0 %v1886
    %1969 = vmatpush.bf16.msra.mxu0 %v1882
    %1970 = vmatpush.bf16.msra.mxu0 %v1878
    %1971 = vmatpush.bf16.msra.mxu0 %v1874
    %1972 = vmatpush.bf16.msra.mxu0 %v1870
    %1973 = vmatpush.bf16.msra.mxu0 %v1866
    %1974 = vmatmul.bf16.gmra.mxu0 %v1766
    %v1975 = vpop.f32.mrf.mxu0
    %v1976 = vadd.f32 0.0, %v1975
    %v1977 = vpop.f32.mrf.mxu0
    %1978 = vdwg.mxu0
    %v1979 = vadd.f32 %v1688, %v1937
    %v1980 = vadd.f32 %v1702, %v1950
    %v1981 = vadd.f32 %v1716, %v1963
    %v1982 = vadd.f32 %v1730, %v1976
    %v1983 = vtanh.pop %v1979
    %v1984 = vtanh.pop %v1980
    %v1985 = vtanh.pop %v1981
    %v1986 = vtanh.pop %v1982
    %v1987 = vmul.f32 %v1983, 0.5
    %v1988 = vadd.f32 %v1987, 0.5
    %v1989 = vmul.f32 %v1984, 0.5
    %v1990 = vadd.f32 %v1989, 0.5
    %v1991 = vmul.f32 %v1986, 0.5
    %v1992 = vadd.f32 %v1991, 0.5
    %v1993 = vmul.f32 %v1990, %v1472
    %v1994 = vmul.f32 %v1988, %v1985
    %v1995 = vadd.f32 %v1993, %v1994
    %v1996 = vtanh.pop %v1995
    %v1997 = vmul.f32 %v1992, %v1996
    %v1998 = vpack.c.bf16 %v1997, %v1997
    %1999 = vmatpush.bf16.msra.mxu0 %v1891
    %2000 = vmatpush.bf16.msra.mxu0 %v1887
    %2001 = vmatpush.bf16.msra.mxu0 %v1883
    %2002 = vmatpush.bf16.msra.mxu0 %v1879
    %2003 = vmatpush.bf16.msra.mxu0 %v1875
    %2004 = vmatpush.bf16.msra.mxu0 %v1871
    %2005 = vmatpush.bf16.msra.mxu0 %v1867
    %2006 = vmatpush.bf16.msra.mxu0 %v1863
    %2007 = vmatmul.bf16.gmra.mxu0 %v1998
    %v2008 = vpop.f32.mrf.mxu0
    %v2009 = vadd.f32 0.0, %v2008
    %v2010 = vpop.f32.mrf.mxu0
    %2011 = vdwg.mxu0
    %2012 = vmatpush.bf16.msra.mxu0 %v1892
    %2013 = vmatpush.bf16.msra.mxu0 %v1888
    %2014 = vmatpush.bf16.msra.mxu0 %v1884
    %2015 = vmatpush.bf16.msra.mxu0 %v1880
    %2016 = vmatpush.bf16.msra.mxu0 %v1876
    %2017 = vmatpush.bf16.msra.mxu0 %v1872
    %2018 = vmatpush.bf16.msra.mxu0 %v1868
    %2019 = vmatpush.bf16.msra.mxu0 %v1864
    %2020 = vmatmul.bf16.gmra.mxu0 %v1998
    %v2021 = vpop.f32.mrf.mxu0
    %v2022 = vadd.f32 0.0, %v2021
    %v2023 = vpop.f32.mrf.mxu0
    %2024 = vdwg.mxu0
    %2025 = vmatpush.bf16.msra.mxu0 %v1893
    %2026 = vmatpush.bf16.msra.mxu0 %v1889
    %2027 = vmatpush.bf16.msra.mxu0 %v1885
    %2028 = vmatpush.bf16.msra.mxu0 %v1881
    %2029 = vmatpush.bf16.msra.mxu0 %v1877
    %2030 = vmatpush.bf16.msra.mxu0 %v1873
    %2031 = vmatpush.bf16.msra.mxu0 %v1869
    %2032 = vmatpush.bf16.msra.mxu0 %v1865
    %2033 = vmatmul.bf16.gmra.mxu0 %v1998
    %v2034 = vpop.f32.mrf.mxu0
    %v2035 = vadd.f32 0.0, %v2034
    %v2036 = vpop.f32.mrf.mxu0
    %2037 = vdwg.mxu0
    %2038 = vmatpush.bf16.msra.mxu0 %v1894
    %2039 = vmatpush.bf16.msra.mxu0 %v1890
    %2040 = vmatpush.bf16.msra.mxu0 %v1886
    %2041 = vmatpush.bf16.msra.mxu0 %v1882
    %2042 = vmatpush.bf16.msra.mxu0 %v1878
    %2043 = vmatpush.bf16.msra.mxu0 %v1874
    %2044 = vmatpush.bf16.msra.mxu0 %v1870
    %2045 = vmatpush.bf16.msra.mxu0 %v1866
    %2046 = vmatmul.bf16.gmra.mxu0 %v1998
    %v2047 = vpop.f32.mrf.mxu0
    %v2048 = vadd.f32 0.0, %v2047
    %v2049 = vpop.f32.mrf.mxu0
    %2050 = vdwg.mxu0
    %v2055 = vrot.slane %v2009, 6
    %v2056 = vrot.slane %v2022, 6
    %v2057 = vrot.slane %v2035, 6
    %v2058 = vrot.slane %v2048, 6
    %v2063 = vadd.f32 %v1688, %v2055
    %v2064 = vadd.f32 %v1702, %v2056
    %v2065 = vadd.f32 %v1716, %v2057
    %v2066 = vadd.f32 %v1730, %v2058
    %v2067 = vtanh.pop %v2063
    %v2068 = vtanh.pop %v2064
    %v2069 = vtanh.pop %v2065
    %v2070 = vtanh.pop %v2066
    %v2071 = vmul.f32 %v2067, 0.5
    %v2072 = vadd.f32 %v2071, 0.5
    %v2073 = vmul.f32 %v2068, 0.5
    %v2074 = vadd.f32 %v2073, 0.5
    %v2075 = vmul.f32 %v2070, 0.5
    %v2076 = vadd.f32 %v2075, 0.5
    %v2078 = vrot.slane %v1995, 6
    %v2080 = vmul.f32 %v2074, %v2078
    %v2081 = vmul.f32 %v2072, %v2069
    %v2082 = vadd.f32 %v2080, %v2081
    %v2083 = vtanh.pop %v2082
    %v2084 = vmul.f32 %v2076, %v2083
    %v2085 = vpack.c.bf16 %v2084, %v2084
    %v2087 = vrot.slane %v2085, 1
    %2089 = vmatpush.bf16.msra.mxu0 %v1891
    %2090 = vmatpush.bf16.msra.mxu0 %v1887
    %2091 = vmatpush.bf16.msra.mxu0 %v1883
    %2092 = vmatpush.bf16.msra.mxu0 %v1879
    %2093 = vmatpush.bf16.msra.mxu0 %v1875
    %2094 = vmatpush.bf16.msra.mxu0 %v1871
    %2095 = vmatpush.bf16.msra.mxu0 %v1867
    %2096 = vmatpush.bf16.msra.mxu0 %v1863
    %2097 = vmatmul.bf16.gmra.mxu0 %v2087
    %v2098 = vpop.f32.mrf.mxu0
    %v2099 = vadd.f32 0.0, %v2098
    %v2100 = vpop.f32.mrf.mxu0
    %2101 = vdwg.mxu0
    %2102 = vmatpush.bf16.msra.mxu0 %v1892
    %2103 = vmatpush.bf16.msra.mxu0 %v1888
    %2104 = vmatpush.bf16.msra.mxu0 %v1884
    %2105 = vmatpush.bf16.msra.mxu0 %v1880
    %2106 = vmatpush.bf16.msra.mxu0 %v1876
    %2107 = vmatpush.bf16.msra.mxu0 %v1872
    %2108 = vmatpush.bf16.msra.mxu0 %v1868
    %2109 = vmatpush.bf16.msra.mxu0 %v1864
    %2110 = vmatmul.bf16.gmra.mxu0 %v2087
    %v2111 = vpop.f32.mrf.mxu0
    %v2112 = vadd.f32 0.0, %v2111
    %v2113 = vpop.f32.mrf.mxu0
    %2114 = vdwg.mxu0
    %2115 = vmatpush.bf16.msra.mxu0 %v1893
    %2116 = vmatpush.bf16.msra.mxu0 %v1889
    %2117 = vmatpush.bf16.msra.mxu0 %v1885
    %2118 = vmatpush.bf16.msra.mxu0 %v1881
    %2119 = vmatpush.bf16.msra.mxu0 %v1877
    %2120 = vmatpush.bf16.msra.mxu0 %v1873
    %2121 = vmatpush.bf16.msra.mxu0 %v1869
    %2122 = vmatpush.bf16.msra.mxu0 %v1865
    %2123 = vmatmul.bf16.gmra.mxu0 %v2087
    %v2124 = vpop.f32.mrf.mxu0
    %v2125 = vadd.f32 0.0, %v2124
    %v2126 = vpop.f32.mrf.mxu0
    %2127 = vdwg.mxu0
    %2128 = vmatpush.bf16.msra.mxu0 %v1894
    %2129 = vmatpush.bf16.msra.mxu0 %v1890
    %2130 = vmatpush.bf16.msra.mxu0 %v1886
    %2131 = vmatpush.bf16.msra.mxu0 %v1882
    %2132 = vmatpush.bf16.msra.mxu0 %v1878
    %2133 = vmatpush.bf16.msra.mxu0 %v1874
    %2134 = vmatpush.bf16.msra.mxu0 %v1870
    %2135 = vmatpush.bf16.msra.mxu0 %v1866
    %2136 = vmatmul.bf16.gmra.mxu0 %v2087
    %v2137 = vpop.f32.mrf.mxu0
    %v2138 = vadd.f32 0.0, %v2137
    %v2139 = vpop.f32.mrf.mxu0
    %2140 = vdwg.mxu0
    %v2145 = vrot.slane %v2099, 4
    %v2146 = vrot.slane %v2112, 4
    %v2147 = vrot.slane %v2125, 4
    %v2148 = vrot.slane %v2138, 4
    %v2153 = vadd.f32 %v1688, %v2145
    %v2154 = vadd.f32 %v1702, %v2146
    %v2155 = vadd.f32 %v1716, %v2147
    %v2156 = vadd.f32 %v1730, %v2148
    %v2157 = vtanh.pop %v2153
    %v2158 = vtanh.pop %v2154
    %v2159 = vtanh.pop %v2155
    %v2160 = vtanh.pop %v2156
    %v2161 = vmul.f32 %v2157, 0.5
    %v2162 = vadd.f32 %v2161, 0.5
    %v2163 = vmul.f32 %v2158, 0.5
    %v2164 = vadd.f32 %v2163, 0.5
    %v2165 = vmul.f32 %v2160, 0.5
    %v2166 = vadd.f32 %v2165, 0.5
    %v2168 = vrot.slane %v2082, 6
    %v2170 = vmul.f32 %v2164, %v2168
    %v2171 = vmul.f32 %v2162, %v2159
    %v2172 = vadd.f32 %v2170, %v2171
    %v2173 = vtanh.pop %v2172
    %v2174 = vmul.f32 %v2166, %v2173
    %v2175 = vpack.c.bf16 %v2174, %v2174
    %v2177 = vrot.slane %v2175, 2
    %2179 = vmatpush.bf16.msra.mxu0 %v1891
    %2180 = vmatpush.bf16.msra.mxu0 %v1887
    %2181 = vmatpush.bf16.msra.mxu0 %v1883
    %2182 = vmatpush.bf16.msra.mxu0 %v1879
    %2183 = vmatpush.bf16.msra.mxu0 %v1875
    %2184 = vmatpush.bf16.msra.mxu0 %v1871
    %2185 = vmatpush.bf16.msra.mxu0 %v1867
    %2186 = vmatpush.bf16.msra.mxu0 %v1863
    %2187 = vmatmul.bf16.gmra.mxu0 %v2177
    %v2188 = vpop.f32.mrf.mxu0
    %v2189 = vadd.f32 0.0, %v2188
    %v2190 = vpop.f32.mrf.mxu0
    %2191 = vdwg.mxu0
    %2192 = vmatpush.bf16.msra.mxu0 %v1892
    %2193 = vmatpush.bf16.msra.mxu0 %v1888
    %2194 = vmatpush.bf16.msra.mxu0 %v1884
    %2195 = vmatpush.bf16.msra.mxu0 %v1880
    %2196 = vmatpush.bf16.msra.mxu0 %v1876
    %2197 = vmatpush.bf16.msra.mxu0 %v1872
    %2198 = vmatpush.bf16.msra.mxu0 %v1868
    %2199 = vmatpush.bf16.msra.mxu0 %v1864
    %2200 = vmatmul.bf16.gmra.mxu0 %v2177
    %v2201 = vpop.f32.mrf.mxu0
    %v2202 = vadd.f32 0.0, %v2201
    %v2203 = vpop.f32.mrf.mxu0
    %2204 = vdwg.mxu0
    %2205 = vmatpush.bf16.msra.mxu0 %v1893
    %2206 = vmatpush.bf16.msra.mxu0 %v1889
    %2207 = vmatpush.bf16.msra.mxu0 %v1885
    %2208 = vmatpush.bf16.msra.mxu0 %v1881
    %2209 = vmatpush.bf16.msra.mxu0 %v1877
    %2210 = vmatpush.bf16.msra.mxu0 %v1873
    %2211 = vmatpush.bf16.msra.mxu0 %v1869
    %2212 = vmatpush.bf16.msra.mxu0 %v1865
    %2213 = vmatmul.bf16.gmra.mxu0 %v2177
    %v2214 = vpop.f32.mrf.mxu0
    %v2215 = vadd.f32 0.0, %v2214
    %v2216 = vpop.f32.mrf.mxu0
    %2217 = vdwg.mxu0
    %2218 = vmatpush.bf16.msra.mxu0 %v1894
    %2219 = vmatpush.bf16.msra.mxu0 %v1890
    %2220 = vmatpush.bf16.msra.mxu0 %v1886
    %2221 = vmatpush.bf16.msra.mxu0 %v1882
    %2222 = vmatpush.bf16.msra.mxu0 %v1878
    %2223 = vmatpush.bf16.msra.mxu0 %v1874
    %2224 = vmatpush.bf16.msra.mxu0 %v1870
    %2225 = vmatpush.bf16.msra.mxu0 %v1866
    %2226 = vmatmul.bf16.gmra.mxu0 %v2177
    %v2227 = vpop.f32.mrf.mxu0
    %v2228 = vadd.f32 0.0, %v2227
    %v2229 = vpop.f32.mrf.mxu0
    %2230 = vdwg.mxu0
    %v2235 = vrot.slane %v2189, 2
    %v2236 = vrot.slane %v2202, 2
    %v2237 = vrot.slane %v2215, 2
    %v2238 = vrot.slane %v2228, 2
    %v2243 = vadd.f32 %v1688, %v2235
    %v2244 = vadd.f32 %v1702, %v2236
    %v2245 = vadd.f32 %v1716, %v2237
    %v2246 = vadd.f32 %v1730, %v2238
    %v2247 = vtanh.pop %v2243
    %v2248 = vtanh.pop %v2244
    %v2249 = vtanh.pop %v2245
    %v2250 = vtanh.pop %v2246
    %v2251 = vmul.f32 %v2247, 0.5
    %v2252 = vadd.f32 %v2251, 0.5
    %v2253 = vmul.f32 %v2248, 0.5
    %v2254 = vadd.f32 %v2253, 0.5
    %v2255 = vmul.f32 %v2250, 0.5
    %v2256 = vadd.f32 %v2255, 0.5
    %v2258 = vrot.slane %v2172, 6
    %v2260 = vmul.f32 %v2254, %v2258
    %v2261 = vmul.f32 %v2252, %v2249
    %v2262 = vadd.f32 %v2260, %v2261
    %v2263 = vtanh.pop %v2262
    %v2264 = vmul.f32 %v2256, %v2263
    %v2265 = vpack.c.bf16 %v2264, %v2264
    %v2267 = vrot.slane %v2265, 3
    %2269 = vmatpush.bf16.msra.mxu0 %v1891
    %2270 = vmatpush.bf16.msra.mxu0 %v1887
    %2271 = vmatpush.bf16.msra.mxu0 %v1883
    %2272 = vmatpush.bf16.msra.mxu0 %v1879
    %2273 = vmatpush.bf16.msra.mxu0 %v1875
    %2274 = vmatpush.bf16.msra.mxu0 %v1871
    %2275 = vmatpush.bf16.msra.mxu0 %v1867
    %2276 = vmatpush.bf16.msra.mxu0 %v1863
    %2277 = vmatmul.bf16.gmra.mxu0 %v2267
    %v2278 = vpop.f32.mrf.mxu0
    %v2279 = vadd.f32 0.0, %v2278
    %v2280 = vpop.f32.mrf.mxu0
    %2281 = vdwg.mxu0
    %2282 = vmatpush.bf16.msra.mxu0 %v1892
    %2283 = vmatpush.bf16.msra.mxu0 %v1888
    %2284 = vmatpush.bf16.msra.mxu0 %v1884
    %2285 = vmatpush.bf16.msra.mxu0 %v1880
    %2286 = vmatpush.bf16.msra.mxu0 %v1876
    %2287 = vmatpush.bf16.msra.mxu0 %v1872
    %2288 = vmatpush.bf16.msra.mxu0 %v1868
    %2289 = vmatpush.bf16.msra.mxu0 %v1864
    %2290 = vmatmul.bf16.gmra.mxu0 %v2267
    %v2291 = vpop.f32.mrf.mxu0
    %v2292 = vadd.f32 0.0, %v2291
    %v2293 = vpop.f32.mrf.mxu0
    %2294 = vdwg.mxu0
    %2295 = vmatpush.bf16.msra.mxu0 %v1893
    %2296 = vmatpush.bf16.msra.mxu0 %v1889
    %2297 = vmatpush.bf16.msra.mxu0 %v1885
    %2298 = vmatpush.bf16.msra.mxu0 %v1881
    %2299 = vmatpush.bf16.msra.mxu0 %v1877
    %2300 = vmatpush.bf16.msra.mxu0 %v1873
    %2301 = vmatpush.bf16.msra.mxu0 %v1869
    %2302 = vmatpush.bf16.msra.mxu0 %v1865
    %2303 = vmatmul.bf16.gmra.mxu0 %v2267
    %v2304 = vpop.f32.mrf.mxu0
    %v2305 = vadd.f32 0.0, %v2304
    %v2306 = vpop.f32.mrf.mxu0
    %2307 = vdwg.mxu0
    %2308 = vmatpush.bf16.msra.mxu0 %v1894
    %2309 = vmatpush.bf16.msra.mxu0 %v1890
    %2310 = vmatpush.bf16.msra.mxu0 %v1886
    %2311 = vmatpush.bf16.msra.mxu0 %v1882
    %2312 = vmatpush.bf16.msra.mxu0 %v1878
    %2313 = vmatpush.bf16.msra.mxu0 %v1874
    %2314 = vmatpush.bf16.msra.mxu0 %v1870
    %2315 = vmatpush.bf16.msra.mxu0 %v1866
    %2316 = vmatmul.bf16.gmra.mxu0 %v2267
    %v2317 = vpop.f32.mrf.mxu0
    %v2318 = vadd.f32 0.0, %v2317
    %v2319 = vpop.f32.mrf.mxu0
    %2320 = vdwg.mxu0
    %v2321 = vadd.f32 %v1690, %v2279
    %v2322 = vadd.f32 %v1704, %v2292
    %v2323 = vadd.f32 %v1718, %v2305
    %v2324 = vadd.f32 %v1732, %v2318
    %v2325 = vtanh.pop %v2321
    %v2326 = vtanh.pop %v2322
    %v2327 = vtanh.pop %v2323
    %v2328 = vtanh.pop %v2324
    %v2329 = vmul.f32 %v2325, 0.5
    %v2330 = vadd.f32 %v2329, 0.5
    %v2331 = vmul.f32 %v2326, 0.5
    %v2332 = vadd.f32 %v2331, 0.5
    %v2333 = vmul.f32 %v2328, 0.5
    %v2334 = vadd.f32 %v2333, 0.5
    %v2336 = vrot.slane %v2262, 6
    %v2338 = vmul.f32 %v2332, %v2336
    %v2339 = vmul.f32 %v2330, %v2327
    %v2340 = vadd.f32 %v2338, %v2339
    %v2341 = vtanh.pop %v2340
    %v2342 = vmul.f32 %v2334, %v2341
    %v2343 = vpack.c.bf16 %v2342, %v2342
    %2344 = vmatpush.bf16.msra.mxu0 %v1891
    %2345 = vmatpush.bf16.msra.mxu0 %v1887
    %2346 = vmatpush.bf16.msra.mxu0 %v1883
    %2347 = vmatpush.bf16.msra.mxu0 %v1879
    %2348 = vmatpush.bf16.msra.mxu0 %v1875
    %2349 = vmatpush.bf16.msra.mxu0 %v1871
    %2350 = vmatpush.bf16.msra.mxu0 %v1867
    %2351 = vmatpush.bf16.msra.mxu0 %v1863
    %2352 = vmatmul.bf16.gmra.mxu0 %v2343
    %v2353 = vpop.f32.mrf.mxu0
    %v2354 = vadd.f32 0.0, %v2353
    %v2355 = vpop.f32.mrf.mxu0
    %2356 = vdwg.mxu0
    %2357 = vmatpush.bf16.msra.mxu0 %v1892
    %2358 = vmatpush.bf16.msra.mxu0 %v1888
    %2359 = vmatpush.bf16.msra.mxu0 %v1884
    %2360 = vmatpush.bf16.msra.mxu0 %v1880
    %2361 = vmatpush.bf16.msra.mxu0 %v1876
    %2362 = vmatpush.bf16.msra.mxu0 %v1872
    %2363 = vmatpush.bf16.msra.mxu0 %v1868
    %2364 = vmatpush.bf16.msra.mxu0 %v1864
    %2365 = vmatmul.bf16.gmra.mxu0 %v2343
    %v2366 = vpop.f32.mrf.mxu0
    %v2367 = vadd.f32 0.0, %v2366
    %v2368 = vpop.f32.mrf.mxu0
    %2369 = vdwg.mxu0
    %2370 = vmatpush.bf16.msra.mxu0 %v1893
    %2371 = vmatpush.bf16.msra.mxu0 %v1889
    %2372 = vmatpush.bf16.msra.mxu0 %v1885
    %2373 = vmatpush.bf16.msra.mxu0 %v1881
    %2374 = vmatpush.bf16.msra.mxu0 %v1877
    %2375 = vmatpush.bf16.msra.mxu0 %v1873
    %2376 = vmatpush.bf16.msra.mxu0 %v1869
    %2377 = vmatpush.bf16.msra.mxu0 %v1865
    %2378 = vmatmul.bf16.gmra.mxu0 %v2343
    %v2379 = vpop.f32.mrf.mxu0
    %v2380 = vadd.f32 0.0, %v2379
    %v2381 = vpop.f32.mrf.mxu0
    %2382 = vdwg.mxu0
    %2383 = vmatpush.bf16.msra.mxu0 %v1894
    %2384 = vmatpush.bf16.msra.mxu0 %v1890
    %2385 = vmatpush.bf16.msra.mxu0 %v1886
    %2386 = vmatpush.bf16.msra.mxu0 %v1882
    %2387 = vmatpush.bf16.msra.mxu0 %v1878
    %2388 = vmatpush.bf16.msra.mxu0 %v1874
    %2389 = vmatpush.bf16.msra.mxu0 %v1870
    %2390 = vmatpush.bf16.msra.mxu0 %v1866
    %2391 = vmatmul.bf16.gmra.mxu0 %v2343
    %v2392 = vpop.f32.mrf.mxu0
    %v2393 = vadd.f32 0.0, %v2392
    %v2394 = vpop.f32.mrf.mxu0
    %2395 = vdwg.mxu0
    %v2400 = vrot.slane %v2354, 6
    %v2401 = vrot.slane %v2367, 6
    %v2402 = vrot.slane %v2380, 6
    %v2403 = vrot.slane %v2393, 6
    %v2408 = vadd.f32 %v1690, %v2400
    %v2409 = vadd.f32 %v1704, %v2401
    %v2410 = vadd.f32 %v1718, %v2402
    %v2411 = vadd.f32 %v1732, %v2403
    %v2412 = vtanh.pop %v2408
    %v2413 = vtanh.pop %v2409
    %v2414 = vtanh.pop %v2410
    %v2415 = vtanh.pop %v2411
    %v2416 = vmul.f32 %v2412, 0.5
    %v2417 = vadd.f32 %v2416, 0.5
    %v2418 = vmul.f32 %v2413, 0.5
    %v2419 = vadd.f32 %v2418, 0.5
    %v2420 = vmul.f32 %v2415, 0.5
    %v2421 = vadd.f32 %v2420, 0.5
    %v2423 = vrot.slane %v2340, 6
    %v2425 = vmul.f32 %v2419, %v2423
    %v2426 = vmul.f32 %v2417, %v2414
    %v2427 = vadd.f32 %v2425, %v2426
    %v2428 = vtanh.pop %v2427
    %v2429 = vmul.f32 %v2421, %v2428
    %v2430 = vpack.c.bf16 %v2429, %v2429
    %v2432 = vrot.slane %v2430, 1
    %2434 = vmatpush.bf16.msra.mxu0 %v1891
    %2435 = vmatpush.bf16.msra.mxu0 %v1887
    %2436 = vmatpush.bf16.msra.mxu0 %v1883
    %2437 = vmatpush.bf16.msra.mxu0 %v1879
    %2438 = vmatpush.bf16.msra.mxu0 %v1875
    %2439 = vmatpush.bf16.msra.mxu0 %v1871
    %2440 = vmatpush.bf16.msra.mxu0 %v1867
    %2441 = vmatpush.bf16.msra.mxu0 %v1863
    %2442 = vmatmul.bf16.gmra.mxu0 %v2432
    %v2443 = vpop.f32.mrf.mxu0
    %v2444 = vadd.f32 0.0, %v2443
    %v2445 = vpop.f32.mrf.mxu0
    %2446 = vdwg.mxu0
    %2447 = vmatpush.bf16.msra.mxu0 %v1892
    %2448 = vmatpush.bf16.msra.mxu0 %v1888
    %2449 = vmatpush.bf16.msra.mxu0 %v1884
    %2450 = vmatpush.bf16.msra.mxu0 %v1880
    %2451 = vmatpush.bf16.msra.mxu0 %v1876
    %2452 = vmatpush.bf16.msra.mxu0 %v1872
    %2453 = vmatpush.bf16.msra.mxu0 %v1868
    %2454 = vmatpush.bf16.msra.mxu0 %v1864
    %2455 = vmatmul.bf16.gmra.mxu0 %v2432
    %v2456 = vpop.f32.mrf.mxu0
    %v2457 = vadd.f32 0.0, %v2456
    %v2458 = vpop.f32.mrf.mxu0
    %2459 = vdwg.mxu0
    %2460 = vmatpush.bf16.msra.mxu0 %v1893
    %2461 = vmatpush.bf16.msra.mxu0 %v1889
    %2462 = vmatpush.bf16.msra.mxu0 %v1885
    %2463 = vmatpush.bf16.msra.mxu0 %v1881
    %2464 = vmatpush.bf16.msra.mxu0 %v1877
    %2465 = vmatpush.bf16.msra.mxu0 %v1873
    %2466 = vmatpush.bf16.msra.mxu0 %v1869
    %2467 = vmatpush.bf16.msra.mxu0 %v1865
    %2468 = vmatmul.bf16.gmra.mxu0 %v2432
    %v2469 = vpop.f32.mrf.mxu0
    %v2470 = vadd.f32 0.0, %v2469
    %v2471 = vpop.f32.mrf.mxu0
    %2472 = vdwg.mxu0
    %2473 = vmatpush.bf16.msra.mxu0 %v1894
    %2474 = vmatpush.bf16.msra.mxu0 %v1890
    %2475 = vmatpush.bf16.msra.mxu0 %v1886
    %2476 = vmatpush.bf16.msra.mxu0 %v1882
    %2477 = vmatpush.bf16.msra.mxu0 %v1878
    %2478 = vmatpush.bf16.msra.mxu0 %v1874
    %2479 = vmatpush.bf16.msra.mxu0 %v1870
    %2480 = vmatpush.bf16.msra.mxu0 %v1866
    %2481 = vmatmul.bf16.gmra.mxu0 %v2432
    %v2482 = vpop.f32.mrf.mxu0
    %v2483 = vadd.f32 0.0, %v2482
    %v2484 = vpop.f32.mrf.mxu0
    %2485 = vdwg.mxu0
    %v2490 = vrot.slane %v2444, 4
    %v2491 = vrot.slane %v2457, 4
    %v2492 = vrot.slane %v2470, 4
    %v2493 = vrot.slane %v2483, 4
    %v2498 = vadd.f32 %v1690, %v2490
    %v2499 = vadd.f32 %v1704, %v2491
    %v2500 = vadd.f32 %v1718, %v2492
    %v2501 = vadd.f32 %v1732, %v2493
    %v2502 = vtanh.pop %v2498
    %v2503 = vtanh.pop %v2499
    %v2504 = vtanh.pop %v2500
    %v2505 = vtanh.pop %v2501
    %v2506 = vmul.f32 %v2502, 0.5
    %v2507 = vadd.f32 %v2506, 0.5
    %v2508 = vmul.f32 %v2503, 0.5
    %v2509 = vadd.f32 %v2508, 0.5
    %v2510 = vmul.f32 %v2505, 0.5
    %v2511 = vadd.f32 %v2510, 0.5
    %v2513 = vrot.slane %v2427, 6
    %v2515 = vmul.f32 %v2509, %v2513
    %v2516 = vmul.f32 %v2507, %v2504
    %v2517 = vadd.f32 %v2515, %v2516
    %v2518 = vtanh.pop %v2517
    %v2519 = vmul.f32 %v2511, %v2518
    %v2520 = vpack.c.bf16 %v2519, %v2519
    %v2522 = vrot.slane %v2520, 2
    %2524 = vmatpush.bf16.msra.mxu0 %v1891
    %2525 = vmatpush.bf16.msra.mxu0 %v1887
    %2526 = vmatpush.bf16.msra.mxu0 %v1883
    %2527 = vmatpush.bf16.msra.mxu0 %v1879
    %2528 = vmatpush.bf16.msra.mxu0 %v1875
    %2529 = vmatpush.bf16.msra.mxu0 %v1871
    %2530 = vmatpush.bf16.msra.mxu0 %v1867
    %2531 = vmatpush.bf16.msra.mxu0 %v1863
    %2532 = vmatmul.bf16.gmra.mxu0 %v2522
    %v2533 = vpop.f32.mrf.mxu0
    %v2534 = vadd.f32 0.0, %v2533
    %v2535 = vpop.f32.mrf.mxu0
    %2536 = vdwg.mxu0
    %2537 = vmatpush.bf16.msra.mxu0 %v1892
    %2538 = vmatpush.bf16.msra.mxu0 %v1888
    %2539 = vmatpush.bf16.msra.mxu0 %v1884
    %2540 = vmatpush.bf16.msra.mxu0 %v1880
    %2541 = vmatpush.bf16.msra.mxu0 %v1876
    %2542 = vmatpush.bf16.msra.mxu0 %v1872
    %2543 = vmatpush.bf16.msra.mxu0 %v1868
    %2544 = vmatpush.bf16.msra.mxu0 %v1864
    %2545 = vmatmul.bf16.gmra.mxu0 %v2522
    %v2546 = vpop.f32.mrf.mxu0
    %v2547 = vadd.f32 0.0, %v2546
    %v2548 = vpop.f32.mrf.mxu0
    %2549 = vdwg.mxu0
    %2550 = vmatpush.bf16.msra.mxu0 %v1893
    %2551 = vmatpush.bf16.msra.mxu0 %v1889
    %2552 = vmatpush.bf16.msra.mxu0 %v1885
    %2553 = vmatpush.bf16.msra.mxu0 %v1881
    %2554 = vmatpush.bf16.msra.mxu0 %v1877
    %2555 = vmatpush.bf16.msra.mxu0 %v1873
    %2556 = vmatpush.bf16.msra.mxu0 %v1869
    %2557 = vmatpush.bf16.msra.mxu0 %v1865
    %2558 = vmatmul.bf16.gmra.mxu0 %v2522
    %v2559 = vpop.f32.mrf.mxu0
    %v2560 = vadd.f32 0.0, %v2559
    %v2561 = vpop.f32.mrf.mxu0
    %2562 = vdwg.mxu0
    %2563 = vmatpush.bf16.msra.mxu0 %v1894
    %2564 = vmatpush.bf16.msra.mxu0 %v1890
    %2565 = vmatpush.bf16.msra.mxu0 %v1886
    %2566 = vmatpush.bf16.msra.mxu0 %v1882
    %2567 = vmatpush.bf16.msra.mxu0 %v1878
    %2568 = vmatpush.bf16.msra.mxu0 %v1874
    %2569 = vmatpush.bf16.msra.mxu0 %v1870
    %2570 = vmatpush.bf16.msra.mxu0 %v1866
    %2571 = vmatmul.bf16.gmra.mxu0 %v2522
    %v2572 = vpop.f32.mrf.mxu0
    %v2573 = vadd.f32 0.0, %v2572
    %v2574 = vpop.f32.mrf.mxu0
    %2575 = vdwg.mxu0
    %v2580 = vrot.slane %v2534, 2
    %v2581 = vrot.slane %v2547, 2
    %v2582 = vrot.slane %v2560, 2
    %v2583 = vrot.slane %v2573, 2
    %v2588 = vadd.f32 %v1690, %v2580
    %v2589 = vadd.f32 %v1704, %v2581
    %v2590 = vadd.f32 %v1718, %v2582
    %v2591 = vadd.f32 %v1732, %v2583
    %v2592 = vtanh.pop %v2588
    %v2593 = vtanh.pop %v2589
    %v2594 = vtanh.pop %v2590
    %v2595 = vtanh.pop %v2591
    %v2596 = vmul.f32 %v2592, 0.5
    %v2597 = vadd.f32 %v2596, 0.5
    %v2598 = vmul.f32 %v2593, 0.5
    %v2599 = vadd.f32 %v2598, 0.5
    %v2600 = vmul.f32 %v2595, 0.5
    %v2601 = vadd.f32 %v2600, 0.5
    %v2603 = vrot.slane %v2517, 6
    %v2605 = vmul.f32 %v2599, %v2603
    %v2606 = vmul.f32 %v2597, %v2594
    %v2607 = vadd.f32 %v2605, %v2606
    %v2608 = vtanh.pop %v2607
    %v2609 = vmul.f32 %v2601, %v2608
    %2610 = vst [vmem:[#allocation3 - $0x6] sm:$0xc0] %v2609
    // Predicated region
    $region62: #{aelstm_forward.1} parent=1 // pred_check
      _
    $region63: #{aelstm_forward.1} parent=1 // pred_check_branch
      %2612 = sbr.rel (0) target = $region65
    $region64: #{aelstm_forward.1} parent=1 // pred_region
      %2614 = vsyncadd [#allocation4], 0
      %s2616 = sshll.u32 [#allocation3], 4
      %s2617 = int_to_ptr.vmem [resolvable:$true] %s2616
      %s2618 = sshll.u32 %s15, 4
      %s2619 = int_to_ptr.hbm [resolvable:$true] %s2618
      %2621 = dma.vmem_to_hbm [thread:$0]  %s2617, 32, %s2619, [#allocation4]
    $region65: #{aelstm_forward.1} parent=1 // pred_fallthru
      _
    // Predicated region
    $region66: #{aelstm_forward.1} parent=1 // pred_check
      _
    $region67: #{aelstm_forward.1} parent=1 // pred_check_branch
      %2623 = sbr.rel (0) target = $region69
    $region68: #{aelstm_forward.1} parent=1 // pred_region
      %2625 = dma.done [#allocation4], 32
    $region69: #{aelstm_forward.1} parent=1 // pred_fallthru
      _
    %2626 = vsyncpa [#allocation4], 1

</llo_original>
